<compile_context>
chip_gen: v5e
topology: v5e:2x2
jax: 0.10.0
libtpu: 0.0.40
codegen_flags: <defaults>
</compile_context>

<pallas_src>
import functools

import jax
import jax.numpy as jnp
from jax.experimental import pallas as pl
from jax.experimental.pallas import tpu as pltpu


# ---------------------------------------------------------------------------
# Fused InceptionBlock kernel (one grid step per batch element).
# ---------------------------------------------------------------------------
def _inception_kernel(x_ref, wred_ref, bred_ref,
                      w2_ref, b2_ref, w3_ref, b3_ref,
                      w4_ref, b4_ref,
                      o_ref,
                      xpad_ref, col_ref,
                      *, H, W, n1x1, n3x3reduce, n3x3, n5x5reduce, n5x5,
                      pool_ch):
    x = x_ref[0]                                         # (H, W, Cin) f32
    cin = x.shape[-1]

    # ---- fused 1x1 "reduce" matmul for branches b1 / b2 / b3 (bf16 MXU) ----
    r = jax.lax.dot_general(
        x.astype(jnp.bfloat16), wred_ref[...], (((2,), (0,)), ((), ())),
        preferred_element_type=jnp.float32) + bred_ref[...]
    y1 = r[:, :, 0:n1x1]                                 # f32
    t23 = r[:, :, n1x1:]                                 # (H, W, n3r+n5r) f32

    # ---- im2col assembly into the shared column scratch --------------------
    # col[h, w, base + (dy*3+dx)*cr + c] = t[h+dy-1, w+dx-1, c]  (0 outside).
    # Scratch kept f32 (safe aligned stores); operands cast to bf16 at the dot.
    def shift_slices(d, n):
        if d == 0:
            return slice(1, n), slice(0, n - 1)
        if d == 1:
            return slice(0, n), slice(0, n)
        return slice(0, n - 1), slice(1, n)

    def im2col(base, t, cr):
        # Zero only the border strips the shifted stores below do not cover
        # (full-buffer fills are wasted vst work).
        z_row = jnp.zeros((1, W, 3 * cr), jnp.float32)
        col_ref[0:1, :, base:base + 3 * cr] = z_row                  # dy = 0
        col_ref[H - 1:H, :, base + 6 * cr:base + 9 * cr] = z_row     # dy = 2
        z_col = jnp.zeros((H, 1, cr), jnp.float32)
        for k in (0, 3, 6):                                          # dx = 0
            col_ref[:, 0:1, base + k * cr:base + (k + 1) * cr] = z_col
        for k in (2, 5, 8):                                          # dx = 2
            col_ref[:, W - 1:W, base + k * cr:base + (k + 1) * cr] = z_col
        # Shifted interior stores (9 taps).
        for dy in range(3):
            hd, hs = shift_slices(dy, H)
            for dx in range(3):
                wd, ws = shift_slices(dx, W)
                k = dy * 3 + dx
                col_ref[hd, wd, base + k * cr:base + (k + 1) * cr] = t[hs, ws, :]

    k2 = 9 * n3x3reduce
    k3 = 9 * n5x5reduce
    im2col(0, t23[:, :, 0:n3x3reduce], n3x3reduce)
    im2col(k2, t23[:, :, n3x3reduce:], n5x5reduce)

    # ---- one MXU matmul per 3x3-conv branch (bf16 operands, f32 acc) -------
    p2 = col_ref[:, :, 0:k2].astype(jnp.bfloat16)               # (H, W, 9*n3r)
    y2 = jax.lax.dot_general(
        p2, w2_ref[...], (((2,), (0,)), ((), ())),
        preferred_element_type=jnp.float32) + b2_ref[...]
    p3 = col_ref[:, :, k2:k2 + k3].astype(jnp.bfloat16)         # (H, W, 9*n5r)
    y3 = jax.lax.dot_general(
        p3, w3_ref[...], (((2,), (0,)), ((), ())),
        preferred_element_type=jnp.float32) + b3_ref[...]

    # ---- b4: 3x3 max-pool (stride 1, pad 1, f32) then 1x1 conv (bf16) ------
    ninf_row = jnp.full((1, W + 2, cin), -jnp.inf, jnp.float32)
    ninf_col = jnp.full((H + 2, 1, cin), -jnp.inf, jnp.float32)
    xpad_ref[0:1, :, :] = ninf_row            # border-only init (re-done each
    xpad_ref[H + 1:H + 2, :, :] = ninf_row    # step: safe under "parallel")
    xpad_ref[:, 0:1, :] = ninf_col
    xpad_ref[:, W + 1:W + 2, :] = ninf_col
    xpad_ref[1:H + 1, 1:W + 1, :] = x
    m = x                                     # center tap (dy, dx) = (1, 1)
    for dy in range(3):
        for dx in range(3):
            if dy == 1 and dx == 1:
                continue
            m = jnp.maximum(m, xpad_ref[dy:dy + H, dx:dx + W, :])
    y4 = jax.lax.dot_general(
        m.astype(jnp.bfloat16), w4_ref[...], (((2,), (0,)), ((), ())),
        preferred_element_type=jnp.float32) + b4_ref[...]

    # ---- write branch outputs into the concatenated channel ranges ---------
    # TODO(synk): at production widths keep these 128-aligned (or build the
    # (H, W, ctot) value in registers) so the stores are unmasked lane-dense.
    c1 = n1x1
    c2 = c1 + n3x3
    c3 = c2 + n5x5
    c4 = c3 + pool_ch
    o_ref[0, :, :, 0:c1] = y1
    o_ref[0, :, :, c1:c2] = y2
    o_ref[0, :, :, c2:c3] = y3
    o_ref[0, :, :, c3:c4] = y4


# ---------------------------------------------------------------------------
# Wrapper: NCHW -> NHWC, weight prep (fusion + im2col reshape + bf16 cast),
# one pallas_call over the batch, NHWC -> NCHW.
# ---------------------------------------------------------------------------
def inception_block(x_nchw, p):
    x = jnp.transpose(x_nchw, (0, 2, 3, 1)).astype(jnp.float32)   # NCHW->NHWC
    N, H, W, Cin = x.shape
    n1 = p["w1"].shape[1]
    n3r, n3 = p["w2"].shape[2], p["w2"].shape[3]
    n5r, n5 = p["w3"].shape[2], p["w3"].shape[3]
    pc = p["w4"].shape[1]
    ctot = n1 + n3 + n5 + pc

    # Fuse the three input-side 1x1 convs into one matmul; cast MXU weights
    # to bf16 (biases stay f32 and are added after the f32 accumulation).
    wred = jnp.concatenate([p["w1"], p["w2r"], p["w3r"]],
                           axis=1).astype(jnp.bfloat16)             # (Cin, Cr)
    bred = jnp.concatenate([p["b1"], p["b2r"], p["b3r"]], axis=0)   # (Cr,) f32
    cr = wred.shape[1]
    # im2col weight layout: rows ordered (dy, dx, cin) == flatten of HWIO.
    w2c = p["w2"].reshape(9 * n3r, n3).astype(jnp.bfloat16)
    w3c = p["w3"].reshape(9 * n5r, n5).astype(jnp.bfloat16)
    w4 = p["w4"].astype(jnp.bfloat16)

    kernel = functools.partial(
        _inception_kernel, H=H, W=W, n1x1=n1, n3x3reduce=n3r, n3x3=n3,
        n5x5reduce=n5r, n5x5=n5, pool_ch=pc)

    out = pl.pallas_call(
        kernel,
        out_shape=jax.ShapeDtypeStruct((N, H, W, ctot), jnp.float32),
        grid=(N,),
        in_specs=[
            pl.BlockSpec((1, H, W, Cin), lambda n: (n, 0, 0, 0)),
            pl.BlockSpec((Cin, cr), lambda n: (0, 0)),
            pl.BlockSpec((1, 1, cr), lambda n: (0, 0, 0)),
            pl.BlockSpec((9 * n3r, n3), lambda n: (0, 0)),
            pl.BlockSpec((1, 1, n3), lambda n: (0, 0, 0)),
            pl.BlockSpec((9 * n5r, n5), lambda n: (0, 0)),
            pl.BlockSpec((1, 1, n5), lambda n: (0, 0, 0)),
            pl.BlockSpec((Cin, pc), lambda n: (0, 0)),
            pl.BlockSpec((1, 1, pc), lambda n: (0, 0, 0)),
        ],
        out_specs=pl.BlockSpec((1, H, W, ctot), lambda n: (n, 0, 0, 0)),
        scratch_shapes=[
            pltpu.VMEM((H + 2, W + 2, Cin), jnp.float32),        # maxpool pad
            pltpu.VMEM((H, W, 9 * (n3r + n5r)), jnp.float32),    # shared im2col
        ],
        compiler_params=pltpu.CompilerParams(
            dimension_semantics=("parallel",)),
    )(x, wred, bred.reshape(1, 1, cr),
      w2c, p["b2"].reshape(1, 1, n3),
      w3c, p["b3"].reshape(1, 1, n5),
      w4, p["b4"].reshape(1, 1, pc))
    return jnp.transpose(out, (0, 3, 1, 2))                      # NHWC->NCHW


# ---------------------------------------------------------------------------
# Deterministic parameter init (PyTorch Conv2d default: U(-1/sqrt(fan_in), ..))
# ---------------------------------------------------------------------------
def init_params(key, in_channels, n1x1, n3x3reduce, n3x3,
                n5x5reduce, n5x5, pool_channels):
    keys = jax.random.split(key, 12)

    def w1x1(k, cin, cout):
        bound = 1.0 / (cin ** 0.5)
        return jax.random.uniform(k, (cin, cout), jnp.float32, -bound, bound)

    def w3(k, cin, cout):
        bound = 1.0 / ((9 * cin) ** 0.5)
        return jax.random.uniform(k, (3, 3, cin, cout), jnp.float32, -bound, bound)

    def bias(k, cout, fan_in):
        bound = 1.0 / (fan_in ** 0.5)
        return jax.random.uniform(k, (cout,), jnp.float32, -bound, bound)

    return {
        "w1": w1x1(keys[0], in_channels, n1x1),
        "b1": bias(keys[1], n1x1, in_channels),
        "w2r": w1x1(keys[2], in_channels, n3x3reduce),
        "b2r": bias(keys[3], n3x3reduce, in_channels),
        "w2": w3(keys[4], n3x3reduce, n3x3),
        "b2": bias(keys[5], n3x3, 9 * n3x3reduce),
        "w3r": w1x1(keys[6], in_channels, n5x5reduce),
        "b3r": bias(keys[7], n5x5reduce, in_channels),
        "w3": w3(keys[8], n5x5reduce, n5x5),
        "b3": bias(keys[9], n5x5, 9 * n5x5reduce),
        "w4": w1x1(keys[10], in_channels, pool_channels),
        "b4": bias(keys[11], pool_channels, in_channels),
    }


# ---------------------------------------------------------------------------
# Pure-JAX f32 reference (for correctness check).
# ---------------------------------------------------------------------------
def _ref_conv(x_nhwc, w_hwio, b):
    y = jax.lax.conv_general_dilated(
        x_nhwc, w_hwio, window_strides=(1, 1), padding="SAME",
        dimension_numbers=("NHWC", "HWIO", "NHWC"))
    return y + b[None, None, None, :]


def inception_block_ref(x_nchw, p):
    x = jnp.transpose(x_nchw, (0, 2, 3, 1))
    y1 = _ref_conv(x, p["w1"][None, None], p["b1"])
    y2 = _ref_conv(x, p["w2r"][None, None], p["b2r"])
    y2 = _ref_conv(y2, p["w2"], p["b2"])
    y3 = _ref_conv(x, p["w3r"][None, None], p["b3r"])
    y3 = _ref_conv(y3, p["w3"], p["b3"])
    pool = jax.lax.reduce_window(x, -jnp.inf, jax.lax.max,
                                 (1, 3, 3, 1), (1, 1, 1, 1), "SAME")
    y4 = _ref_conv(pool, p["w4"][None, None], p["b4"])
    y = jnp.concatenate([y1, y2, y3, y4], axis=-1)
    return jnp.transpose(y, (0, 3, 1, 2))


if __name__ == "__main__":
    key = jax.random.PRNGKey(0)
    k_x, k_p = jax.random.split(key)

    # Small shapes consistent with the module.
    N, C, H, W = 2, 4, 16, 16
    n1x1, n3x3reduce, n3x3 = 8, 4, 8
    n5x5reduce, n5x5, pool_channels = 4, 8, 8

    x = jax.random.normal(k_x, (N, C, H, W), jnp.float32)
    params = init_params(k_p, C, n1x1, n3x3reduce, n3x3,
                         n5x5reduce, n5x5, pool_channels)

    out = jax.block_until_ready(inception_block(x, params))
    assert out.shape == (N, n1x1 + n3x3 + n5x5 + pool_channels, H, W), out.shape

    ref = jax.block_until_ready(inception_block_ref(x, params))
    # Looser tolerance vs. the f32 reference: the MXU operands are bf16
    # (f32 accumulation), per the performance review.
    assert jnp.allclose(out, ref, atol=5e-2, rtol=5e-2), \
        float(jnp.max(jnp.abs(out - ref)))

    print("KERNEL_OK")
</pallas_src>

<mosaic_0001>
module attributes {stable_mosaic.version = 11 : i64} {
  func.func @_inception_kernel(%arg0: i32, %arg1: memref<1x16x16x4xf32, #tpu.memory_space<vmem>>, %arg2: memref<4x16xbf16, #tpu.memory_space<vmem>>, %arg3: memref<1x1x16xf32, #tpu.memory_space<vmem>>, %arg4: memref<36x8xbf16, #tpu.memory_space<vmem>>, %arg5: memref<1x1x8xf32, #tpu.memory_space<vmem>>, %arg6: memref<36x8xbf16, #tpu.memory_space<vmem>>, %arg7: memref<1x1x8xf32, #tpu.memory_space<vmem>>, %arg8: memref<4x8xbf16, #tpu.memory_space<vmem>>, %arg9: memref<1x1x8xf32, #tpu.memory_space<vmem>>, %arg10: memref<1x16x16x32xf32, #tpu.memory_space<vmem>>, %arg11: memref<18x18x4xf32, #tpu.memory_space<vmem>>, %arg12: memref<16x16x72xf32, #tpu.memory_space<vmem>>) attributes {dimension_semantics = [#tpu.dimension_semantics<parallel>], iteration_bounds = array<i64: 2>, scalar_prefetch = 0 : i64, scratch_operands = 2 : i64, tpu.core_type = #tpu.core_type<tc>, window_params = [{transform_indices = @transform_0, window_bounds = array<i64: 1, 16, 16, 4>}, {pipeline_mode = #tpu.pipeline_mode<synchronous>, transform_indices = @transform_1, window_bounds = array<i64: 4, 16>}, {pipeline_mode = #tpu.pipeline_mode<synchronous>, transform_indices = @transform_2, window_bounds = array<i64: 1, 1, 16>}, {pipeline_mode = #tpu.pipeline_mode<synchronous>, transform_indices = @transform_3, window_bounds = array<i64: 36, 8>}, {pipeline_mode = #tpu.pipeline_mode<synchronous>, transform_indices = @transform_4, window_bounds = array<i64: 1, 1, 8>}, {pipeline_mode = #tpu.pipeline_mode<synchronous>, transform_indices = @transform_5, window_bounds = array<i64: 36, 8>}, {pipeline_mode = #tpu.pipeline_mode<synchronous>, transform_indices = @transform_6, window_bounds = array<i64: 1, 1, 8>}, {pipeline_mode = #tpu.pipeline_mode<synchronous>, transform_indices = @transform_7, window_bounds = array<i64: 4, 8>}, {pipeline_mode = #tpu.pipeline_mode<synchronous>, transform_indices = @transform_8, window_bounds = array<i64: 1, 1, 8>}, {transform_indices = @transform_9, window_bounds = array<i64: 1, 16, 16, 32>}]} {
    %c0 = arith.constant 0 : index
    %c0_0 = arith.constant 0 : index
    %c0_1 = arith.constant 0 : index
    %c0_2 = arith.constant 0 : index
    %0 = vector.load %arg1[%c0, %c0_0, %c0_1, %c0_2] : memref<1x16x16x4xf32, #tpu.memory_space<vmem>>, vector<1x16x16x4xf32>
    %1 = vector.shape_cast %0 : vector<1x16x16x4xf32> to vector<16x16x4xf32>
    %2 = arith.truncf %1 : vector<16x16x4xf32> to vector<16x16x4xbf16>
    %c0_3 = arith.constant 0 : index
    %c0_4 = arith.constant 0 : index
    %3 = vector.load %arg2[%c0_3, %c0_4] : memref<4x16xbf16, #tpu.memory_space<vmem>>, vector<4x16xbf16>
    %cst = arith.constant dense<0.000000e+00> : vector<16x16x16xf32>
    %4 = tpu.matmul %2, %3, %cst {dimension_numbers = #tpu.dot_dimension_numbers<[2], [0], [0, 1], [1], [0, 0, 0, 1, 1, 1], [], []>} : vector<16x16x4xbf16>, vector<4x16xbf16>, vector<16x16x16xf32> -> vector<16x16x16xf32>
    %c0_5 = arith.constant 0 : index
    %c0_6 = arith.constant 0 : index
    %c0_7 = arith.constant 0 : index
    %5 = vector.load %arg3[%c0_5, %c0_6, %c0_7] : memref<1x1x16xf32, #tpu.memory_space<vmem>>, vector<1x1x16xf32>
    %6 = vector.broadcast %5 : vector<1x1x16xf32> to vector<16x16x16xf32>
    %7 = arith.addf %4, %6 : vector<16x16x16xf32>
    %8 = vector.extract_strided_slice %7 {offsets = [0, 0, 0], sizes = [16, 16, 8], strides = [1, 1, 1]} : vector<16x16x16xf32> to vector<16x16x8xf32>
    %9 = vector.extract_strided_slice %7 {offsets = [0, 0, 8], sizes = [16, 16, 8], strides = [1, 1, 1]} : vector<16x16x16xf32> to vector<16x16x8xf32>
    %10 = vector.extract_strided_slice %9 {offsets = [0, 0, 0], sizes = [16, 16, 4], strides = [1, 1, 1]} : vector<16x16x8xf32> to vector<16x16x4xf32>
    %cst_8 = arith.constant 0.000000e+00 : f32
    %11 = vector.broadcast %cst_8 : f32 to vector<1x16x12xf32>
    %c0_9 = arith.constant 0 : index
    %c0_10 = arith.constant 0 : index
    %c0_11 = arith.constant 0 : index
    %12 = vector.load %arg12[%c0_9, %c0_10, %c0_11] : memref<16x16x72xf32, #tpu.memory_space<vmem>>, vector<1x16x12xf32>
    tpu.vector_store %arg12[%c0_9, %c0_10, %c0_11], %11 {strides = array<i32>} : memref<16x16x72xf32, #tpu.memory_space<vmem>>, vector<1x16x12xf32>,
    %c15 = arith.constant 15 : index
    %c0_12 = arith.constant 0 : index
    %c24 = arith.constant 24 : index
    %13 = vector.load %arg12[%c15, %c0_12, %c24] : memref<16x16x72xf32, #tpu.memory_space<vmem>>, vector<1x16x12xf32>
    tpu.vector_store %arg12[%c15, %c0_12, %c24], %11 {strides = array<i32>} : memref<16x16x72xf32, #tpu.memory_space<vmem>>, vector<1x16x12xf32>,
    %cst_13 = arith.constant 0.000000e+00 : f32
    %14 = vector.broadcast %cst_13 : f32 to vector<16x1x4xf32>
    %c0_14 = arith.constant 0 : index
    %c0_15 = arith.constant 0 : index
    %c0_16 = arith.constant 0 : index
    %15 = vector.load %arg12[%c0_14, %c0_15, %c0_16] : memref<16x16x72xf32, #tpu.memory_space<vmem>>, vector<16x1x4xf32>
    tpu.vector_store %arg12[%c0_14, %c0_15, %c0_16], %14 {strides = array<i32>} : memref<16x16x72xf32, #tpu.memory_space<vmem>>, vector<16x1x4xf32>,
    %c0_17 = arith.constant 0 : index
    %c0_18 = arith.constant 0 : index
    %c12 = arith.constant 12 : index
    %16 = vector.load %arg12[%c0_17, %c0_18, %c12] : memref<16x16x72xf32, #tpu.memory_space<vmem>>, vector<16x1x4xf32>
    tpu.vector_store %arg12[%c0_17, %c0_18, %c12], %14 {strides = array<i32>} : memref<16x16x72xf32, #tpu.memory_space<vmem>>, vector<16x1x4xf32>,
    %c0_19 = arith.constant 0 : index
    %c0_20 = arith.constant 0 : index
    %c24_21 = arith.constant 24 : index
    %17 = vector.load %arg12[%c0_19, %c0_20, %c24_21] : memref<16x16x72xf32, #tpu.memory_space<vmem>>, vector<16x1x4xf32>
    tpu.vector_store %arg12[%c0_19, %c0_20, %c24_21], %14 {strides = array<i32>} : memref<16x16x72xf32, #tpu.memory_space<vmem>>, vector<16x1x4xf32>,
    %c0_22 = arith.constant 0 : index
    %c15_23 = arith.constant 15 : index
    %c8 = arith.constant 8 : index
    %18 = vector.load %arg12[%c0_22, %c15_23, %c8] : memref<16x16x72xf32, #tpu.memory_space<vmem>>, vector<16x1x4xf32>
    tpu.vector_store %arg12[%c0_22, %c15_23, %c8], %14 {strides = array<i32>} : memref<16x16x72xf32, #tpu.memory_space<vmem>>, vector<16x1x4xf32>,
    %c0_24 = arith.constant 0 : index
    %c15_25 = arith.constant 15 : index
    %c20 = arith.constant 20 : index
    %19 = vector.load %arg12[%c0_24, %c15_25, %c20] : memref<16x16x72xf32, #tpu.memory_space<vmem>>, vector<16x1x4xf32>
    tpu.vector_store %arg12[%c0_24, %c15_25, %c20], %14 {strides = array<i32>} : memref<16x16x72xf32, #tpu.memory_space<vmem>>, vector<16x1x4xf32>,
    %c0_26 = arith.constant 0 : index
    %c15_27 = arith.constant 15 : index
    %c32 = arith.constant 32 : index
    %20 = vector.load %arg12[%c0_26, %c15_27, %c32] : memref<16x16x72xf32, #tpu.memory_space<vmem>>, vector<16x1x4xf32>
    tpu.vector_store %arg12[%c0_26, %c15_27, %c32], %14 {strides = array<i32>} : memref<16x16x72xf32, #tpu.memory_space<vmem>>, vector<16x1x4xf32>,
    %21 = vector.extract_strided_slice %10 {offsets = [0, 0, 0], sizes = [15, 15, 4], strides = [1, 1, 1]} : vector<16x16x4xf32> to vector<15x15x4xf32>
    %c1 = arith.constant 1 : index
    %c1_28 = arith.constant 1 : index
    %c0_29 = arith.constant 0 : index
    %22 = vector.load %arg12[%c1, %c1_28, %c0_29] : memref<16x16x72xf32, #tpu.memory_space<vmem>>, vector<15x15x4xf32>
    tpu.vector_store %arg12[%c1, %c1_28, %c0_29], %21 {strides = array<i32>} : memref<16x16x72xf32, #tpu.memory_space<vmem>>, vector<15x15x4xf32>,
    %23 = vector.extract_strided_slice %10 {offsets = [0, 0, 0], sizes = [15, 16, 4], strides = [1, 1, 1]} : vector<16x16x4xf32> to vector<15x16x4xf32>
    %c1_30 = arith.constant 1 : index
    %c0_31 = arith.constant 0 : index
    %c4 = arith.constant 4 : index
    %24 = vector.load %arg12[%c1_30, %c0_31, %c4] : memref<16x16x72xf32, #tpu.memory_space<vmem>>, vector<15x16x4xf32>
    tpu.vector_store %arg12[%c1_30, %c0_31, %c4], %23 {strides = array<i32>} : memref<16x16x72xf32, #tpu.memory_space<vmem>>, vector<15x16x4xf32>,
    %25 = vector.extract_strided_slice %10 {offsets = [0, 1, 0], sizes = [15, 15, 4], strides = [1, 1, 1]} : vector<16x16x4xf32> to vector<15x15x4xf32>
    %c1_32 = arith.constant 1 : index
    %c0_33 = arith.constant 0 : index
    %c8_34 = arith.constant 8 : index
    %26 = vector.load %arg12[%c1_32, %c0_33, %c8_34] : memref<16x16x72xf32, #tpu.memory_space<vmem>>, vector<15x15x4xf32>
    tpu.vector_store %arg12[%c1_32, %c0_33, %c8_34], %25 {strides = array<i32>} : memref<16x16x72xf32, #tpu.memory_space<vmem>>, vector<15x15x4xf32>,
    %27 = vector.extract_strided_slice %10 {offsets = [0, 0, 0], sizes = [16, 15, 4], strides = [1, 1, 1]} : vector<16x16x4xf32> to vector<16x15x4xf32>
    %c0_35 = arith.constant 0 : index
    %c1_36 = arith.constant 1 : index
    %c12_37 = arith.constant 12 : index
    %28 = vector.load %arg12[%c0_35, %c1_36, %c12_37] : memref<16x16x72xf32, #tpu.memory_space<vmem>>, vector<16x15x4xf32>
    tpu.vector_store %arg12[%c0_35, %c1_36, %c12_37], %27 {strides = array<i32>} : memref<16x16x72xf32, #tpu.memory_space<vmem>>, vector<16x15x4xf32>,
    %c0_38 = arith.constant 0 : index
    %c0_39 = arith.constant 0 : index
    %c16 = arith.constant 16 : index
    %29 = vector.load %arg12[%c0_38, %c0_39, %c16] : memref<16x16x72xf32, #tpu.memory_space<vmem>>, vector<16x16x4xf32>
    tpu.vector_store %arg12[%c0_38, %c0_39, %c16], %10 {strides = array<i32>} : memref<16x16x72xf32, #tpu.memory_space<vmem>>, vector<16x16x4xf32>,
    %30 = vector.extract_strided_slice %10 {offsets = [0, 1, 0], sizes = [16, 15, 4], strides = [1, 1, 1]} : vector<16x16x4xf32> to vector<16x15x4xf32>
    %c0_40 = arith.constant 0 : index
    %c0_41 = arith.constant 0 : index
    %c20_42 = arith.constant 20 : index
    %31 = vector.load %arg12[%c0_40, %c0_41, %c20_42] : memref<16x16x72xf32, #tpu.memory_space<vmem>>, vector<16x15x4xf32>
    tpu.vector_store %arg12[%c0_40, %c0_41, %c20_42], %30 {strides = array<i32>} : memref<16x16x72xf32, #tpu.memory_space<vmem>>, vector<16x15x4xf32>,
    %32 = vector.extract_strided_slice %10 {offsets = [1, 0, 0], sizes = [15, 15, 4], strides = [1, 1, 1]} : vector<16x16x4xf32> to vector<15x15x4xf32>
    %c0_43 = arith.constant 0 : index
    %c1_44 = arith.constant 1 : index
    %c24_45 = arith.constant 24 : index
    %33 = vector.load %arg12[%c0_43, %c1_44, %c24_45] : memref<16x16x72xf32, #tpu.memory_space<vmem>>, vector<15x15x4xf32>
    tpu.vector_store %arg12[%c0_43, %c1_44, %c24_45], %32 {strides = array<i32>} : memref<16x16x72xf32, #tpu.memory_space<vmem>>, vector<15x15x4xf32>,
    %34 = vector.extract_strided_slice %10 {offsets = [1, 0, 0], sizes = [15, 16, 4], strides = [1, 1, 1]} : vector<16x16x4xf32> to vector<15x16x4xf32>
    %c0_46 = arith.constant 0 : index
    %c0_47 = arith.constant 0 : index
    %c28 = arith.constant 28 : index
    %35 = vector.load %arg12[%c0_46, %c0_47, %c28] : memref<16x16x72xf32, #tpu.memory_space<vmem>>, vector<15x16x4xf32>
    tpu.vector_store %arg12[%c0_46, %c0_47, %c28], %34 {strides = array<i32>} : memref<16x16x72xf32, #tpu.memory_space<vmem>>, vector<15x16x4xf32>,
    %36 = vector.extract_strided_slice %10 {offsets = [1, 1, 0], sizes = [15, 15, 4], strides = [1, 1, 1]} : vector<16x16x4xf32> to vector<15x15x4xf32>
    %c0_48 = arith.constant 0 : index
    %c0_49 = arith.constant 0 : index
    %c32_50 = arith.constant 32 : index
    %37 = vector.load %arg12[%c0_48, %c0_49, %c32_50] : memref<16x16x72xf32, #tpu.memory_space<vmem>>, vector<15x15x4xf32>
    tpu.vector_store %arg12[%c0_48, %c0_49, %c32_50], %36 {strides = array<i32>} : memref<16x16x72xf32, #tpu.memory_space<vmem>>, vector<15x15x4xf32>,
    %38 = vector.extract_strided_slice %9 {offsets = [0, 0, 4], sizes = [16, 16, 4], strides = [1, 1, 1]} : vector<16x16x8xf32> to vector<16x16x4xf32>
    %cst_51 = arith.constant 0.000000e+00 : f32
    %39 = vector.broadcast %cst_51 : f32 to vector<1x16x12xf32>
    %c0_52 = arith.constant 0 : index
    %c0_53 = arith.constant 0 : index
    %c36 = arith.constant 36 : index
    %40 = vector.load %arg12[%c0_52, %c0_53, %c36] : memref<16x16x72xf32, #tpu.memory_space<vmem>>, vector<1x16x12xf32>
    tpu.vector_store %arg12[%c0_52, %c0_53, %c36], %39 {strides = array<i32>} : memref<16x16x72xf32, #tpu.memory_space<vmem>>, vector<1x16x12xf32>,
    %c15_54 = arith.constant 15 : index
    %c0_55 = arith.constant 0 : index
    %c60 = arith.constant 60 : index
    %41 = vector.load %arg12[%c15_54, %c0_55, %c60] : memref<16x16x72xf32, #tpu.memory_space<vmem>>, vector<1x16x12xf32>
    tpu.vector_store %arg12[%c15_54, %c0_55, %c60], %39 {strides = array<i32>} : memref<16x16x72xf32, #tpu.memory_space<vmem>>, vector<1x16x12xf32>,
    %cst_56 = arith.constant 0.000000e+00 : f32
    %42 = vector.broadcast %cst_56 : f32 to vector<16x1x4xf32>
    %c0_57 = arith.constant 0 : index
    %c0_58 = arith.constant 0 : index
    %c36_59 = arith.constant 36 : index
    %43 = vector.load %arg12[%c0_57, %c0_58, %c36_59] : memref<16x16x72xf32, #tpu.memory_space<vmem>>, vector<16x1x4xf32>
    tpu.vector_store %arg12[%c0_57, %c0_58, %c36_59], %42 {strides = array<i32>} : memref<16x16x72xf32, #tpu.memory_space<vmem>>, vector<16x1x4xf32>,
    %c0_60 = arith.constant 0 : index
    %c0_61 = arith.constant 0 : index
    %c48 = arith.constant 48 : index
    %44 = vector.load %arg12[%c0_60, %c0_61, %c48] : memref<16x16x72xf32, #tpu.memory_space<vmem>>, vector<16x1x4xf32>
    tpu.vector_store %arg12[%c0_60, %c0_61, %c48], %42 {strides = array<i32>} : memref<16x16x72xf32, #tpu.memory_space<vmem>>, vector<16x1x4xf32>,
    %c0_62 = arith.constant 0 : index
    %c0_63 = arith.constant 0 : index
    %c60_64 = arith.constant 60 : index
    %45 = vector.load %arg12[%c0_62, %c0_63, %c60_64] : memref<16x16x72xf32, #tpu.memory_space<vmem>>, vector<16x1x4xf32>
    tpu.vector_store %arg12[%c0_62, %c0_63, %c60_64], %42 {strides = array<i32>} : memref<16x16x72xf32, #tpu.memory_space<vmem>>, vector<16x1x4xf32>,
    %c0_65 = arith.constant 0 : index
    %c15_66 = arith.constant 15 : index
    %c44 = arith.constant 44 : index
    %46 = vector.load %arg12[%c0_65, %c15_66, %c44] : memref<16x16x72xf32, #tpu.memory_space<vmem>>, vector<16x1x4xf32>
    tpu.vector_store %arg12[%c0_65, %c15_66, %c44], %42 {strides = array<i32>} : memref<16x16x72xf32, #tpu.memory_space<vmem>>, vector<16x1x4xf32>,
    %c0_67 = arith.constant 0 : index
    %c15_68 = arith.constant 15 : index
    %c56 = arith.constant 56 : index
    %47 = vector.load %arg12[%c0_67, %c15_68, %c56] : memref<16x16x72xf32, #tpu.memory_space<vmem>>, vector<16x1x4xf32>
    tpu.vector_store %arg12[%c0_67, %c15_68, %c56], %42 {strides = array<i32>} : memref<16x16x72xf32, #tpu.memory_space<vmem>>, vector<16x1x4xf32>,
    %c0_69 = arith.constant 0 : index
    %c15_70 = arith.constant 15 : index
    %c68 = arith.constant 68 : index
    %48 = vector.load %arg12[%c0_69, %c15_70, %c68] : memref<16x16x72xf32, #tpu.memory_space<vmem>>, vector<16x1x4xf32>
    tpu.vector_store %arg12[%c0_69, %c15_70, %c68], %42 {strides = array<i32>} : memref<16x16x72xf32, #tpu.memory_space<vmem>>, vector<16x1x4xf32>,
    %49 = vector.extract_strided_slice %38 {offsets = [0, 0, 0], sizes = [15, 15, 4], strides = [1, 1, 1]} : vector<16x16x4xf32> to vector<15x15x4xf32>
    %c1_71 = arith.constant 1 : index
    %c1_72 = arith.constant 1 : index
    %c36_73 = arith.constant 36 : index
    %50 = vector.load %arg12[%c1_71, %c1_72, %c36_73] : memref<16x16x72xf32, #tpu.memory_space<vmem>>, vector<15x15x4xf32>
    tpu.vector_store %arg12[%c1_71, %c1_72, %c36_73], %49 {strides = array<i32>} : memref<16x16x72xf32, #tpu.memory_space<vmem>>, vector<15x15x4xf32>,
    %51 = vector.extract_strided_slice %38 {offsets = [0, 0, 0], sizes = [15, 16, 4], strides = [1, 1, 1]} : vector<16x16x4xf32> to vector<15x16x4xf32>
    %c1_74 = arith.constant 1 : index
    %c0_75 = arith.constant 0 : index
    %c40 = arith.constant 40 : index
    %52 = vector.load %arg12[%c1_74, %c0_75, %c40] : memref<16x16x72xf32, #tpu.memory_space<vmem>>, vector<15x16x4xf32>
    tpu.vector_store %arg12[%c1_74, %c0_75, %c40], %51 {strides = array<i32>} : memref<16x16x72xf32, #tpu.memory_space<vmem>>, vector<15x16x4xf32>,
    %53 = vector.extract_strided_slice %38 {offsets = [0, 1, 0], sizes = [15, 15, 4], strides = [1, 1, 1]} : vector<16x16x4xf32> to vector<15x15x4xf32>
    %c1_76 = arith.constant 1 : index
    %c0_77 = arith.constant 0 : index
    %c44_78 = arith.constant 44 : index
    %54 = vector.load %arg12[%c1_76, %c0_77, %c44_78] : memref<16x16x72xf32, #tpu.memory_space<vmem>>, vector<15x15x4xf32>
    tpu.vector_store %arg12[%c1_76, %c0_77, %c44_78], %53 {strides = array<i32>} : memref<16x16x72xf32, #tpu.memory_space<vmem>>, vector<15x15x4xf32>,
    %55 = vector.extract_strided_slice %38 {offsets = [0, 0, 0], sizes = [16, 15, 4], strides = [1, 1, 1]} : vector<16x16x4xf32> to vector<16x15x4xf32>
    %c0_79 = arith.constant 0 : index
    %c1_80 = arith.constant 1 : index
    %c48_81 = arith.constant 48 : index
    %56 = vector.load %arg12[%c0_79, %c1_80, %c48_81] : memref<16x16x72xf32, #tpu.memory_space<vmem>>, vector<16x15x4xf32>
    tpu.vector_store %arg12[%c0_79, %c1_80, %c48_81], %55 {strides = array<i32>} : memref<16x16x72xf32, #tpu.memory_space<vmem>>, vector<16x15x4xf32>,
    %c0_82 = arith.constant 0 : index
    %c0_83 = arith.constant 0 : index
    %c52 = arith.constant 52 : index
    %57 = vector.load %arg12[%c0_82, %c0_83, %c52] : memref<16x16x72xf32, #tpu.memory_space<vmem>>, vector<16x16x4xf32>
    tpu.vector_store %arg12[%c0_82, %c0_83, %c52], %38 {strides = array<i32>} : memref<16x16x72xf32, #tpu.memory_space<vmem>>, vector<16x16x4xf32>,
    %58 = vector.extract_strided_slice %38 {offsets = [0, 1, 0], sizes = [16, 15, 4], strides = [1, 1, 1]} : vector<16x16x4xf32> to vector<16x15x4xf32>
    %c0_84 = arith.constant 0 : index
    %c0_85 = arith.constant 0 : index
    %c56_86 = arith.constant 56 : index
    %59 = vector.load %arg12[%c0_84, %c0_85, %c56_86] : memref<16x16x72xf32, #tpu.memory_space<vmem>>, vector<16x15x4xf32>
    tpu.vector_store %arg12[%c0_84, %c0_85, %c56_86], %58 {strides = array<i32>} : memref<16x16x72xf32, #tpu.memory_space<vmem>>, vector<16x15x4xf32>,
    %60 = vector.extract_strided_slice %38 {offsets = [1, 0, 0], sizes = [15, 15, 4], strides = [1, 1, 1]} : vector<16x16x4xf32> to vector<15x15x4xf32>
    %c0_87 = arith.constant 0 : index
    %c1_88 = arith.constant 1 : index
    %c60_89 = arith.constant 60 : index
    %61 = vector.load %arg12[%c0_87, %c1_88, %c60_89] : memref<16x16x72xf32, #tpu.memory_space<vmem>>, vector<15x15x4xf32>
    tpu.vector_store %arg12[%c0_87, %c1_88, %c60_89], %60 {strides = array<i32>} : memref<16x16x72xf32, #tpu.memory_space<vmem>>, vector<15x15x4xf32>,
    %62 = vector.extract_strided_slice %38 {offsets = [1, 0, 0], sizes = [15, 16, 4], strides = [1, 1, 1]} : vector<16x16x4xf32> to vector<15x16x4xf32>
    %c0_90 = arith.constant 0 : index
    %c0_91 = arith.constant 0 : index
    %c64 = arith.constant 64 : index
    %63 = vector.load %arg12[%c0_90, %c0_91, %c64] : memref<16x16x72xf32, #tpu.memory_space<vmem>>, vector<15x16x4xf32>
    tpu.vector_store %arg12[%c0_90, %c0_91, %c64], %62 {strides = array<i32>} : memref<16x16x72xf32, #tpu.memory_space<vmem>>, vector<15x16x4xf32>,
    %64 = vector.extract_strided_slice %38 {offsets = [1, 1, 0], sizes = [15, 15, 4], strides = [1, 1, 1]} : vector<16x16x4xf32> to vector<15x15x4xf32>
    %c0_92 = arith.constant 0 : index
    %c0_93 = arith.constant 0 : index
    %c68_94 = arith.constant 68 : index
    %65 = vector.load %arg12[%c0_92, %c0_93, %c68_94] : memref<16x16x72xf32, #tpu.memory_space<vmem>>, vector<15x15x4xf32>
    tpu.vector_store %arg12[%c0_92, %c0_93, %c68_94], %64 {strides = array<i32>} : memref<16x16x72xf32, #tpu.memory_space<vmem>>, vector<15x15x4xf32>,
    %c0_95 = arith.constant 0 : index
    %c0_96 = arith.constant 0 : index
    %c0_97 = arith.constant 0 : index
    %66 = vector.load %arg12[%c0_95, %c0_96, %c0_97] : memref<16x16x72xf32, #tpu.memory_space<vmem>>, vector<16x16x36xf32>
    %67 = arith.truncf %66 : vector<16x16x36xf32> to vector<16x16x36xbf16>
    %c0_98 = arith.constant 0 : index
    %c0_99 = arith.constant 0 : index
    %68 = vector.load %arg4[%c0_98, %c0_99] : memref<36x8xbf16, #tpu.memory_space<vmem>>, vector<36x8xbf16>
    %cst_100 = arith.constant dense<0.000000e+00> : vector<16x16x8xf32>
    %69 = tpu.matmul %67, %68, %cst_100 {dimension_numbers = #tpu.dot_dimension_numbers<[2], [0], [0, 1], [1], [0, 0, 0, 1, 1, 1], [], []>} : vector<16x16x36xbf16>, vector<36x8xbf16>, vector<16x16x8xf32> -> vector<16x16x8xf32>
    %c0_101 = arith.constant 0 : index
    %c0_102 = arith.constant 0 : index
    %c0_103 = arith.constant 0 : index
    %70 = vector.load %arg5[%c0_101, %c0_102, %c0_103] : memref<1x1x8xf32, #tpu.memory_space<vmem>>, vector<1x1x8xf32>
    %71 = vector.broadcast %70 : vector<1x1x8xf32> to vector<16x16x8xf32>
    %72 = arith.addf %69, %71 : vector<16x16x8xf32>
    %c0_104 = arith.constant 0 : index
    %c0_105 = arith.constant 0 : index
    %c36_106 = arith.constant 36 : index
    %73 = vector.load %arg12[%c0_104, %c0_105, %c36_106] : memref<16x16x72xf32, #tpu.memory_space<vmem>>, vector<16x16x36xf32>
    %74 = arith.truncf %73 : vector<16x16x36xf32> to vector<16x16x36xbf16>
    %c0_107 = arith.constant 0 : index
    %c0_108 = arith.constant 0 : index
    %75 = vector.load %arg6[%c0_107, %c0_108] : memref<36x8xbf16, #tpu.memory_space<vmem>>, vector<36x8xbf16>
    %cst_109 = arith.constant dense<0.000000e+00> : vector<16x16x8xf32>
    %76 = tpu.matmul %74, %75, %cst_109 {dimension_numbers = #tpu.dot_dimension_numbers<[2], [0], [0, 1], [1], [0, 0, 0, 1, 1, 1], [], []>} : vector<16x16x36xbf16>, vector<36x8xbf16>, vector<16x16x8xf32> -> vector<16x16x8xf32>
    %c0_110 = arith.constant 0 : index
    %c0_111 = arith.constant 0 : index
    %c0_112 = arith.constant 0 : index
    %77 = vector.load %arg7[%c0_110, %c0_111, %c0_112] : memref<1x1x8xf32, #tpu.memory_space<vmem>>, vector<1x1x8xf32>
    %78 = vector.broadcast %77 : vector<1x1x8xf32> to vector<16x16x8xf32>
    %79 = arith.addf %76, %78 : vector<16x16x8xf32>
    %cst_113 = arith.constant 0xFF800000 : f32
    %80 = vector.broadcast %cst_113 : f32 to vector<1x18x4xf32>
    %cst_114 = arith.constant 0xFF800000 : f32
    %81 = vector.broadcast %cst_114 : f32 to vector<18x1x4xf32>
    %c0_115 = arith.constant 0 : index
    %c0_116 = arith.constant 0 : index
    %c0_117 = arith.constant 0 : index
    %82 = vector.load %arg11[%c0_115, %c0_116, %c0_117] : memref<18x18x4xf32, #tpu.memory_space<vmem>>, vector<1x18x4xf32>
    tpu.vector_store %arg11[%c0_115, %c0_116, %c0_117], %80 {strides = array<i32>} : memref<18x18x4xf32, #tpu.memory_space<vmem>>, vector<1x18x4xf32>,
    %c17 = arith.constant 17 : index
    %c0_118 = arith.constant 0 : index
    %c0_119 = arith.constant 0 : index
    %83 = vector.load %arg11[%c17, %c0_118, %c0_119] : memref<18x18x4xf32, #tpu.memory_space<vmem>>, vector<1x18x4xf32>
    tpu.vector_store %arg11[%c17, %c0_118, %c0_119], %80 {strides = array<i32>} : memref<18x18x4xf32, #tpu.memory_space<vmem>>, vector<1x18x4xf32>,
    %c0_120 = arith.constant 0 : index
    %c0_121 = arith.constant 0 : index
    %c0_122 = arith.constant 0 : index
    %84 = vector.load %arg11[%c0_120, %c0_121, %c0_122] : memref<18x18x4xf32, #tpu.memory_space<vmem>>, vector<18x1x4xf32>
    tpu.vector_store %arg11[%c0_120, %c0_121, %c0_122], %81 {strides = array<i32>} : memref<18x18x4xf32, #tpu.memory_space<vmem>>, vector<18x1x4xf32>,
    %c0_123 = arith.constant 0 : index
    %c17_124 = arith.constant 17 : index
    %c0_125 = arith.constant 0 : index
    %85 = vector.load %arg11[%c0_123, %c17_124, %c0_125] : memref<18x18x4xf32, #tpu.memory_space<vmem>>, vector<18x1x4xf32>
    tpu.vector_store %arg11[%c0_123, %c17_124, %c0_125], %81 {strides = array<i32>} : memref<18x18x4xf32, #tpu.memory_space<vmem>>, vector<18x1x4xf32>,
    %c1_126 = arith.constant 1 : index
    %c1_127 = arith.constant 1 : index
    %c0_128 = arith.constant 0 : index
    %86 = vector.load %arg11[%c1_126, %c1_127, %c0_128] : memref<18x18x4xf32, #tpu.memory_space<vmem>>, vector<16x16x4xf32>
    tpu.vector_store %arg11[%c1_126, %c1_127, %c0_128], %1 {strides = array<i32>} : memref<18x18x4xf32, #tpu.memory_space<vmem>>, vector<16x16x4xf32>,
    %c0_129 = arith.constant 0 : index
    %c0_130 = arith.constant 0 : index
    %c0_131 = arith.constant 0 : index
    %87 = vector.load %arg11[%c0_129, %c0_130, %c0_131] : memref<18x18x4xf32, #tpu.memory_space<vmem>>, vector<16x16x4xf32>
    %88 = arith.maximumf %1, %87 : vector<16x16x4xf32>
    %c0_132 = arith.constant 0 : index
    %c1_133 = arith.constant 1 : index
    %c0_134 = arith.constant 0 : index
    %89 = vector.load %arg11[%c0_132, %c1_133, %c0_134] : memref<18x18x4xf32, #tpu.memory_space<vmem>>, vector<16x16x4xf32>
    %90 = arith.maximumf %88, %89 : vector<16x16x4xf32>
    %c0_135 = arith.constant 0 : index
    %c2 = arith.constant 2 : index
    %c0_136 = arith.constant 0 : index
    %91 = vector.load %arg11[%c0_135, %c2, %c0_136] : memref<18x18x4xf32, #tpu.memory_space<vmem>>, vector<16x16x4xf32>
    %92 = arith.maximumf %90, %91 : vector<16x16x4xf32>
    %c1_137 = arith.constant 1 : index
    %c0_138 = arith.constant 0 : index
    %c0_139 = arith.constant 0 : index
    %93 = vector.load %arg11[%c1_137, %c0_138, %c0_139] : memref<18x18x4xf32, #tpu.memory_space<vmem>>, vector<16x16x4xf32>
    %94 = arith.maximumf %92, %93 : vector<16x16x4xf32>
    %c1_140 = arith.constant 1 : index
    %c2_141 = arith.constant 2 : index
    %c0_142 = arith.constant 0 : index
    %95 = vector.load %arg11[%c1_140, %c2_141, %c0_142] : memref<18x18x4xf32, #tpu.memory_space<vmem>>, vector<16x16x4xf32>
    %96 = arith.maximumf %94, %95 : vector<16x16x4xf32>
    %c2_143 = arith.constant 2 : index
    %c0_144 = arith.constant 0 : index
    %c0_145 = arith.constant 0 : index
    %97 = vector.load %arg11[%c2_143, %c0_144, %c0_145] : memref<18x18x4xf32, #tpu.memory_space<vmem>>, vector<16x16x4xf32>
    %98 = arith.maximumf %96, %97 : vector<16x16x4xf32>
    %c2_146 = arith.constant 2 : index
    %c1_147 = arith.constant 1 : index
    %c0_148 = arith.constant 0 : index
    %99 = vector.load %arg11[%c2_146, %c1_147, %c0_148] : memref<18x18x4xf32, #tpu.memory_space<vmem>>, vector<16x16x4xf32>
    %100 = arith.maximumf %98, %99 : vector<16x16x4xf32>
    %c2_149 = arith.constant 2 : index
    %c2_150 = arith.constant 2 : index
    %c0_151 = arith.constant 0 : index
    %101 = vector.load %arg11[%c2_149, %c2_150, %c0_151] : memref<18x18x4xf32, #tpu.memory_space<vmem>>, vector<16x16x4xf32>
    %102 = arith.maximumf %100, %101 : vector<16x16x4xf32>
    %103 = arith.truncf %102 : vector<16x16x4xf32> to vector<16x16x4xbf16>
    %c0_152 = arith.constant 0 : index
    %c0_153 = arith.constant 0 : index
    %104 = vector.load %arg8[%c0_152, %c0_153] : memref<4x8xbf16, #tpu.memory_space<vmem>>, vector<4x8xbf16>
    %cst_154 = arith.constant dense<0.000000e+00> : vector<16x16x8xf32>
    %105 = tpu.matmul %103, %104, %cst_154 {dimension_numbers = #tpu.dot_dimension_numbers<[2], [0], [0, 1], [1], [0, 0, 0, 1, 1, 1], [], []>} : vector<16x16x4xbf16>, vector<4x8xbf16>, vector<16x16x8xf32> -> vector<16x16x8xf32>
    %c0_155 = arith.constant 0 : index
    %c0_156 = arith.constant 0 : index
    %c0_157 = arith.constant 0 : index
    %106 = vector.load %arg9[%c0_155, %c0_156, %c0_157] : memref<1x1x8xf32, #tpu.memory_space<vmem>>, vector<1x1x8xf32>
    %107 = vector.broadcast %106 : vector<1x1x8xf32> to vector<16x16x8xf32>
    %108 = arith.addf %105, %107 : vector<16x16x8xf32>
    %c0_158 = arith.constant 0 : index
    %c0_159 = arith.constant 0 : index
    %c0_160 = arith.constant 0 : index
    %c0_161 = arith.constant 0 : index
    %109 = vector.load %arg10[%c0_158, %c0_159, %c0_160, %c0_161] : memref<1x16x16x32xf32, #tpu.memory_space<vmem>>, vector<1x16x16x8xf32>
    %110 = vector.shape_cast %109 : vector<1x16x16x8xf32> to vector<16x16x8xf32>
    %111 = vector.shape_cast %8 : vector<16x16x8xf32> to vector<1x16x16x8xf32>
    tpu.vector_store %arg10[%c0_158, %c0_159, %c0_160, %c0_161], %111 {strides = array<i32>} : memref<1x16x16x32xf32, #tpu.memory_space<vmem>>, vector<1x16x16x8xf32>,
    %c0_162 = arith.constant 0 : index
    %c0_163 = arith.constant 0 : index
    %c0_164 = arith.constant 0 : index
    %c8_165 = arith.constant 8 : index
    %112 = vector.load %arg10[%c0_162, %c0_163, %c0_164, %c8_165] : memref<1x16x16x32xf32, #tpu.memory_space<vmem>>, vector<1x16x16x8xf32>
    %113 = vector.shape_cast %112 : vector<1x16x16x8xf32> to vector<16x16x8xf32>
    %114 = vector.shape_cast %72 : vector<16x16x8xf32> to vector<1x16x16x8xf32>
    tpu.vector_store %arg10[%c0_162, %c0_163, %c0_164, %c8_165], %114 {strides = array<i32>} : memref<1x16x16x32xf32, #tpu.memory_space<vmem>>, vector<1x16x16x8xf32>,
    %c0_166 = arith.constant 0 : index
    %c0_167 = arith.constant 0 : index
    %c0_168 = arith.constant 0 : index
    %c16_169 = arith.constant 16 : index
    %115 = vector.load %arg10[%c0_166, %c0_167, %c0_168, %c16_169] : memref<1x16x16x32xf32, #tpu.memory_space<vmem>>, vector<1x16x16x8xf32>
    %116 = vector.shape_cast %115 : vector<1x16x16x8xf32> to vector<16x16x8xf32>
    %117 = vector.shape_cast %79 : vector<16x16x8xf32> to vector<1x16x16x8xf32>
    tpu.vector_store %arg10[%c0_166, %c0_167, %c0_168, %c16_169], %117 {strides = array<i32>} : memref<1x16x16x32xf32, #tpu.memory_space<vmem>>, vector<1x16x16x8xf32>,
    %c0_170 = arith.constant 0 : index
    %c0_171 = arith.constant 0 : index
    %c0_172 = arith.constant 0 : index
    %c24_173 = arith.constant 24 : index
    %118 = vector.load %arg10[%c0_170, %c0_171, %c0_172, %c24_173] : memref<1x16x16x32xf32, #tpu.memory_space<vmem>>, vector<1x16x16x8xf32>
    %119 = vector.shape_cast %118 : vector<1x16x16x8xf32> to vector<16x16x8xf32>
    %120 = vector.shape_cast %108 : vector<16x16x8xf32> to vector<1x16x16x8xf32>
    tpu.vector_store %arg10[%c0_170, %c0_171, %c0_172, %c24_173], %120 {strides = array<i32>} : memref<1x16x16x32xf32, #tpu.memory_space<vmem>>, vector<1x16x16x8xf32>,
    return
  }
  func.func @transform_0(%arg0: i32) -> (i32, i32, i32, i32) {
    %c0_i32 = arith.constant 0 : i32
    %c0_i32_0 = arith.constant 0 : i32
    %c0_i32_1 = arith.constant 0 : i32
    %c0_i32_2 = arith.constant 0 : i32
    return %arg0, %c0_i32, %c0_i32_0, %c0_i32_1 : i32, i32, i32, i32
  }
  func.func @transform_1(%arg0: i32) -> (i32, i32) {
    %c0_i32 = arith.constant 0 : i32
    %c0_i32_0 = arith.constant 0 : i32
    %c0_i32_1 = arith.constant 0 : i32
    return %c0_i32, %c0_i32_0 : i32, i32
  }
  func.func @transform_2(%arg0: i32) -> (i32, i32, i32) {
    %c0_i32 = arith.constant 0 : i32
    %c0_i32_0 = arith.constant 0 : i32
    %c0_i32_1 = arith.constant 0 : i32
    %c0_i32_2 = arith.constant 0 : i32
    return %c0_i32, %c0_i32_0, %c0_i32_1 : i32, i32, i32
  }
  func.func @transform_3(%arg0: i32) -> (i32, i32) {
    %c0_i32 = arith.constant 0 : i32
    %c0_i32_0 = arith.constant 0 : i32
    %c0_i32_1 = arith.constant 0 : i32
    return %c0_i32, %c0_i32_0 : i32, i32
  }
  func.func @transform_4(%arg0: i32) -> (i32, i32, i32) {
    %c0_i32 = arith.constant 0 : i32
    %c0_i32_0 = arith.constant 0 : i32
    %c0_i32_1 = arith.constant 0 : i32
    %c0_i32_2 = arith.constant 0 : i32
    return %c0_i32, %c0_i32_0, %c0_i32_1 : i32, i32, i32
  }
  func.func @transform_5(%arg0: i32) -> (i32, i32) {
    %c0_i32 = arith.constant 0 : i32
    %c0_i32_0 = arith.constant 0 : i32
    %c0_i32_1 = arith.constant 0 : i32
    return %c0_i32, %c0_i32_0 : i32, i32
  }
  func.func @transform_6(%arg0: i32) -> (i32, i32, i32) {
    %c0_i32 = arith.constant 0 : i32
    %c0_i32_0 = arith.constant 0 : i32
    %c0_i32_1 = arith.constant 0 : i32
    %c0_i32_2 = arith.constant 0 : i32
    return %c0_i32, %c0_i32_0, %c0_i32_1 : i32, i32, i32
  }
  func.func @transform_7(%arg0: i32) -> (i32, i32) {
    %c0_i32 = arith.constant 0 : i32
    %c0_i32_0 = arith.constant 0 : i32
    %c0_i32_1 = arith.constant 0 : i32
    return %c0_i32, %c0_i32_0 : i32, i32
  }
  func.func @transform_8(%arg0: i32) -> (i32, i32, i32) {
    %c0_i32 = arith.constant 0 : i32
    %c0_i32_0 = arith.constant 0 : i32
    %c0_i32_1 = arith.constant 0 : i32
    %c0_i32_2 = arith.constant 0 : i32
    return %c0_i32, %c0_i32_0, %c0_i32_1 : i32, i32, i32
  }
  func.func @transform_9(%arg0: i32) -> (i32, i32, i32, i32) {
    %c0_i32 = arith.constant 0 : i32
    %c0_i32_0 = arith.constant 0 : i32
    %c0_i32_1 = arith.constant 0 : i32
    %c0_i32_2 = arith.constant 0 : i32
    return %arg0, %c0_i32, %c0_i32_0, %c0_i32_1 : i32, i32, i32, i32
  }
}

</mosaic_0001>

<llo_original>
// kernel: tpu_custom_call.1
$region0: #{tpu_custom_call.1}
  #allocation0 [shape = 'u32[]', space=smem, size = 0x4, offset = 0x4, fixed_abs, tag = 'smem constant byte address 0x4 - core index']
  #allocation1 [shape = 'u32[72,128]{1,0:T(1,128)}', space=vmem, size = 0x9000, scoped, tag = 'internal scratch']
  #allocation2 [shape = 'f32[18,18,4]{2,1,0:T(8,128)}', space=vmem, size = 0x36000, scoped, tag = 'scratch operand']
  #allocation3 [shape = 'f32[16,16,72]{2,1,0:T(8,128)}', space=vmem, size = 0x20000, scoped, tag = 'scratch operand']
  %s0 = inlined_call_operand.vmem [shape: f32[2,16,16,4], index: 0, kind: input, shape index: {}]
  %s1 = inlined_call_operand.vmem [shape: bf16[4,16], index: 1, kind: input, shape index: {}]
  %s2 = inlined_call_operand.vmem [shape: f32[1,1,16], index: 2, kind: input, shape index: {}]
  %s3 = inlined_call_operand.vmem [shape: bf16[36,8], index: 3, kind: input, shape index: {}]
  %s4 = inlined_call_operand.vmem [shape: f32[1,1,8], index: 4, kind: input, shape index: {}]
  %s5 = inlined_call_operand.vmem [shape: bf16[36,8], index: 5, kind: input, shape index: {}]
  %s6 = inlined_call_operand.vmem [shape: f32[1,1,8], index: 6, kind: input, shape index: {}]
  %s7 = inlined_call_operand.vmem [shape: bf16[4,8], index: 7, kind: input, shape index: {}]
  %s8 = inlined_call_operand.vmem [shape: f32[1,1,8], index: 8, kind: input, shape index: {}]
  %s9 = inlined_call_operand.hbm [shape: f32[2,16,16,32], index: 9, kind: output, shape index: {}]
  %s10 = sld [smem:[#allocation0]]
  $region69: #{tpu_custom_call.1} parent=0
    _
  %s12 = ssub.s32 1, %s10
  %s13 = scalar_select 0, %s12, %s10
  $region1: #{tpu_custom_call.1} parent=0
    #allocation4 [shape = 'u8[262144]{0}', space=vmem, size = 0x40000, scoped, tag = 'output window, operand 0']
    #allocation5 [shape = 's32[2]{0}', space=sflag, size = 0x8, scoped, tag = 'scoped memory for tpu_custom_call.1']
    %14 = vsyncpa [#allocation5], 0
    %s15 = scalar_lea.sflag [#allocation5], 1
    %16 = vsyncpa %s15, 0
    loop: start=0, step=1, limit=4
    $region2: #{tpu_custom_call.1} parent=1 // loop_pre_header
      _
    $region3: #{tpu_custom_call.1} parent=1 // loop_header
      %s18 = sphi 0, %s22
      %p19 = scmp.ge.s32.totalorder %s18, 4
      %s28 = sphi 0, %s30
      %s31 = sphi 0, %s28
      %s32 = sphi 0, %s31
      %s48 = sphi 0, %s32
      %s52 = sphi 0, %s52
      %s54 = sphi 0, %s52
      %s55 = sphi 0, %s54
      %s69 = sphi 0, %s55
      %s73 = sphi 0, %s73
      %s75 = sphi 0, %s73
      %s76 = sphi 0, %s75
      %s90 = sphi 0, %s76
      %s94 = sphi 0, %s94
      %s96 = sphi 0, %s94
      %s97 = sphi 0, %s96
      %s111 = sphi 0, %s97
      %s115 = sphi 0, %s115
      %s117 = sphi 0, %s115
      %s118 = sphi 0, %s117
      %s132 = sphi 0, %s118
      %s136 = sphi 0, %s136
      %s138 = sphi 0, %s136
      %s139 = sphi 0, %s138
      %s153 = sphi 0, %s139
      %s157 = sphi 0, %s157
      %s159 = sphi 0, %s157
      %s160 = sphi 0, %s159
      %s174 = sphi 0, %s160
      %s178 = sphi 0, %s178
      %s180 = sphi 0, %s178
      %s181 = sphi 0, %s180
      %s195 = sphi 0, %s181
      %s199 = sphi 0, %s199
      %s201 = sphi 0, %s199
      %s202 = sphi 0, %s201
      %s216 = sphi 0, %s202
      %s222 = sphi 0, %s224
      %s225 = sphi 0, %s222
      %s226 = sphi 0, %s225
      %s242 = sphi 0, %s226
    $region4: #{tpu_custom_call.1} parent=1 // loop_header_branch
      %21 = sbr.rel (%p19) target = $region8
    $region5: #{tpu_custom_call.1} parent=1 // loop_body
      %s23 = ssub.s32 %s18, 1
      %s24 = ssub.s32 %s18, 2
      %s25 = sadd.s32 %s18, 1
      %s26 = ssub.s32 %s18, %s25
      %p27 = scmp.eq.s32.totalorder %s26, 0
      %s29 = sadd.s32 %s28, 1
      %s30 = scalar_select %p27, %s28, %s29
      %p33 = pneg %p27
      %p34 = scmp.eq.s32.totalorder %s18, 1
      %p35 = por %p33, %p34
      %p36 = scmp.ne.s32.totalorder %s28, %s31
      %p37 = scmp.eq.s32.totalorder %s18, 0
      %p38 = por %p36, %p37
      %p39 = scmp.ne.s32.totalorder %s28, %s31
      %p40 = scmp.eq.s32.totalorder %s23, 1
      %p41 = por %p39, %p40
      %p42 = scmp.ne.s32.totalorder %s31, %s32
      %p43 = scmp.eq.s32.totalorder %s23, 0
      %p44 = por %p42, %p43
      %p45 = scmp.ne.s32.totalorder %s31, %s32
      %p46 = scmp.eq.s32.totalorder %s24, 1
      %p47 = por %p45, %p46
      %p49 = scmp.ne.s32.totalorder %s32, %s48
      %p50 = scmp.eq.s32.totalorder %s24, 0
      %p51 = por %p49, %p50
      %s53 = sadd.s32 %s52, 1
      %p56 = scmp.eq.s32.totalorder %s18, 1
      %p57 = scmp.ne.s32.totalorder %s52, %s54
      %p58 = scmp.eq.s32.totalorder %s18, 0
      %p59 = por %p57, %p58
      %p60 = scmp.ne.s32.totalorder %s52, %s54
      %p61 = scmp.eq.s32.totalorder %s23, 1
      %p62 = por %p60, %p61
      %p63 = scmp.ne.s32.totalorder %s54, %s55
      %p64 = scmp.eq.s32.totalorder %s23, 0
      %p65 = por %p63, %p64
      %p66 = scmp.ne.s32.totalorder %s54, %s55
      %p67 = scmp.eq.s32.totalorder %s24, 1
      %p68 = por %p66, %p67
      %p70 = scmp.ne.s32.totalorder %s55, %s69
      %p71 = scmp.eq.s32.totalorder %s24, 0
      %p72 = por %p70, %p71
      %s74 = sadd.s32 %s73, 1
      %p77 = scmp.eq.s32.totalorder %s18, 1
      %p78 = scmp.ne.s32.totalorder %s73, %s75
      %p79 = scmp.eq.s32.totalorder %s18, 0
      %p80 = por %p78, %p79
      %p81 = scmp.ne.s32.totalorder %s73, %s75
      %p82 = scmp.eq.s32.totalorder %s23, 1
      %p83 = por %p81, %p82
      %p84 = scmp.ne.s32.totalorder %s75, %s76
      %p85 = scmp.eq.s32.totalorder %s23, 0
      %p86 = por %p84, %p85
      %p87 = scmp.ne.s32.totalorder %s75, %s76
      %p88 = scmp.eq.s32.totalorder %s24, 1
      %p89 = por %p87, %p88
      %p91 = scmp.ne.s32.totalorder %s76, %s90
      %p92 = scmp.eq.s32.totalorder %s24, 0
      %p93 = por %p91, %p92
      %s95 = sadd.s32 %s94, 1
      %p98 = scmp.eq.s32.totalorder %s18, 1
      %p99 = scmp.ne.s32.totalorder %s94, %s96
      %p100 = scmp.eq.s32.totalorder %s18, 0
      %p101 = por %p99, %p100
      %p102 = scmp.ne.s32.totalorder %s94, %s96
      %p103 = scmp.eq.s32.totalorder %s23, 1
      %p104 = por %p102, %p103
      %p105 = scmp.ne.s32.totalorder %s96, %s97
      %p106 = scmp.eq.s32.totalorder %s23, 0
      %p107 = por %p105, %p106
      %p108 = scmp.ne.s32.totalorder %s96, %s97
      %p109 = scmp.eq.s32.totalorder %s24, 1
      %p110 = por %p108, %p109
      %p112 = scmp.ne.s32.totalorder %s97, %s111
      %p113 = scmp.eq.s32.totalorder %s24, 0
      %p114 = por %p112, %p113
      %s116 = sadd.s32 %s115, 1
      %p119 = scmp.eq.s32.totalorder %s18, 1
      %p120 = scmp.ne.s32.totalorder %s115, %s117
      %p121 = scmp.eq.s32.totalorder %s18, 0
      %p122 = por %p120, %p121
      %p123 = scmp.ne.s32.totalorder %s115, %s117
      %p124 = scmp.eq.s32.totalorder %s23, 1
      %p125 = por %p123, %p124
      %p126 = scmp.ne.s32.totalorder %s117, %s118
      %p127 = scmp.eq.s32.totalorder %s23, 0
      %p128 = por %p126, %p127
      %p129 = scmp.ne.s32.totalorder %s117, %s118
      %p130 = scmp.eq.s32.totalorder %s24, 1
      %p131 = por %p129, %p130
      %p133 = scmp.ne.s32.totalorder %s118, %s132
      %p134 = scmp.eq.s32.totalorder %s24, 0
      %p135 = por %p133, %p134
      %s137 = sadd.s32 %s136, 1
      %p140 = scmp.eq.s32.totalorder %s18, 1
      %p141 = scmp.ne.s32.totalorder %s136, %s138
      %p142 = scmp.eq.s32.totalorder %s18, 0
      %p143 = por %p141, %p142
      %p144 = scmp.ne.s32.totalorder %s136, %s138
      %p145 = scmp.eq.s32.totalorder %s23, 1
      %p146 = por %p144, %p145
      %p147 = scmp.ne.s32.totalorder %s138, %s139
      %p148 = scmp.eq.s32.totalorder %s23, 0
      %p149 = por %p147, %p148
      %p150 = scmp.ne.s32.totalorder %s138, %s139
      %p151 = scmp.eq.s32.totalorder %s24, 1
      %p152 = por %p150, %p151
      %p154 = scmp.ne.s32.totalorder %s139, %s153
      %p155 = scmp.eq.s32.totalorder %s24, 0
      %p156 = por %p154, %p155
      %s158 = sadd.s32 %s157, 1
      %p161 = scmp.eq.s32.totalorder %s18, 1
      %p162 = scmp.ne.s32.totalorder %s157, %s159
      %p163 = scmp.eq.s32.totalorder %s18, 0
      %p164 = por %p162, %p163
      %p165 = scmp.ne.s32.totalorder %s157, %s159
      %p166 = scmp.eq.s32.totalorder %s23, 1
      %p167 = por %p165, %p166
      %p168 = scmp.ne.s32.totalorder %s159, %s160
      %p169 = scmp.eq.s32.totalorder %s23, 0
      %p170 = por %p168, %p169
      %p171 = scmp.ne.s32.totalorder %s159, %s160
      %p172 = scmp.eq.s32.totalorder %s24, 1
      %p173 = por %p171, %p172
      %p175 = scmp.ne.s32.totalorder %s160, %s174
      %p176 = scmp.eq.s32.totalorder %s24, 0
      %p177 = por %p175, %p176
      %s179 = sadd.s32 %s178, 1
      %p182 = scmp.eq.s32.totalorder %s18, 1
      %p183 = scmp.ne.s32.totalorder %s178, %s180
      %p184 = scmp.eq.s32.totalorder %s18, 0
      %p185 = por %p183, %p184
      %p186 = scmp.ne.s32.totalorder %s178, %s180
      %p187 = scmp.eq.s32.totalorder %s23, 1
      %p188 = por %p186, %p187
      %p189 = scmp.ne.s32.totalorder %s180, %s181
      %p190 = scmp.eq.s32.totalorder %s23, 0
      %p191 = por %p189, %p190
      %p192 = scmp.ne.s32.totalorder %s180, %s181
      %p193 = scmp.eq.s32.totalorder %s24, 1
      %p194 = por %p192, %p193
      %p196 = scmp.ne.s32.totalorder %s181, %s195
      %p197 = scmp.eq.s32.totalorder %s24, 0
      %p198 = por %p196, %p197
      %s200 = sadd.s32 %s199, 1
      %p203 = scmp.eq.s32.totalorder %s18, 1
      %p204 = scmp.ne.s32.totalorder %s199, %s201
      %p205 = scmp.eq.s32.totalorder %s18, 0
      %p206 = por %p204, %p205
      %p207 = scmp.ne.s32.totalorder %s199, %s201
      %p208 = scmp.eq.s32.totalorder %s23, 1
      %p209 = por %p207, %p208
      %p210 = scmp.ne.s32.totalorder %s201, %s202
      %p211 = scmp.eq.s32.totalorder %s23, 0
      %p212 = por %p210, %p211
      %p213 = scmp.ne.s32.totalorder %s201, %s202
      %p214 = scmp.eq.s32.totalorder %s24, 1
      %p215 = por %p213, %p214
      %p217 = scmp.ne.s32.totalorder %s202, %s216
      %p218 = scmp.eq.s32.totalorder %s24, 0
      %p219 = por %p217, %p218
      %s220 = ssub.s32 %s18, %s25
      %p221 = scmp.eq.s32.totalorder %s220, 0
      %s223 = sadd.s32 %s222, 1
      %s224 = scalar_select %p221, %s222, %s223
      %p227 = pneg %p221
      %p228 = scmp.eq.s32.totalorder %s18, 1
      %p229 = por %p227, %p228
      %p230 = scmp.ne.s32.totalorder %s222, %s225
      %p231 = scmp.eq.s32.totalorder %s18, 0
      %p232 = por %p230, %p231
      %p233 = scmp.ne.s32.totalorder %s222, %s225
      %p234 = scmp.eq.s32.totalorder %s23, 1
      %p235 = por %p233, %p234
      %p236 = scmp.ne.s32.totalorder %s225, %s226
      %p237 = scmp.eq.s32.totalorder %s23, 0
      %p238 = por %p236, %p237
      %p239 = scmp.ne.s32.totalorder %s225, %s226
      %p240 = scmp.eq.s32.totalorder %s24, 1
      %p241 = por %p239, %p240
      %p243 = scmp.ne.s32.totalorder %s226, %s242
      %p244 = scmp.eq.s32.totalorder %s24, 0
      %p245 = por %p243, %p244
      %p246 = scmp.le.s32.totalorder 1, %s18
      %p247 = scmp.lt.s32.totalorder %s18, 3
      %p248 = pnand %p246, %p247
      %p249 = pneg %p248
      // Predicated region
      $region9: #{tpu_custom_call.1} parent=5 // pred_check
        _
      $region10: #{tpu_custom_call.1} parent=5 // pred_check_branch
        %251 = sbr.rel (%p248) target = $region12
      $region11: #{tpu_custom_call.1} parent=5 // pred_region
        %s252 = ssub.s32 %s18, 1
        // Predicated region
        $region13: #{tpu_custom_call.1} parent=11 // pred_check
          %p253 = pneg %p65
        $region14: #{tpu_custom_call.1} parent=11 // pred_check_branch
          %255 = sbr.rel (%p253) target = $region16
        $region15: #{tpu_custom_call.1} parent=11 // pred_region
          _
        $region16: #{tpu_custom_call.1} parent=11 // pred_fallthru
          _
        // Predicated region
        $region17: #{tpu_custom_call.1} parent=11 // pred_check
          %p256 = pneg %p86
        $region18: #{tpu_custom_call.1} parent=11 // pred_check_branch
          %258 = sbr.rel (%p256) target = $region20
        $region19: #{tpu_custom_call.1} parent=11 // pred_region
          _
        $region20: #{tpu_custom_call.1} parent=11 // pred_fallthru
          _
        // Predicated region
        $region21: #{tpu_custom_call.1} parent=11 // pred_check
          %p259 = pneg %p107
        $region22: #{tpu_custom_call.1} parent=11 // pred_check_branch
          %261 = sbr.rel (%p259) target = $region24
        $region23: #{tpu_custom_call.1} parent=11 // pred_region
          _
        $region24: #{tpu_custom_call.1} parent=11 // pred_fallthru
          _
        // Predicated region
        $region25: #{tpu_custom_call.1} parent=11 // pred_check
          %p262 = pneg %p128
        $region26: #{tpu_custom_call.1} parent=11 // pred_check_branch
          %264 = sbr.rel (%p262) target = $region28
        $region27: #{tpu_custom_call.1} parent=11 // pred_region
          _
        $region28: #{tpu_custom_call.1} parent=11 // pred_fallthru
          _
        // Predicated region
        $region29: #{tpu_custom_call.1} parent=11 // pred_check
          %p265 = pneg %p149
        $region30: #{tpu_custom_call.1} parent=11 // pred_check_branch
          %267 = sbr.rel (%p265) target = $region32
        $region31: #{tpu_custom_call.1} parent=11 // pred_region
          _
        $region32: #{tpu_custom_call.1} parent=11 // pred_fallthru
          _
        // Predicated region
        $region33: #{tpu_custom_call.1} parent=11 // pred_check
          %p268 = pneg %p170
        $region34: #{tpu_custom_call.1} parent=11 // pred_check_branch
          %270 = sbr.rel (%p268) target = $region36
        $region35: #{tpu_custom_call.1} parent=11 // pred_region
          _
        $region36: #{tpu_custom_call.1} parent=11 // pred_fallthru
          _
        // Predicated region
        $region37: #{tpu_custom_call.1} parent=11 // pred_check
          %p271 = pneg %p191
        $region38: #{tpu_custom_call.1} parent=11 // pred_check_branch
          %273 = sbr.rel (%p271) target = $region40
        $region39: #{tpu_custom_call.1} parent=11 // pred_region
          _
        $region40: #{tpu_custom_call.1} parent=11 // pred_fallthru
          _
        // Predicated region
        $region41: #{tpu_custom_call.1} parent=11 // pred_check
          %p274 = pneg %p212
        $region42: #{tpu_custom_call.1} parent=11 // pred_check_branch
          %276 = sbr.rel (%p274) target = $region44
        $region43: #{tpu_custom_call.1} parent=11 // pred_region
          _
        $region44: #{tpu_custom_call.1} parent=11 // pred_fallthru
          _
      $region12: #{tpu_custom_call.1} parent=5 // pred_fallthru
        _
      %p277 = scmp.lt.s32.totalorder %s18, 2
      // Predicated region
      $region45: #{tpu_custom_call.1} parent=5 // pred_check
        %p278 = pneg %p277
      $region46: #{tpu_custom_call.1} parent=5 // pred_check_branch
        %280 = sbr.rel (%p278) target = $region48
      $region47: #{tpu_custom_call.1} parent=5 // pred_region
        // Predicated region
        $region49: #{tpu_custom_call.1} parent=47 // pred_check
          %p281 = pneg %p38
        $region50: #{tpu_custom_call.1} parent=47 // pred_check_branch
          %283 = sbr.rel (%p281) target = $region52
        $region51: #{tpu_custom_call.1} parent=47 // pred_region
          %p284 = scmp.lt.s32.totalorder %s18, 1
          %s285 = scalar_select %p284, %s18, 1
          %s286 = smul.addr %s285, 32
          %s287 = smul.addr %s286, 8
          %s288 = scalar_lea.vmem %s0, %s287
        $region52: #{tpu_custom_call.1} parent=47 // pred_fallthru
          _
      $region48: #{tpu_custom_call.1} parent=5 // pred_fallthru
        _
      %p289 = scmp.le.s32.totalorder 1, %s18
      %p290 = scmp.lt.s32.totalorder %s18, 3
      %p291 = pnand %p289, %p290
      %p292 = pneg %p291
      // Predicated region
      $region53: #{tpu_custom_call.1} parent=5 // pred_check
        _
      $region54: #{tpu_custom_call.1} parent=5 // pred_check_branch
        %294 = sbr.rel (%p291) target = $region56
      $region55: #{tpu_custom_call.1} parent=5 // pred_region
        %s295 = ssub.s32 %s18, 1
        %p296 = scmp.lt.s32.totalorder %s23, 1
        %s297 = scalar_select %p296, %s23, 1
        %s298 = smul.addr %s297, 32
        %s299 = smul.addr %s298, 8
        %s300 = scalar_lea.vmem %s0, %s299
        %p301 = pneg %p44
        %p302 = pneg %p41
        %p303 = pneg %p65
        %p304 = pneg %p62
        %p305 = pneg %p86
        %p306 = pneg %p83
        %p307 = pneg %p107
        %p308 = pneg %p104
        %p309 = pneg %p128
        %p310 = pneg %p125
        %p311 = pneg %p149
        %p312 = pneg %p146
        %p313 = pneg %p170
        %p314 = pneg %p167
        %p315 = pneg %p191
        %p316 = pneg %p188
        %p317 = pneg %p212
        %p318 = pneg %p209
        %p319 = pneg %p238
        %p320 = pneg %p235
        %s321 = sand.u32 %s225, 1
        %s322 = scalar_lea.sflag [#allocation5], %s321
        %s323 = sand.u32 %s225, 1
        %s324 = smul.addr %s323, 256
        %s325 = scalar_lea.vmem [#allocation4], %s324
        %p326 = scmp.lt.s32.totalorder %s23, 1
        %s327 = scalar_select %p326, %s23, 1
        %s328 = smul.addr %s327, 32
        %s329 = smul.addr %s328, 8
        %s330 = scalar_lea.vmem %s0, %s329
        %v332 = vld [vmem:[%s330] sm:$0xff]
        %v333 = vld [vmem:[%s330 + $0x8] sm:$0xff]
        %v334 = vld [vmem:[%s330 + $0x10] sm:$0xff]
        %v335 = vld [vmem:[%s330 + $0x18] sm:$0xff]
        %v336 = vld [vmem:[%s330 + $0x20] sm:$0xff]
        %v337 = vld [vmem:[%s330 + $0x28] sm:$0xff]
        %v338 = vld [vmem:[%s330 + $0x30] sm:$0xff]
        %v339 = vld [vmem:[%s330 + $0x38] sm:$0xff]
        %v340 = vld [vmem:[%s330 + $0x40] sm:$0xff]
        %v341 = vld [vmem:[%s330 + $0x48] sm:$0xff]
        %v342 = vld [vmem:[%s330 + $0x50] sm:$0xff]
        %v343 = vld [vmem:[%s330 + $0x58] sm:$0xff]
        %v344 = vld [vmem:[%s330 + $0x60] sm:$0xff]
        %v345 = vld [vmem:[%s330 + $0x68] sm:$0xff]
        %v346 = vld [vmem:[%s330 + $0x70] sm:$0xff]
        %v347 = vld [vmem:[%s330 + $0x78] sm:$0xff]
        %v348 = vld [vmem:[%s330 + $0x80] sm:$0xff]
        %v349 = vld [vmem:[%s330 + $0x88] sm:$0xff]
        %v350 = vld [vmem:[%s330 + $0x90] sm:$0xff]
        %v351 = vld [vmem:[%s330 + $0x98] sm:$0xff]
        %v352 = vld [vmem:[%s330 + $0xa0] sm:$0xff]
        %v353 = vld [vmem:[%s330 + $0xa8] sm:$0xff]
        %v354 = vld [vmem:[%s330 + $0xb0] sm:$0xff]
        %v355 = vld [vmem:[%s330 + $0xb8] sm:$0xff]
        %v356 = vld [vmem:[%s330 + $0xc0] sm:$0xff]
        %v357 = vld [vmem:[%s330 + $0xc8] sm:$0xff]
        %v358 = vld [vmem:[%s330 + $0xd0] sm:$0xff]
        %v359 = vld [vmem:[%s330 + $0xd8] sm:$0xff]
        %v360 = vld [vmem:[%s330 + $0xe0] sm:$0xff]
        %v361 = vld [vmem:[%s330 + $0xe8] sm:$0xff]
        %v362 = vld [vmem:[%s330 + $0xf0] sm:$0xff]
        %v363 = vld [vmem:[%s330 + $0xf8] sm:$0xff]
        %v364 = vpack.c.bf16 %v332, %v332
        %v365 = vpack.c.bf16 %v333, %v333
        %v366 = vpack.c.bf16 %v334, %v334
        %v367 = vpack.c.bf16 %v335, %v335
        %v368 = vpack.c.bf16 %v336, %v336
        %v369 = vpack.c.bf16 %v337, %v337
        %v370 = vpack.c.bf16 %v338, %v338
        %v371 = vpack.c.bf16 %v339, %v339
        %v372 = vpack.c.bf16 %v340, %v340
        %v373 = vpack.c.bf16 %v341, %v341
        %v374 = vpack.c.bf16 %v342, %v342
        %v375 = vpack.c.bf16 %v343, %v343
        %v376 = vpack.c.bf16 %v344, %v344
        %v377 = vpack.c.bf16 %v345, %v345
        %v378 = vpack.c.bf16 %v346, %v346
        %v379 = vpack.c.bf16 %v347, %v347
        %v380 = vpack.c.bf16 %v348, %v348
        %v381 = vpack.c.bf16 %v349, %v349
        %v382 = vpack.c.bf16 %v350, %v350
        %v383 = vpack.c.bf16 %v351, %v351
        %v384 = vpack.c.bf16 %v352, %v352
        %v385 = vpack.c.bf16 %v353, %v353
        %v386 = vpack.c.bf16 %v354, %v354
        %v387 = vpack.c.bf16 %v355, %v355
        %v388 = vpack.c.bf16 %v356, %v356
        %v389 = vpack.c.bf16 %v357, %v357
        %v390 = vpack.c.bf16 %v358, %v358
        %v391 = vpack.c.bf16 %v359, %v359
        %v392 = vpack.c.bf16 %v360, %v360
        %v393 = vpack.c.bf16 %v361, %v361
        %v394 = vpack.c.bf16 %v362, %v362
        %v395 = vpack.c.bf16 %v363, %v363
        %v396 = vld [vmem:[%s1] sm:$0x3]
        %v397 = vld [vmem:[%s2] sm:$0x1]
        %v399 = vperm.slane %v397, 0
        %v433 = vunpack.c.l.b16 %v364
        %v434 = vunpack.c.l.b16 %v365
        %v435 = vunpack.c.l.b16 %v366
        %v436 = vunpack.c.l.b16 %v367
        %v437 = vunpack.c.l.b16 %v368
        %v438 = vunpack.c.l.b16 %v369
        %v439 = vunpack.c.l.b16 %v370
        %v440 = vunpack.c.l.b16 %v371
        %v441 = vunpack.c.l.b16 %v372
        %v442 = vunpack.c.l.b16 %v373
        %v443 = vunpack.c.l.b16 %v374
        %v444 = vunpack.c.l.b16 %v375
        %v445 = vunpack.c.l.b16 %v376
        %v446 = vunpack.c.l.b16 %v377
        %v447 = vunpack.c.l.b16 %v378
        %v448 = vunpack.c.l.b16 %v379
        %v449 = vunpack.c.l.b16 %v380
        %v450 = vunpack.c.l.b16 %v381
        %v451 = vunpack.c.l.b16 %v382
        %v452 = vunpack.c.l.b16 %v383
        %v453 = vunpack.c.l.b16 %v384
        %v454 = vunpack.c.l.b16 %v385
        %v455 = vunpack.c.l.b16 %v386
        %v456 = vunpack.c.l.b16 %v387
        %v457 = vunpack.c.l.b16 %v388
        %v458 = vunpack.c.l.b16 %v389
        %v459 = vunpack.c.l.b16 %v390
        %v460 = vunpack.c.l.b16 %v391
        %v461 = vunpack.c.l.b16 %v392
        %v462 = vunpack.c.l.b16 %v393
        %v463 = vunpack.c.l.b16 %v394
        %v464 = vunpack.c.l.b16 %v395
        %v465 = vpack.c.b16 %v434, %v433
        %v466 = vpack.c.b16 %v436, %v435
        %v467 = vpack.c.b16 %v438, %v437
        %v468 = vpack.c.b16 %v440, %v439
        %v469 = vpack.c.b16 %v442, %v441
        %v470 = vpack.c.b16 %v444, %v443
        %v471 = vpack.c.b16 %v446, %v445
        %v472 = vpack.c.b16 %v448, %v447
        %v473 = vpack.c.b16 %v450, %v449
        %v474 = vpack.c.b16 %v452, %v451
        %v475 = vpack.c.b16 %v454, %v453
        %v476 = vpack.c.b16 %v456, %v455
        %v477 = vpack.c.b16 %v458, %v457
        %v478 = vpack.c.b16 %v460, %v459
        %v479 = vpack.c.b16 %v462, %v461
        %v480 = vpack.c.b16 %v464, %v463
        %vm481 = vcmask 31744
        %v483 = vsel %vm481, %v465, 0
        %v486 = vsel %vm481, %v466, 0
        %v489 = vsel %vm481, %v467, 0
        %v492 = vsel %vm481, %v468, 0
        %v495 = vsel %vm481, %v469, 0
        %v498 = vsel %vm481, %v470, 0
        %v501 = vsel %vm481, %v471, 0
        %v504 = vsel %vm481, %v472, 0
        %v507 = vsel %vm481, %v473, 0
        %v510 = vsel %vm481, %v474, 0
        %v513 = vsel %vm481, %v475, 0
        %v516 = vsel %vm481, %v476, 0
        %v519 = vsel %vm481, %v477, 0
        %v522 = vsel %vm481, %v478, 0
        %v525 = vsel %vm481, %v479, 0
        %v528 = vsel %vm481, %v480, 0
        %vm530 = vcmask 1041408
        %v532 = vsel %vm530, %v396, 0
        %534 = vmatpush.bf16.msra.mxu0 0
        %535 = vmatpush.bf16.msra.mxu0 0
        %536 = vmatpush.bf16.msra.mxu0 0
        %537 = vmatpush.bf16.msra.mxu0 0
        %538 = vmatpush.bf16.msra.mxu0 0
        %539 = vmatpush.bf16.msra.mxu0 0
        %540 = vmatpush.bf16.msra.mxu0 0
        %541 = vmatpush.bf16.msra.mxu0 %v532
        %542 = vmatmul.bf16.gmra.mxu0 %v483
        %v543 = vpop.f32.mrf.mxu0
        %v544 = vadd.f32 %v399, %v543
        %v545 = vpop.f32.mrf.mxu0
        %v546 = vadd.f32 %v399, %v545
        %547 = vmatmul.bf16.gmra.mxu0 %v486
        %v548 = vpop.f32.mrf.mxu0
        %v549 = vadd.f32 %v399, %v548
        %v550 = vpop.f32.mrf.mxu0
        %v551 = vadd.f32 %v399, %v550
        %552 = vmatmul.bf16.gmra.mxu0 %v489
        %v553 = vpop.f32.mrf.mxu0
        %v554 = vadd.f32 %v399, %v553
        %v555 = vpop.f32.mrf.mxu0
        %v556 = vadd.f32 %v399, %v555
        %557 = vmatmul.bf16.gmra.mxu0 %v492
        %v558 = vpop.f32.mrf.mxu0
        %v559 = vadd.f32 %v399, %v558
        %v560 = vpop.f32.mrf.mxu0
        %v561 = vadd.f32 %v399, %v560
        %562 = vmatmul.bf16.gmra.mxu0 %v495
        %v563 = vpop.f32.mrf.mxu0
        %v564 = vadd.f32 %v399, %v563
        %v565 = vpop.f32.mrf.mxu0
        %v566 = vadd.f32 %v399, %v565
        %567 = vmatmul.bf16.gmra.mxu0 %v498
        %v568 = vpop.f32.mrf.mxu0
        %v569 = vadd.f32 %v399, %v568
        %v570 = vpop.f32.mrf.mxu0
        %v571 = vadd.f32 %v399, %v570
        %572 = vmatmul.bf16.gmra.mxu0 %v501
        %v573 = vpop.f32.mrf.mxu0
        %v574 = vadd.f32 %v399, %v573
        %v575 = vpop.f32.mrf.mxu0
        %v576 = vadd.f32 %v399, %v575
        %577 = vmatmul.bf16.gmra.mxu0 %v504
        %v578 = vpop.f32.mrf.mxu0
        %v579 = vadd.f32 %v399, %v578
        %v580 = vpop.f32.mrf.mxu0
        %v581 = vadd.f32 %v399, %v580
        %582 = vmatmul.bf16.gmra.mxu0 %v507
        %v583 = vpop.f32.mrf.mxu0
        %v584 = vadd.f32 %v399, %v583
        %v585 = vpop.f32.mrf.mxu0
        %v586 = vadd.f32 %v399, %v585
        %587 = vmatmul.bf16.gmra.mxu0 %v510
        %v588 = vpop.f32.mrf.mxu0
        %v589 = vadd.f32 %v399, %v588
        %v590 = vpop.f32.mrf.mxu0
        %v591 = vadd.f32 %v399, %v590
        %592 = vmatmul.bf16.gmra.mxu0 %v513
        %v593 = vpop.f32.mrf.mxu0
        %v594 = vadd.f32 %v399, %v593
        %v595 = vpop.f32.mrf.mxu0
        %v596 = vadd.f32 %v399, %v595
        %597 = vmatmul.bf16.gmra.mxu0 %v516
        %v598 = vpop.f32.mrf.mxu0
        %v599 = vadd.f32 %v399, %v598
        %v600 = vpop.f32.mrf.mxu0
        %v601 = vadd.f32 %v399, %v600
        %602 = vmatmul.bf16.gmra.mxu0 %v519
        %v603 = vpop.f32.mrf.mxu0
        %v604 = vadd.f32 %v399, %v603
        %v605 = vpop.f32.mrf.mxu0
        %v606 = vadd.f32 %v399, %v605
        %607 = vmatmul.bf16.gmra.mxu0 %v522
        %v608 = vpop.f32.mrf.mxu0
        %v609 = vadd.f32 %v399, %v608
        %v610 = vpop.f32.mrf.mxu0
        %v611 = vadd.f32 %v399, %v610
        %612 = vmatmul.bf16.gmra.mxu0 %v525
        %v613 = vpop.f32.mrf.mxu0
        %v614 = vadd.f32 %v399, %v613
        %v615 = vpop.f32.mrf.mxu0
        %v616 = vadd.f32 %v399, %v615
        %617 = vmatmul.bf16.gmra.mxu0 %v528
        %v618 = vpop.f32.mrf.mxu0
        %v619 = vadd.f32 %v399, %v618
        %v620 = vpop.f32.mrf.mxu0
        %v621 = vadd.f32 %v399, %v620
        %622 = vdwg.mxu0
        %vm623 = vcmask 97280
        %624 = vst.msk [vmem:[#allocation3] sm:$0xff] %vm623, 0.0
        %625 = vst.msk [vmem:[#allocation3 + $0x8] sm:$0xff] %vm623, 0.0
        %s626 = scalar_lea.vmem [#allocation3], 240
        %vm627 = vcmask 294080
        %628 = vst.msk [vmem:[%s626] sm:$0xff] %vm627, 0.0
        %629 = vst.msk [vmem:[%s626 + $0x8] sm:$0xff] %vm627, 0.0
        %vm630 = vcmask 24576
        %631 = vst.msk [vmem:[#allocation3] sm:$0x1] %vm630, 0.0
        %632 = vst.msk [vmem:[#allocation3 + $0x10] sm:$0x1] %vm630, 0.0
        %633 = vst.msk [vmem:[#allocation3 + $0x20] sm:$0x1] %vm630, 0.0
        %634 = vst.msk [vmem:[#allocation3 + $0x30] sm:$0x1] %vm630, 0.0
        %635 = vst.msk [vmem:[#allocation3 + $0x40] sm:$0x1] %vm630, 0.0
        %636 = vst.msk [vmem:[#allocation3 + $0x50] sm:$0x1] %vm630, 0.0
        %637 = vst.msk [vmem:[#allocation3 + $0x60] sm:$0x1] %vm630, 0.0
        %638 = vst.msk [vmem:[#allocation3 + $0x70] sm:$0x1] %vm630, 0.0
        %639 = vst.msk [vmem:[#allocation3 + $0x80] sm:$0x1] %vm630, 0.0
        %640 = vst.msk [vmem:[#allocation3 + $0x90] sm:$0x1] %vm630, 0.0
        %641 = vst.msk [vmem:[#allocation3 + $0xa0] sm:$0x1] %vm630, 0.0
        %642 = vst.msk [vmem:[#allocation3 + $0xb0] sm:$0x1] %vm630, 0.0
        %643 = vst.msk [vmem:[#allocation3 + $0xc0] sm:$0x1] %vm630, 0.0
        %644 = vst.msk [vmem:[#allocation3 + $0xd0] sm:$0x1] %vm630, 0.0
        %645 = vst.msk [vmem:[#allocation3 + $0xe0] sm:$0x1] %vm630, 0.0
        %646 = vst.msk [vmem:[#allocation3 + $0xf0] sm:$0x1] %vm630, 0.0
        %vm647 = vcmask 122976
        %648 = vst.msk [vmem:[#allocation3] sm:$0x1] %vm647, 0.0
        %649 = vst.msk [vmem:[#allocation3 + $0x10] sm:$0x1] %vm647, 0.0
        %650 = vst.msk [vmem:[#allocation3 + $0x20] sm:$0x1] %vm647, 0.0
        %651 = vst.msk [vmem:[#allocation3 + $0x30] sm:$0x1] %vm647, 0.0
        %652 = vst.msk [vmem:[#allocation3 + $0x40] sm:$0x1] %vm647, 0.0
        %653 = vst.msk [vmem:[#allocation3 + $0x50] sm:$0x1] %vm647, 0.0
        %654 = vst.msk [vmem:[#allocation3 + $0x60] sm:$0x1] %vm647, 0.0
        %655 = vst.msk [vmem:[#allocation3 + $0x70] sm:$0x1] %vm647, 0.0
        %656 = vst.msk [vmem:[#allocation3 + $0x80] sm:$0x1] %vm647, 0.0
        %657 = vst.msk [vmem:[#allocation3 + $0x90] sm:$0x1] %vm647, 0.0
        %658 = vst.msk [vmem:[#allocation3 + $0xa0] sm:$0x1] %vm647, 0.0
        %659 = vst.msk [vmem:[#allocation3 + $0xb0] sm:$0x1] %vm647, 0.0
        %660 = vst.msk [vmem:[#allocation3 + $0xc0] sm:$0x1] %vm647, 0.0
        %661 = vst.msk [vmem:[#allocation3 + $0xd0] sm:$0x1] %vm647, 0.0
        %662 = vst.msk [vmem:[#allocation3 + $0xe0] sm:$0x1] %vm647, 0.0
        %663 = vst.msk [vmem:[#allocation3 + $0xf0] sm:$0x1] %vm647, 0.0
        %vm664 = vcmask 221376
        %665 = vst.msk [vmem:[#allocation3] sm:$0x1] %vm664, 0.0
        %666 = vst.msk [vmem:[#allocation3 + $0x10] sm:$0x1] %vm664, 0.0
        %667 = vst.msk [vmem:[#allocation3 + $0x20] sm:$0x1] %vm664, 0.0
        %668 = vst.msk [vmem:[#allocation3 + $0x30] sm:$0x1] %vm664, 0.0
        %669 = vst.msk [vmem:[#allocation3 + $0x40] sm:$0x1] %vm664, 0.0
        %670 = vst.msk [vmem:[#allocation3 + $0x50] sm:$0x1] %vm664, 0.0
        %671 = vst.msk [vmem:[#allocation3 + $0x60] sm:$0x1] %vm664, 0.0
        %672 = vst.msk [vmem:[#allocation3 + $0x70] sm:$0x1] %vm664, 0.0
        %673 = vst.msk [vmem:[#allocation3 + $0x80] sm:$0x1] %vm664, 0.0
        %674 = vst.msk [vmem:[#allocation3 + $0x90] sm:$0x1] %vm664, 0.0
        %675 = vst.msk [vmem:[#allocation3 + $0xa0] sm:$0x1] %vm664, 0.0
        %676 = vst.msk [vmem:[#allocation3 + $0xb0] sm:$0x1] %vm664, 0.0
        %677 = vst.msk [vmem:[#allocation3 + $0xc0] sm:$0x1] %vm664, 0.0
        %678 = vst.msk [vmem:[#allocation3 + $0xd0] sm:$0x1] %vm664, 0.0
        %679 = vst.msk [vmem:[#allocation3 + $0xe0] sm:$0x1] %vm664, 0.0
        %680 = vst.msk [vmem:[#allocation3 + $0xf0] sm:$0x1] %vm664, 0.0
        %vm681 = vcmask 90176
        %682 = vst.msk [vmem:[#allocation3 + $0xf] sm:$0x1] %vm681, 0.0
        %683 = vst.msk [vmem:[#allocation3 + $0x1f] sm:$0x1] %vm681, 0.0
        %684 = vst.msk [vmem:[#allocation3 + $0x2f] sm:$0x1] %vm681, 0.0
        %685 = vst.msk [vmem:[#allocation3 + $0x3f] sm:$0x1] %vm681, 0.0
        %686 = vst.msk [vmem:[#allocation3 + $0x4f] sm:$0x1] %vm681, 0.0
        %687 = vst.msk [vmem:[#allocation3 + $0x5f] sm:$0x1] %vm681, 0.0
        %688 = vst.msk [vmem:[#allocation3 + $0x6f] sm:$0x1] %vm681, 0.0
        %689 = vst.msk [vmem:[#allocation3 + $0x7f] sm:$0x1] %vm681, 0.0
        %690 = vst.msk [vmem:[#allocation3 + $0x8f] sm:$0x1] %vm681, 0.0
        %691 = vst.msk [vmem:[#allocation3 + $0x9f] sm:$0x1] %vm681, 0.0
        %692 = vst.msk [vmem:[#allocation3 + $0xaf] sm:$0x1] %vm681, 0.0
        %693 = vst.msk [vmem:[#allocation3 + $0xbf] sm:$0x1] %vm681, 0.0
        %694 = vst.msk [vmem:[#allocation3 + $0xcf] sm:$0x1] %vm681, 0.0
        %695 = vst.msk [vmem:[#allocation3 + $0xdf] sm:$0x1] %vm681, 0.0
        %696 = vst.msk [vmem:[#allocation3 + $0xef] sm:$0x1] %vm681, 0.0
        %697 = vst.msk [vmem:[#allocation3 + $0xff] sm:$0x1] %vm681, 0.0
        %vm698 = vcmask 188576
        %699 = vst.msk [vmem:[#allocation3 + $0xf] sm:$0x1] %vm698, 0.0
        %700 = vst.msk [vmem:[#allocation3 + $0x1f] sm:$0x1] %vm698, 0.0
        %701 = vst.msk [vmem:[#allocation3 + $0x2f] sm:$0x1] %vm698, 0.0
        %702 = vst.msk [vmem:[#allocation3 + $0x3f] sm:$0x1] %vm698, 0.0
        %703 = vst.msk [vmem:[#allocation3 + $0x4f] sm:$0x1] %vm698, 0.0
        %704 = vst.msk [vmem:[#allocation3 + $0x5f] sm:$0x1] %vm698, 0.0
        %705 = vst.msk [vmem:[#allocation3 + $0x6f] sm:$0x1] %vm698, 0.0
        %706 = vst.msk [vmem:[#allocation3 + $0x7f] sm:$0x1] %vm698, 0.0
        %707 = vst.msk [vmem:[#allocation3 + $0x8f] sm:$0x1] %vm698, 0.0
        %708 = vst.msk [vmem:[#allocation3 + $0x9f] sm:$0x1] %vm698, 0.0
        %709 = vst.msk [vmem:[#allocation3 + $0xaf] sm:$0x1] %vm698, 0.0
        %710 = vst.msk [vmem:[#allocation3 + $0xbf] sm:$0x1] %vm698, 0.0
        %711 = vst.msk [vmem:[#allocation3 + $0xcf] sm:$0x1] %vm698, 0.0
        %712 = vst.msk [vmem:[#allocation3 + $0xdf] sm:$0x1] %vm698, 0.0
        %713 = vst.msk [vmem:[#allocation3 + $0xef] sm:$0x1] %vm698, 0.0
        %714 = vst.msk [vmem:[#allocation3 + $0xff] sm:$0x1] %vm698, 0.0
        %vm715 = vcmask 286976
        %716 = vst.msk [vmem:[#allocation3 + $0xf] sm:$0x1] %vm715, 0.0
        %717 = vst.msk [vmem:[#allocation3 + $0x1f] sm:$0x1] %vm715, 0.0
        %718 = vst.msk [vmem:[#allocation3 + $0x2f] sm:$0x1] %vm715, 0.0
        %719 = vst.msk [vmem:[#allocation3 + $0x3f] sm:$0x1] %vm715, 0.0
        %720 = vst.msk [vmem:[#allocation3 + $0x4f] sm:$0x1] %vm715, 0.0
        %721 = vst.msk [vmem:[#allocation3 + $0x5f] sm:$0x1] %vm715, 0.0
        %722 = vst.msk [vmem:[#allocation3 + $0x6f] sm:$0x1] %vm715, 0.0
        %723 = vst.msk [vmem:[#allocation3 + $0x7f] sm:$0x1] %vm715, 0.0
        %724 = vst.msk [vmem:[#allocation3 + $0x8f] sm:$0x1] %vm715, 0.0
        %725 = vst.msk [vmem:[#allocation3 + $0x9f] sm:$0x1] %vm715, 0.0
        %726 = vst.msk [vmem:[#allocation3 + $0xaf] sm:$0x1] %vm715, 0.0
        %727 = vst.msk [vmem:[#allocation3 + $0xbf] sm:$0x1] %vm715, 0.0
        %728 = vst.msk [vmem:[#allocation3 + $0xcf] sm:$0x1] %vm715, 0.0
        %729 = vst.msk [vmem:[#allocation3 + $0xdf] sm:$0x1] %vm715, 0.0
        %730 = vst.msk [vmem:[#allocation3 + $0xef] sm:$0x1] %vm715, 0.0
        %731 = vst.msk [vmem:[#allocation3 + $0xff] sm:$0x1] %vm715, 0.0
        %762 = vrot.lane.b32.xlu0 %v544, 120
        %v763 = vpop.permute.xlu0 %762
        %764 = vrot.lane.b32.xlu0 %v546, 120
        %v765 = vpop.permute.xlu0 %764
        %766 = vrot.lane.b32.xlu0 %v549, 120
        %v767 = vpop.permute.xlu0 %766
        %768 = vrot.lane.b32.xlu0 %v551, 120
        %v769 = vpop.permute.xlu0 %768
        %770 = vrot.lane.b32.xlu0 %v554, 120
        %v771 = vpop.permute.xlu0 %770
        %772 = vrot.lane.b32.xlu0 %v556, 120
        %v773 = vpop.permute.xlu0 %772
        %774 = vrot.lane.b32.xlu0 %v559, 120
        %v775 = vpop.permute.xlu0 %774
        %776 = vrot.lane.b32.xlu0 %v561, 120
        %v777 = vpop.permute.xlu0 %776
        %778 = vrot.lane.b32.xlu0 %v564, 120
        %v779 = vpop.permute.xlu0 %778
        %780 = vrot.lane.b32.xlu0 %v566, 120
        %v781 = vpop.permute.xlu0 %780
        %782 = vrot.lane.b32.xlu0 %v569, 120
        %v783 = vpop.permute.xlu0 %782
        %784 = vrot.lane.b32.xlu0 %v571, 120
        %v785 = vpop.permute.xlu0 %784
        %786 = vrot.lane.b32.xlu0 %v574, 120
        %v787 = vpop.permute.xlu0 %786
        %788 = vrot.lane.b32.xlu0 %v576, 120
        %v789 = vpop.permute.xlu0 %788
        %790 = vrot.lane.b32.xlu0 %v579, 120
        %v791 = vpop.permute.xlu0 %790
        %792 = vrot.lane.b32.xlu0 %v581, 120
        %v793 = vpop.permute.xlu0 %792
        %794 = vrot.lane.b32.xlu0 %v584, 120
        %v795 = vpop.permute.xlu0 %794
        %796 = vrot.lane.b32.xlu0 %v586, 120
        %v797 = vpop.permute.xlu0 %796
        %798 = vrot.lane.b32.xlu0 %v589, 120
        %v799 = vpop.permute.xlu0 %798
        %800 = vrot.lane.b32.xlu0 %v591, 120
        %v801 = vpop.permute.xlu0 %800
        %802 = vrot.lane.b32.xlu0 %v594, 120
        %v803 = vpop.permute.xlu0 %802
        %804 = vrot.lane.b32.xlu0 %v596, 120
        %v805 = vpop.permute.xlu0 %804
        %806 = vrot.lane.b32.xlu0 %v599, 120
        %v807 = vpop.permute.xlu0 %806
        %808 = vrot.lane.b32.xlu0 %v601, 120
        %v809 = vpop.permute.xlu0 %808
        %810 = vrot.lane.b32.xlu0 %v604, 120
        %v811 = vpop.permute.xlu0 %810
        %812 = vrot.lane.b32.xlu0 %v606, 120
        %v813 = vpop.permute.xlu0 %812
        %814 = vrot.lane.b32.xlu0 %v609, 120
        %v815 = vpop.permute.xlu0 %814
        %816 = vrot.lane.b32.xlu0 %v611, 120
        %v817 = vpop.permute.xlu0 %816
        %818 = vrot.lane.b32.xlu0 %v614, 120
        %v819 = vpop.permute.xlu0 %818
        %820 = vrot.lane.b32.xlu0 %v616, 120
        %v821 = vpop.permute.xlu0 %820
        %s852 = scalar_lea.vmem [#allocation3], 16
        %853 = vst.msk [vmem:[%s852 + $0x1] sm:$0xff] %vm481, %v763
        %vm854 = vcmask 30720
        %855 = vst.msk [vmem:[%s852 + $0x9] sm:$0x7f] %vm854, %v765
        %856 = vst.msk [vmem:[%s852 + $0x11] sm:$0xff] %vm481, %v767
        %857 = vst.msk [vmem:[%s852 + $0x19] sm:$0x7f] %vm854, %v769
        %858 = vst.msk [vmem:[%s852 + $0x21] sm:$0xff] %vm481, %v771
        %859 = vst.msk [vmem:[%s852 + $0x29] sm:$0x7f] %vm854, %v773
        %860 = vst.msk [vmem:[%s852 + $0x31] sm:$0xff] %vm481, %v775
        %861 = vst.msk [vmem:[%s852 + $0x39] sm:$0x7f] %vm854, %v777
        %862 = vst.msk [vmem:[%s852 + $0x41] sm:$0xff] %vm481, %v779
        %863 = vst.msk [vmem:[%s852 + $0x49] sm:$0x7f] %vm854, %v781
        %864 = vst.msk [vmem:[%s852 + $0x51] sm:$0xff] %vm481, %v783
        %865 = vst.msk [vmem:[%s852 + $0x59] sm:$0x7f] %vm854, %v785
        %866 = vst.msk [vmem:[%s852 + $0x61] sm:$0xff] %vm481, %v787
        %867 = vst.msk [vmem:[%s852 + $0x69] sm:$0x7f] %vm854, %v789
        %868 = vst.msk [vmem:[%s852 + $0x71] sm:$0xff] %vm481, %v791
        %869 = vst.msk [vmem:[%s852 + $0x79] sm:$0x7f] %vm854, %v793
        %870 = vst.msk [vmem:[%s852 + $0x81] sm:$0xff] %vm481, %v795
        %871 = vst.msk [vmem:[%s852 + $0x89] sm:$0x7f] %vm854, %v797
        %872 = vst.msk [vmem:[%s852 + $0x91] sm:$0xff] %vm481, %v799
        %873 = vst.msk [vmem:[%s852 + $0x99] sm:$0x7f] %vm854, %v801
        %874 = vst.msk [vmem:[%s852 + $0xa1] sm:$0xff] %vm481, %v803
        %875 = vst.msk [vmem:[%s852 + $0xa9] sm:$0x7f] %vm854, %v805
        %876 = vst.msk [vmem:[%s852 + $0xb1] sm:$0xff] %vm481, %v807
        %877 = vst.msk [vmem:[%s852 + $0xb9] sm:$0x7f] %vm854, %v809
        %878 = vst.msk [vmem:[%s852 + $0xc1] sm:$0xff] %vm481, %v811
        %879 = vst.msk [vmem:[%s852 + $0xc9] sm:$0x7f] %vm854, %v813
        %880 = vst.msk [vmem:[%s852 + $0xd1] sm:$0xff] %vm481, %v815
        %881 = vst.msk [vmem:[%s852 + $0xd9] sm:$0x7f] %vm854, %v817
        %882 = vst.msk [vmem:[%s852 + $0xe1] sm:$0xff] %vm481, %v819
        %883 = vst.msk [vmem:[%s852 + $0xe9] sm:$0x7f] %vm854, %v821
        %884 = vrot.lane.b32.xlu0 %v544, 124
        %v885 = vpop.permute.xlu0 %884
        %886 = vrot.lane.b32.xlu0 %v546, 124
        %v887 = vpop.permute.xlu0 %886
        %888 = vrot.lane.b32.xlu0 %v549, 124
        %v889 = vpop.permute.xlu0 %888
        %890 = vrot.lane.b32.xlu0 %v551, 124
        %v891 = vpop.permute.xlu0 %890
        %892 = vrot.lane.b32.xlu0 %v554, 124
        %v893 = vpop.permute.xlu0 %892
        %894 = vrot.lane.b32.xlu0 %v556, 124
        %v895 = vpop.permute.xlu0 %894
        %896 = vrot.lane.b32.xlu0 %v559, 124
        %v897 = vpop.permute.xlu0 %896
        %898 = vrot.lane.b32.xlu0 %v561, 124
        %v899 = vpop.permute.xlu0 %898
        %900 = vrot.lane.b32.xlu0 %v564, 124
        %v901 = vpop.permute.xlu0 %900
        %902 = vrot.lane.b32.xlu0 %v566, 124
        %v903 = vpop.permute.xlu0 %902
        %904 = vrot.lane.b32.xlu0 %v569, 124
        %v905 = vpop.permute.xlu0 %904
        %906 = vrot.lane.b32.xlu0 %v571, 124
        %v907 = vpop.permute.xlu0 %906
        %908 = vrot.lane.b32.xlu0 %v574, 124
        %v909 = vpop.permute.xlu0 %908
        %910 = vrot.lane.b32.xlu0 %v576, 124
        %v911 = vpop.permute.xlu0 %910
        %912 = vrot.lane.b32.xlu0 %v579, 124
        %v913 = vpop.permute.xlu0 %912
        %914 = vrot.lane.b32.xlu0 %v581, 124
        %v915 = vpop.permute.xlu0 %914
        %916 = vrot.lane.b32.xlu0 %v584, 124
        %v917 = vpop.permute.xlu0 %916
        %918 = vrot.lane.b32.xlu0 %v586, 124
        %v919 = vpop.permute.xlu0 %918
        %920 = vrot.lane.b32.xlu0 %v589, 124
        %v921 = vpop.permute.xlu0 %920
        %922 = vrot.lane.b32.xlu0 %v591, 124
        %v923 = vpop.permute.xlu0 %922
        %924 = vrot.lane.b32.xlu0 %v594, 124
        %v925 = vpop.permute.xlu0 %924
        %926 = vrot.lane.b32.xlu0 %v596, 124
        %v927 = vpop.permute.xlu0 %926
        %928 = vrot.lane.b32.xlu0 %v599, 124
        %v929 = vpop.permute.xlu0 %928
        %930 = vrot.lane.b32.xlu0 %v601, 124
        %v931 = vpop.permute.xlu0 %930
        %932 = vrot.lane.b32.xlu0 %v604, 124
        %v933 = vpop.permute.xlu0 %932
        %934 = vrot.lane.b32.xlu0 %v606, 124
        %v935 = vpop.permute.xlu0 %934
        %936 = vrot.lane.b32.xlu0 %v609, 124
        %v937 = vpop.permute.xlu0 %936
        %938 = vrot.lane.b32.xlu0 %v611, 124
        %v939 = vpop.permute.xlu0 %938
        %940 = vrot.lane.b32.xlu0 %v614, 124
        %v941 = vpop.permute.xlu0 %940
        %942 = vrot.lane.b32.xlu0 %v616, 124
        %v943 = vpop.permute.xlu0 %942
        %vm974 = vcmask 64544
        %975 = vst.msk [vmem:[%s852] sm:$0xff] %vm974, %v885
        %976 = vst.msk [vmem:[%s852 + $0x8] sm:$0xff] %vm974, %v887
        %977 = vst.msk [vmem:[%s852 + $0x10] sm:$0xff] %vm974, %v889
        %978 = vst.msk [vmem:[%s852 + $0x18] sm:$0xff] %vm974, %v891
        %979 = vst.msk [vmem:[%s852 + $0x20] sm:$0xff] %vm974, %v893
        %980 = vst.msk [vmem:[%s852 + $0x28] sm:$0xff] %vm974, %v895
        %981 = vst.msk [vmem:[%s852 + $0x30] sm:$0xff] %vm974, %v897
        %982 = vst.msk [vmem:[%s852 + $0x38] sm:$0xff] %vm974, %v899
        %983 = vst.msk [vmem:[%s852 + $0x40] sm:$0xff] %vm974, %v901
        %984 = vst.msk [vmem:[%s852 + $0x48] sm:$0xff] %vm974, %v903
        %985 = vst.msk [vmem:[%s852 + $0x50] sm:$0xff] %vm974, %v905
        %986 = vst.msk [vmem:[%s852 + $0x58] sm:$0xff] %vm974, %v907
        %987 = vst.msk [vmem:[%s852 + $0x60] sm:$0xff] %vm974, %v909
        %988 = vst.msk [vmem:[%s852 + $0x68] sm:$0xff] %vm974, %v911
        %989 = vst.msk [vmem:[%s852 + $0x70] sm:$0xff] %vm974, %v913
        %990 = vst.msk [vmem:[%s852 + $0x78] sm:$0xff] %vm974, %v915
        %991 = vst.msk [vmem:[%s852 + $0x80] sm:$0xff] %vm974, %v917
        %992 = vst.msk [vmem:[%s852 + $0x88] sm:$0xff] %vm974, %v919
        %993 = vst.msk [vmem:[%s852 + $0x90] sm:$0xff] %vm974, %v921
        %994 = vst.msk [vmem:[%s852 + $0x98] sm:$0xff] %vm974, %v923
        %995 = vst.msk [vmem:[%s852 + $0xa0] sm:$0xff] %vm974, %v925
        %996 = vst.msk [vmem:[%s852 + $0xa8] sm:$0xff] %vm974, %v927
        %997 = vst.msk [vmem:[%s852 + $0xb0] sm:$0xff] %vm974, %v929
        %998 = vst.msk [vmem:[%s852 + $0xb8] sm:$0xff] %vm974, %v931
        %999 = vst.msk [vmem:[%s852 + $0xc0] sm:$0xff] %vm974, %v933
        %1000 = vst.msk [vmem:[%s852 + $0xc8] sm:$0xff] %vm974, %v935
        %1001 = vst.msk [vmem:[%s852 + $0xd0] sm:$0xff] %vm974, %v937
        %1002 = vst.msk [vmem:[%s852 + $0xd8] sm:$0xff] %vm974, %v939
        %1003 = vst.msk [vmem:[%s852 + $0xe0] sm:$0xff] %vm974, %v941
        %1004 = vst.msk [vmem:[%s852 + $0xe8] sm:$0xff] %vm974, %v943
        %vm1005 = vcmask 97345
        %1006 = vst.msk [vmem:[%s852 - $0x1] sm:$0xfe] %vm1005, %v544
        %vm1007 = vcmask 97344
        %1008 = vst.msk [vmem:[%s852 + $0x7] sm:$0xff] %vm1007, %v546
        %1009 = vst.msk [vmem:[%s852 + $0xf] sm:$0xfe] %vm1005, %v549
        %1010 = vst.msk [vmem:[%s852 + $0x17] sm:$0xff] %vm1007, %v551
        %1011 = vst.msk [vmem:[%s852 + $0x1f] sm:$0xfe] %vm1005, %v554
        %1012 = vst.msk [vmem:[%s852 + $0x27] sm:$0xff] %vm1007, %v556
        %1013 = vst.msk [vmem:[%s852 + $0x2f] sm:$0xfe] %vm1005, %v559
        %1014 = vst.msk [vmem:[%s852 + $0x37] sm:$0xff] %vm1007, %v561
        %1015 = vst.msk [vmem:[%s852 + $0x3f] sm:$0xfe] %vm1005, %v564
        %1016 = vst.msk [vmem:[%s852 + $0x47] sm:$0xff] %vm1007, %v566
        %1017 = vst.msk [vmem:[%s852 + $0x4f] sm:$0xfe] %vm1005, %v569
        %1018 = vst.msk [vmem:[%s852 + $0x57] sm:$0xff] %vm1007, %v571
        %1019 = vst.msk [vmem:[%s852 + $0x5f] sm:$0xfe] %vm1005, %v574
        %1020 = vst.msk [vmem:[%s852 + $0x67] sm:$0xff] %vm1007, %v576
        %1021 = vst.msk [vmem:[%s852 + $0x6f] sm:$0xfe] %vm1005, %v579
        %1022 = vst.msk [vmem:[%s852 + $0x77] sm:$0xff] %vm1007, %v581
        %1023 = vst.msk [vmem:[%s852 + $0x7f] sm:$0xfe] %vm1005, %v584
        %1024 = vst.msk [vmem:[%s852 + $0x87] sm:$0xff] %vm1007, %v586
        %1025 = vst.msk [vmem:[%s852 + $0x8f] sm:$0xfe] %vm1005, %v589
        %1026 = vst.msk [vmem:[%s852 + $0x97] sm:$0xff] %vm1007, %v591
        %1027 = vst.msk [vmem:[%s852 + $0x9f] sm:$0xfe] %vm1005, %v594
        %1028 = vst.msk [vmem:[%s852 + $0xa7] sm:$0xff] %vm1007, %v596
        %1029 = vst.msk [vmem:[%s852 + $0xaf] sm:$0xfe] %vm1005, %v599
        %1030 = vst.msk [vmem:[%s852 + $0xb7] sm:$0xff] %vm1007, %v601
        %1031 = vst.msk [vmem:[%s852 + $0xbf] sm:$0xfe] %vm1005, %v604
        %1032 = vst.msk [vmem:[%s852 + $0xc7] sm:$0xff] %vm1007, %v606
        %1033 = vst.msk [vmem:[%s852 + $0xcf] sm:$0xfe] %vm1005, %v609
        %1034 = vst.msk [vmem:[%s852 + $0xd7] sm:$0xff] %vm1007, %v611
        %1035 = vst.msk [vmem:[%s852 + $0xdf] sm:$0xfe] %vm1005, %v614
        %1036 = vst.msk [vmem:[%s852 + $0xe7] sm:$0xff] %vm1007, %v616
        %1039 = vrot.lane.b32.xlu0 %v544, 4
        %v1040 = vpop.permute.xlu0 %1039
        %1041 = vrot.lane.b32.xlu0 %v546, 4
        %v1042 = vpop.permute.xlu0 %1041
        %1043 = vrot.lane.b32.xlu0 %v549, 4
        %v1044 = vpop.permute.xlu0 %1043
        %1045 = vrot.lane.b32.xlu0 %v551, 4
        %v1046 = vpop.permute.xlu0 %1045
        %1047 = vrot.lane.b32.xlu0 %v554, 4
        %v1048 = vpop.permute.xlu0 %1047
        %1049 = vrot.lane.b32.xlu0 %v556, 4
        %v1050 = vpop.permute.xlu0 %1049
        %1051 = vrot.lane.b32.xlu0 %v559, 4
        %v1052 = vpop.permute.xlu0 %1051
        %1053 = vrot.lane.b32.xlu0 %v561, 4
        %v1054 = vpop.permute.xlu0 %1053
        %1055 = vrot.lane.b32.xlu0 %v564, 4
        %v1056 = vpop.permute.xlu0 %1055
        %1057 = vrot.lane.b32.xlu0 %v566, 4
        %v1058 = vpop.permute.xlu0 %1057
        %1059 = vrot.lane.b32.xlu0 %v569, 4
        %v1060 = vpop.permute.xlu0 %1059
        %1061 = vrot.lane.b32.xlu0 %v571, 4
        %v1062 = vpop.permute.xlu0 %1061
        %1063 = vrot.lane.b32.xlu0 %v574, 4
        %v1064 = vpop.permute.xlu0 %1063
        %1065 = vrot.lane.b32.xlu0 %v576, 4
        %v1066 = vpop.permute.xlu0 %1065
        %1067 = vrot.lane.b32.xlu0 %v579, 4
        %v1068 = vpop.permute.xlu0 %1067
        %1069 = vrot.lane.b32.xlu0 %v581, 4
        %v1070 = vpop.permute.xlu0 %1069
        %1071 = vrot.lane.b32.xlu0 %v584, 4
        %v1072 = vpop.permute.xlu0 %1071
        %1073 = vrot.lane.b32.xlu0 %v586, 4
        %v1074 = vpop.permute.xlu0 %1073
        %1075 = vrot.lane.b32.xlu0 %v589, 4
        %v1076 = vpop.permute.xlu0 %1075
        %1077 = vrot.lane.b32.xlu0 %v591, 4
        %v1078 = vpop.permute.xlu0 %1077
        %1079 = vrot.lane.b32.xlu0 %v594, 4
        %v1080 = vpop.permute.xlu0 %1079
        %1081 = vrot.lane.b32.xlu0 %v596, 4
        %v1082 = vpop.permute.xlu0 %1081
        %1083 = vrot.lane.b32.xlu0 %v599, 4
        %v1084 = vpop.permute.xlu0 %1083
        %1085 = vrot.lane.b32.xlu0 %v601, 4
        %v1086 = vpop.permute.xlu0 %1085
        %1087 = vrot.lane.b32.xlu0 %v604, 4
        %v1088 = vpop.permute.xlu0 %1087
        %1089 = vrot.lane.b32.xlu0 %v606, 4
        %v1090 = vpop.permute.xlu0 %1089
        %1091 = vrot.lane.b32.xlu0 %v609, 4
        %v1092 = vpop.permute.xlu0 %1091
        %1093 = vrot.lane.b32.xlu0 %v611, 4
        %v1094 = vpop.permute.xlu0 %1093
        %1095 = vrot.lane.b32.xlu0 %v614, 4
        %v1096 = vpop.permute.xlu0 %1095
        %1097 = vrot.lane.b32.xlu0 %v616, 4
        %v1098 = vpop.permute.xlu0 %1097
        %1099 = vrot.lane.b32.xlu0 %v619, 4
        %v1100 = vpop.permute.xlu0 %1099
        %1101 = vrot.lane.b32.xlu0 %v621, 4
        %v1102 = vpop.permute.xlu0 %1101
        %vm1135 = vcmask 130144
        %1136 = vst.msk [vmem:[#allocation3 + $0x1] sm:$0xff] %vm1135, %v1040
        %vm1137 = vcmask 129120
        %1138 = vst.msk [vmem:[#allocation3 + $0x9] sm:$0x7f] %vm1137, %v1042
        %1139 = vst.msk [vmem:[#allocation3 + $0x11] sm:$0xff] %vm1135, %v1044
        %1140 = vst.msk [vmem:[#allocation3 + $0x19] sm:$0x7f] %vm1137, %v1046
        %1141 = vst.msk [vmem:[#allocation3 + $0x21] sm:$0xff] %vm1135, %v1048
        %1142 = vst.msk [vmem:[#allocation3 + $0x29] sm:$0x7f] %vm1137, %v1050
        %1143 = vst.msk [vmem:[#allocation3 + $0x31] sm:$0xff] %vm1135, %v1052
        %1144 = vst.msk [vmem:[#allocation3 + $0x39] sm:$0x7f] %vm1137, %v1054
        %1145 = vst.msk [vmem:[#allocation3 + $0x41] sm:$0xff] %vm1135, %v1056
        %1146 = vst.msk [vmem:[#allocation3 + $0x49] sm:$0x7f] %vm1137, %v1058
        %1147 = vst.msk [vmem:[#allocation3 + $0x51] sm:$0xff] %vm1135, %v1060
        %1148 = vst.msk [vmem:[#allocation3 + $0x59] sm:$0x7f] %vm1137, %v1062
        %1149 = vst.msk [vmem:[#allocation3 + $0x61] sm:$0xff] %vm1135, %v1064
        %1150 = vst.msk [vmem:[#allocation3 + $0x69] sm:$0x7f] %vm1137, %v1066
        %1151 = vst.msk [vmem:[#allocation3 + $0x71] sm:$0xff] %vm1135, %v1068
        %1152 = vst.msk [vmem:[#allocation3 + $0x79] sm:$0x7f] %vm1137, %v1070
        %1153 = vst.msk [vmem:[#allocation3 + $0x81] sm:$0xff] %vm1135, %v1072
        %1154 = vst.msk [vmem:[#allocation3 + $0x89] sm:$0x7f] %vm1137, %v1074
        %1155 = vst.msk [vmem:[#allocation3 + $0x91] sm:$0xff] %vm1135, %v1076
        %1156 = vst.msk [vmem:[#allocation3 + $0x99] sm:$0x7f] %vm1137, %v1078
        %1157 = vst.msk [vmem:[#allocation3 + $0xa1] sm:$0xff] %vm1135, %v1080
        %1158 = vst.msk [vmem:[#allocation3 + $0xa9] sm:$0x7f] %vm1137, %v1082
        %1159 = vst.msk [vmem:[#allocation3 + $0xb1] sm:$0xff] %vm1135, %v1084
        %1160 = vst.msk [vmem:[#allocation3 + $0xb9] sm:$0x7f] %vm1137, %v1086
        %1161 = vst.msk [vmem:[#allocation3 + $0xc1] sm:$0xff] %vm1135, %v1088
        %1162 = vst.msk [vmem:[#allocation3 + $0xc9] sm:$0x7f] %vm1137, %v1090
        %1163 = vst.msk [vmem:[#allocation3 + $0xd1] sm:$0xff] %vm1135, %v1092
        %1164 = vst.msk [vmem:[#allocation3 + $0xd9] sm:$0x7f] %vm1137, %v1094
        %1165 = vst.msk [vmem:[#allocation3 + $0xe1] sm:$0xff] %vm1135, %v1096
        %1166 = vst.msk [vmem:[#allocation3 + $0xe9] sm:$0x7f] %vm1137, %v1098
        %1167 = vst.msk [vmem:[#allocation3 + $0xf1] sm:$0xff] %vm1135, %v1100
        %1168 = vst.msk [vmem:[#allocation3 + $0xf9] sm:$0x7f] %vm1137, %v1102
        %1169 = vrot.lane.b32.xlu0 %v544, 8
        %v1170 = vpop.permute.xlu0 %1169
        %1171 = vrot.lane.b32.xlu0 %v546, 8
        %v1172 = vpop.permute.xlu0 %1171
        %1173 = vrot.lane.b32.xlu0 %v549, 8
        %v1174 = vpop.permute.xlu0 %1173
        %1175 = vrot.lane.b32.xlu0 %v551, 8
        %v1176 = vpop.permute.xlu0 %1175
        %1177 = vrot.lane.b32.xlu0 %v554, 8
        %v1178 = vpop.permute.xlu0 %1177
        %1179 = vrot.lane.b32.xlu0 %v556, 8
        %v1180 = vpop.permute.xlu0 %1179
        %1181 = vrot.lane.b32.xlu0 %v559, 8
        %v1182 = vpop.permute.xlu0 %1181
        %1183 = vrot.lane.b32.xlu0 %v561, 8
        %v1184 = vpop.permute.xlu0 %1183
        %1185 = vrot.lane.b32.xlu0 %v564, 8
        %v1186 = vpop.permute.xlu0 %1185
        %1187 = vrot.lane.b32.xlu0 %v566, 8
        %v1188 = vpop.permute.xlu0 %1187
        %1189 = vrot.lane.b32.xlu0 %v569, 8
        %v1190 = vpop.permute.xlu0 %1189
        %1191 = vrot.lane.b32.xlu0 %v571, 8
        %v1192 = vpop.permute.xlu0 %1191
        %1193 = vrot.lane.b32.xlu0 %v574, 8
        %v1194 = vpop.permute.xlu0 %1193
        %1195 = vrot.lane.b32.xlu0 %v576, 8
        %v1196 = vpop.permute.xlu0 %1195
        %1197 = vrot.lane.b32.xlu0 %v579, 8
        %v1198 = vpop.permute.xlu0 %1197
        %1199 = vrot.lane.b32.xlu0 %v581, 8
        %v1200 = vpop.permute.xlu0 %1199
        %1201 = vrot.lane.b32.xlu0 %v584, 8
        %v1202 = vpop.permute.xlu0 %1201
        %1203 = vrot.lane.b32.xlu0 %v586, 8
        %v1204 = vpop.permute.xlu0 %1203
        %1205 = vrot.lane.b32.xlu0 %v589, 8
        %v1206 = vpop.permute.xlu0 %1205
        %1207 = vrot.lane.b32.xlu0 %v591, 8
        %v1208 = vpop.permute.xlu0 %1207
        %1209 = vrot.lane.b32.xlu0 %v594, 8
        %v1210 = vpop.permute.xlu0 %1209
        %1211 = vrot.lane.b32.xlu0 %v596, 8
        %v1212 = vpop.permute.xlu0 %1211
        %1213 = vrot.lane.b32.xlu0 %v599, 8
        %v1214 = vpop.permute.xlu0 %1213
        %1215 = vrot.lane.b32.xlu0 %v601, 8
        %v1216 = vpop.permute.xlu0 %1215
        %1217 = vrot.lane.b32.xlu0 %v604, 8
        %v1218 = vpop.permute.xlu0 %1217
        %1219 = vrot.lane.b32.xlu0 %v606, 8
        %v1220 = vpop.permute.xlu0 %1219
        %1221 = vrot.lane.b32.xlu0 %v609, 8
        %v1222 = vpop.permute.xlu0 %1221
        %1223 = vrot.lane.b32.xlu0 %v611, 8
        %v1224 = vpop.permute.xlu0 %1223
        %1225 = vrot.lane.b32.xlu0 %v614, 8
        %v1226 = vpop.permute.xlu0 %1225
        %1227 = vrot.lane.b32.xlu0 %v616, 8
        %v1228 = vpop.permute.xlu0 %1227
        %1229 = vrot.lane.b32.xlu0 %v619, 8
        %v1230 = vpop.permute.xlu0 %1229
        %1231 = vrot.lane.b32.xlu0 %v621, 8
        %v1232 = vpop.permute.xlu0 %1231
        %vm1265 = vcmask 162944
        %1266 = vst.msk [vmem:[#allocation3] sm:$0xff] %vm1265, %v1170
        %1267 = vst.msk [vmem:[#allocation3 + $0x8] sm:$0xff] %vm1265, %v1172
        %1268 = vst.msk [vmem:[#allocation3 + $0x10] sm:$0xff] %vm1265, %v1174
        %1269 = vst.msk [vmem:[#allocation3 + $0x18] sm:$0xff] %vm1265, %v1176
        %1270 = vst.msk [vmem:[#allocation3 + $0x20] sm:$0xff] %vm1265, %v1178
        %1271 = vst.msk [vmem:[#allocation3 + $0x28] sm:$0xff] %vm1265, %v1180
        %1272 = vst.msk [vmem:[#allocation3 + $0x30] sm:$0xff] %vm1265, %v1182
        %1273 = vst.msk [vmem:[#allocation3 + $0x38] sm:$0xff] %vm1265, %v1184
        %1274 = vst.msk [vmem:[#allocation3 + $0x40] sm:$0xff] %vm1265, %v1186
        %1275 = vst.msk [vmem:[#allocation3 + $0x48] sm:$0xff] %vm1265, %v1188
        %1276 = vst.msk [vmem:[#allocation3 + $0x50] sm:$0xff] %vm1265, %v1190
        %1277 = vst.msk [vmem:[#allocation3 + $0x58] sm:$0xff] %vm1265, %v1192
        %1278 = vst.msk [vmem:[#allocation3 + $0x60] sm:$0xff] %vm1265, %v1194
        %1279 = vst.msk [vmem:[#allocation3 + $0x68] sm:$0xff] %vm1265, %v1196
        %1280 = vst.msk [vmem:[#allocation3 + $0x70] sm:$0xff] %vm1265, %v1198
        %1281 = vst.msk [vmem:[#allocation3 + $0x78] sm:$0xff] %vm1265, %v1200
        %1282 = vst.msk [vmem:[#allocation3 + $0x80] sm:$0xff] %vm1265, %v1202
        %1283 = vst.msk [vmem:[#allocation3 + $0x88] sm:$0xff] %vm1265, %v1204
        %1284 = vst.msk [vmem:[#allocation3 + $0x90] sm:$0xff] %vm1265, %v1206
        %1285 = vst.msk [vmem:[#allocation3 + $0x98] sm:$0xff] %vm1265, %v1208
        %1286 = vst.msk [vmem:[#allocation3 + $0xa0] sm:$0xff] %vm1265, %v1210
        %1287 = vst.msk [vmem:[#allocation3 + $0xa8] sm:$0xff] %vm1265, %v1212
        %1288 = vst.msk [vmem:[#allocation3 + $0xb0] sm:$0xff] %vm1265, %v1214
        %1289 = vst.msk [vmem:[#allocation3 + $0xb8] sm:$0xff] %vm1265, %v1216
        %1290 = vst.msk [vmem:[#allocation3 + $0xc0] sm:$0xff] %vm1265, %v1218
        %1291 = vst.msk [vmem:[#allocation3 + $0xc8] sm:$0xff] %vm1265, %v1220
        %1292 = vst.msk [vmem:[#allocation3 + $0xd0] sm:$0xff] %vm1265, %v1222
        %1293 = vst.msk [vmem:[#allocation3 + $0xd8] sm:$0xff] %vm1265, %v1224
        %1294 = vst.msk [vmem:[#allocation3 + $0xe0] sm:$0xff] %vm1265, %v1226
        %1295 = vst.msk [vmem:[#allocation3 + $0xe8] sm:$0xff] %vm1265, %v1228
        %1296 = vst.msk [vmem:[#allocation3 + $0xf0] sm:$0xff] %vm1265, %v1230
        %1297 = vst.msk [vmem:[#allocation3 + $0xf8] sm:$0xff] %vm1265, %v1232
        %1298 = vrot.lane.b32.xlu0 %v544, 12
        %v1299 = vpop.permute.xlu0 %1298
        %1300 = vrot.lane.b32.xlu0 %v546, 12
        %v1301 = vpop.permute.xlu0 %1300
        %1302 = vrot.lane.b32.xlu0 %v549, 12
        %v1303 = vpop.permute.xlu0 %1302
        %1304 = vrot.lane.b32.xlu0 %v551, 12
        %v1305 = vpop.permute.xlu0 %1304
        %1306 = vrot.lane.b32.xlu0 %v554, 12
        %v1307 = vpop.permute.xlu0 %1306
        %1308 = vrot.lane.b32.xlu0 %v556, 12
        %v1309 = vpop.permute.xlu0 %1308
        %1310 = vrot.lane.b32.xlu0 %v559, 12
        %v1311 = vpop.permute.xlu0 %1310
        %1312 = vrot.lane.b32.xlu0 %v561, 12
        %v1313 = vpop.permute.xlu0 %1312
        %1314 = vrot.lane.b32.xlu0 %v564, 12
        %v1315 = vpop.permute.xlu0 %1314
        %1316 = vrot.lane.b32.xlu0 %v566, 12
        %v1317 = vpop.permute.xlu0 %1316
        %1318 = vrot.lane.b32.xlu0 %v569, 12
        %v1319 = vpop.permute.xlu0 %1318
        %1320 = vrot.lane.b32.xlu0 %v571, 12
        %v1321 = vpop.permute.xlu0 %1320
        %1322 = vrot.lane.b32.xlu0 %v574, 12
        %v1323 = vpop.permute.xlu0 %1322
        %1324 = vrot.lane.b32.xlu0 %v576, 12
        %v1325 = vpop.permute.xlu0 %1324
        %1326 = vrot.lane.b32.xlu0 %v579, 12
        %v1327 = vpop.permute.xlu0 %1326
        %1328 = vrot.lane.b32.xlu0 %v581, 12
        %v1329 = vpop.permute.xlu0 %1328
        %1330 = vrot.lane.b32.xlu0 %v584, 12
        %v1331 = vpop.permute.xlu0 %1330
        %1332 = vrot.lane.b32.xlu0 %v586, 12
        %v1333 = vpop.permute.xlu0 %1332
        %1334 = vrot.lane.b32.xlu0 %v589, 12
        %v1335 = vpop.permute.xlu0 %1334
        %1336 = vrot.lane.b32.xlu0 %v591, 12
        %v1337 = vpop.permute.xlu0 %1336
        %1338 = vrot.lane.b32.xlu0 %v594, 12
        %v1339 = vpop.permute.xlu0 %1338
        %1340 = vrot.lane.b32.xlu0 %v596, 12
        %v1341 = vpop.permute.xlu0 %1340
        %1342 = vrot.lane.b32.xlu0 %v599, 12
        %v1343 = vpop.permute.xlu0 %1342
        %1344 = vrot.lane.b32.xlu0 %v601, 12
        %v1345 = vpop.permute.xlu0 %1344
        %1346 = vrot.lane.b32.xlu0 %v604, 12
        %v1347 = vpop.permute.xlu0 %1346
        %1348 = vrot.lane.b32.xlu0 %v606, 12
        %v1349 = vpop.permute.xlu0 %1348
        %1350 = vrot.lane.b32.xlu0 %v609, 12
        %v1351 = vpop.permute.xlu0 %1350
        %1352 = vrot.lane.b32.xlu0 %v611, 12
        %v1353 = vpop.permute.xlu0 %1352
        %1354 = vrot.lane.b32.xlu0 %v614, 12
        %v1355 = vpop.permute.xlu0 %1354
        %1356 = vrot.lane.b32.xlu0 %v616, 12
        %v1357 = vpop.permute.xlu0 %1356
        %1358 = vrot.lane.b32.xlu0 %v619, 12
        %v1359 = vpop.permute.xlu0 %1358
        %1360 = vrot.lane.b32.xlu0 %v621, 12
        %v1361 = vpop.permute.xlu0 %1360
        %vm1394 = vcmask 195745
        %1395 = vst.msk [vmem:[#allocation3 - $0x1] sm:$0xfe] %vm1394, %v1299
        %vm1396 = vcmask 195744
        %1397 = vst.msk [vmem:[#allocation3 + $0x7] sm:$0xff] %vm1396, %v1301
        %1398 = vst.msk [vmem:[#allocation3 + $0xf] sm:$0xfe] %vm1394, %v1303
        %1399 = vst.msk [vmem:[#allocation3 + $0x17] sm:$0xff] %vm1396, %v1305
        %1400 = vst.msk [vmem:[#allocation3 + $0x1f] sm:$0xfe] %vm1394, %v1307
        %1401 = vst.msk [vmem:[#allocation3 + $0x27] sm:$0xff] %vm1396, %v1309
        %1402 = vst.msk [vmem:[#allocation3 + $0x2f] sm:$0xfe] %vm1394, %v1311
        %1403 = vst.msk [vmem:[#allocation3 + $0x37] sm:$0xff] %vm1396, %v1313
        %1404 = vst.msk [vmem:[#allocation3 + $0x3f] sm:$0xfe] %vm1394, %v1315
        %1405 = vst.msk [vmem:[#allocation3 + $0x47] sm:$0xff] %vm1396, %v1317
        %1406 = vst.msk [vmem:[#allocation3 + $0x4f] sm:$0xfe] %vm1394, %v1319
        %1407 = vst.msk [vmem:[#allocation3 + $0x57] sm:$0xff] %vm1396, %v1321
        %1408 = vst.msk [vmem:[#allocation3 + $0x5f] sm:$0xfe] %vm1394, %v1323
        %1409 = vst.msk [vmem:[#allocation3 + $0x67] sm:$0xff] %vm1396, %v1325
        %1410 = vst.msk [vmem:[#allocation3 + $0x6f] sm:$0xfe] %vm1394, %v1327
        %1411 = vst.msk [vmem:[#allocation3 + $0x77] sm:$0xff] %vm1396, %v1329
        %1412 = vst.msk [vmem:[#allocation3 + $0x7f] sm:$0xfe] %vm1394, %v1331
        %1413 = vst.msk [vmem:[#allocation3 + $0x87] sm:$0xff] %vm1396, %v1333
        %1414 = vst.msk [vmem:[#allocation3 + $0x8f] sm:$0xfe] %vm1394, %v1335
        %1415 = vst.msk [vmem:[#allocation3 + $0x97] sm:$0xff] %vm1396, %v1337
        %1416 = vst.msk [vmem:[#allocation3 + $0x9f] sm:$0xfe] %vm1394, %v1339
        %1417 = vst.msk [vmem:[#allocation3 + $0xa7] sm:$0xff] %vm1396, %v1341
        %1418 = vst.msk [vmem:[#allocation3 + $0xaf] sm:$0xfe] %vm1394, %v1343
        %1419 = vst.msk [vmem:[#allocation3 + $0xb7] sm:$0xff] %vm1396, %v1345
        %1420 = vst.msk [vmem:[#allocation3 + $0xbf] sm:$0xfe] %vm1394, %v1347
        %1421 = vst.msk [vmem:[#allocation3 + $0xc7] sm:$0xff] %vm1396, %v1349
        %1422 = vst.msk [vmem:[#allocation3 + $0xcf] sm:$0xfe] %vm1394, %v1351
        %1423 = vst.msk [vmem:[#allocation3 + $0xd7] sm:$0xff] %vm1396, %v1353
        %1424 = vst.msk [vmem:[#allocation3 + $0xdf] sm:$0xfe] %vm1394, %v1355
        %1425 = vst.msk [vmem:[#allocation3 + $0xe7] sm:$0xff] %vm1396, %v1357
        %1426 = vst.msk [vmem:[#allocation3 + $0xef] sm:$0xfe] %vm1394, %v1359
        %1427 = vst.msk [vmem:[#allocation3 + $0xf7] sm:$0xff] %vm1396, %v1361
        %1428 = vrot.lane.b32.xlu0 %v549, 16
        %v1429 = vpop.permute.xlu0 %1428
        %1430 = vrot.lane.b32.xlu0 %v551, 16
        %v1431 = vpop.permute.xlu0 %1430
        %1432 = vrot.lane.b32.xlu0 %v554, 16
        %v1433 = vpop.permute.xlu0 %1432
        %1434 = vrot.lane.b32.xlu0 %v556, 16
        %v1435 = vpop.permute.xlu0 %1434
        %1436 = vrot.lane.b32.xlu0 %v559, 16
        %v1437 = vpop.permute.xlu0 %1436
        %1438 = vrot.lane.b32.xlu0 %v561, 16
        %v1439 = vpop.permute.xlu0 %1438
        %1440 = vrot.lane.b32.xlu0 %v564, 16
        %v1441 = vpop.permute.xlu0 %1440
        %1442 = vrot.lane.b32.xlu0 %v566, 16
        %v1443 = vpop.permute.xlu0 %1442
        %1444 = vrot.lane.b32.xlu0 %v569, 16
        %v1445 = vpop.permute.xlu0 %1444
        %1446 = vrot.lane.b32.xlu0 %v571, 16
        %v1447 = vpop.permute.xlu0 %1446
        %1448 = vrot.lane.b32.xlu0 %v574, 16
        %v1449 = vpop.permute.xlu0 %1448
        %1450 = vrot.lane.b32.xlu0 %v576, 16
        %v1451 = vpop.permute.xlu0 %1450
        %1452 = vrot.lane.b32.xlu0 %v579, 16
        %v1453 = vpop.permute.xlu0 %1452
        %1454 = vrot.lane.b32.xlu0 %v581, 16
        %v1455 = vpop.permute.xlu0 %1454
        %1456 = vrot.lane.b32.xlu0 %v584, 16
        %v1457 = vpop.permute.xlu0 %1456
        %1458 = vrot.lane.b32.xlu0 %v586, 16
        %v1459 = vpop.permute.xlu0 %1458
        %1460 = vrot.lane.b32.xlu0 %v589, 16
        %v1461 = vpop.permute.xlu0 %1460
        %1462 = vrot.lane.b32.xlu0 %v591, 16
        %v1463 = vpop.permute.xlu0 %1462
        %1464 = vrot.lane.b32.xlu0 %v594, 16
        %v1465 = vpop.permute.xlu0 %1464
        %1466 = vrot.lane.b32.xlu0 %v596, 16
        %v1467 = vpop.permute.xlu0 %1466
        %1468 = vrot.lane.b32.xlu0 %v599, 16
        %v1469 = vpop.permute.xlu0 %1468
        %1470 = vrot.lane.b32.xlu0 %v601, 16
        %v1471 = vpop.permute.xlu0 %1470
        %1472 = vrot.lane.b32.xlu0 %v604, 16
        %v1473 = vpop.permute.xlu0 %1472
        %1474 = vrot.lane.b32.xlu0 %v606, 16
        %v1475 = vpop.permute.xlu0 %1474
        %1476 = vrot.lane.b32.xlu0 %v609, 16
        %v1477 = vpop.permute.xlu0 %1476
        %1478 = vrot.lane.b32.xlu0 %v611, 16
        %v1479 = vpop.permute.xlu0 %1478
        %1480 = vrot.lane.b32.xlu0 %v614, 16
        %v1481 = vpop.permute.xlu0 %1480
        %1482 = vrot.lane.b32.xlu0 %v616, 16
        %v1483 = vpop.permute.xlu0 %1482
        %1484 = vrot.lane.b32.xlu0 %v619, 16
        %v1485 = vpop.permute.xlu0 %1484
        %1486 = vrot.lane.b32.xlu0 %v621, 16
        %v1487 = vpop.permute.xlu0 %1486
        %vm1518 = vcmask 228544
        %1519 = vst.msk [vmem:[#allocation3 + $0x1] sm:$0xff] %vm1518, %v1429
        %vm1520 = vcmask 227520
        %1521 = vst.msk [vmem:[#allocation3 + $0x9] sm:$0x7f] %vm1520, %v1431
        %1522 = vst.msk [vmem:[#allocation3 + $0x11] sm:$0xff] %vm1518, %v1433
        %1523 = vst.msk [vmem:[#allocation3 + $0x19] sm:$0x7f] %vm1520, %v1435
        %1524 = vst.msk [vmem:[#allocation3 + $0x21] sm:$0xff] %vm1518, %v1437
        %1525 = vst.msk [vmem:[#allocation3 + $0x29] sm:$0x7f] %vm1520, %v1439
        %1526 = vst.msk [vmem:[#allocation3 + $0x31] sm:$0xff] %vm1518, %v1441
        %1527 = vst.msk [vmem:[#allocation3 + $0x39] sm:$0x7f] %vm1520, %v1443
        %1528 = vst.msk [vmem:[#allocation3 + $0x41] sm:$0xff] %vm1518, %v1445
        %1529 = vst.msk [vmem:[#allocation3 + $0x49] sm:$0x7f] %vm1520, %v1447
        %1530 = vst.msk [vmem:[#allocation3 + $0x51] sm:$0xff] %vm1518, %v1449
        %1531 = vst.msk [vmem:[#allocation3 + $0x59] sm:$0x7f] %vm1520, %v1451
        %1532 = vst.msk [vmem:[#allocation3 + $0x61] sm:$0xff] %vm1518, %v1453
        %1533 = vst.msk [vmem:[#allocation3 + $0x69] sm:$0x7f] %vm1520, %v1455
        %1534 = vst.msk [vmem:[#allocation3 + $0x71] sm:$0xff] %vm1518, %v1457
        %1535 = vst.msk [vmem:[#allocation3 + $0x79] sm:$0x7f] %vm1520, %v1459
        %1536 = vst.msk [vmem:[#allocation3 + $0x81] sm:$0xff] %vm1518, %v1461
        %1537 = vst.msk [vmem:[#allocation3 + $0x89] sm:$0x7f] %vm1520, %v1463
        %1538 = vst.msk [vmem:[#allocation3 + $0x91] sm:$0xff] %vm1518, %v1465
        %1539 = vst.msk [vmem:[#allocation3 + $0x99] sm:$0x7f] %vm1520, %v1467
        %1540 = vst.msk [vmem:[#allocation3 + $0xa1] sm:$0xff] %vm1518, %v1469
        %1541 = vst.msk [vmem:[#allocation3 + $0xa9] sm:$0x7f] %vm1520, %v1471
        %1542 = vst.msk [vmem:[#allocation3 + $0xb1] sm:$0xff] %vm1518, %v1473
        %1543 = vst.msk [vmem:[#allocation3 + $0xb9] sm:$0x7f] %vm1520, %v1475
        %1544 = vst.msk [vmem:[#allocation3 + $0xc1] sm:$0xff] %vm1518, %v1477
        %1545 = vst.msk [vmem:[#allocation3 + $0xc9] sm:$0x7f] %vm1520, %v1479
        %1546 = vst.msk [vmem:[#allocation3 + $0xd1] sm:$0xff] %vm1518, %v1481
        %1547 = vst.msk [vmem:[#allocation3 + $0xd9] sm:$0x7f] %vm1520, %v1483
        %1548 = vst.msk [vmem:[#allocation3 + $0xe1] sm:$0xff] %vm1518, %v1485
        %1549 = vst.msk [vmem:[#allocation3 + $0xe9] sm:$0x7f] %vm1520, %v1487
        %1550 = vrot.lane.b32.xlu0 %v549, 20
        %v1551 = vpop.permute.xlu0 %1550
        %1552 = vrot.lane.b32.xlu0 %v551, 20
        %v1553 = vpop.permute.xlu0 %1552
        %1554 = vrot.lane.b32.xlu0 %v554, 20
        %v1555 = vpop.permute.xlu0 %1554
        %1556 = vrot.lane.b32.xlu0 %v556, 20
        %v1557 = vpop.permute.xlu0 %1556
        %1558 = vrot.lane.b32.xlu0 %v559, 20
        %v1559 = vpop.permute.xlu0 %1558
        %1560 = vrot.lane.b32.xlu0 %v561, 20
        %v1561 = vpop.permute.xlu0 %1560
        %1562 = vrot.lane.b32.xlu0 %v564, 20
        %v1563 = vpop.permute.xlu0 %1562
        %1564 = vrot.lane.b32.xlu0 %v566, 20
        %v1565 = vpop.permute.xlu0 %1564
        %1566 = vrot.lane.b32.xlu0 %v569, 20
        %v1567 = vpop.permute.xlu0 %1566
        %1568 = vrot.lane.b32.xlu0 %v571, 20
        %v1569 = vpop.permute.xlu0 %1568
        %1570 = vrot.lane.b32.xlu0 %v574, 20
        %v1571 = vpop.permute.xlu0 %1570
        %1572 = vrot.lane.b32.xlu0 %v576, 20
        %v1573 = vpop.permute.xlu0 %1572
        %1574 = vrot.lane.b32.xlu0 %v579, 20
        %v1575 = vpop.permute.xlu0 %1574
        %1576 = vrot.lane.b32.xlu0 %v581, 20
        %v1577 = vpop.permute.xlu0 %1576
        %1578 = vrot.lane.b32.xlu0 %v584, 20
        %v1579 = vpop.permute.xlu0 %1578
        %1580 = vrot.lane.b32.xlu0 %v586, 20
        %v1581 = vpop.permute.xlu0 %1580
        %1582 = vrot.lane.b32.xlu0 %v589, 20
        %v1583 = vpop.permute.xlu0 %1582
        %1584 = vrot.lane.b32.xlu0 %v591, 20
        %v1585 = vpop.permute.xlu0 %1584
        %1586 = vrot.lane.b32.xlu0 %v594, 20
        %v1587 = vpop.permute.xlu0 %1586
        %1588 = vrot.lane.b32.xlu0 %v596, 20
        %v1589 = vpop.permute.xlu0 %1588
        %1590 = vrot.lane.b32.xlu0 %v599, 20
        %v1591 = vpop.permute.xlu0 %1590
        %1592 = vrot.lane.b32.xlu0 %v601, 20
        %v1593 = vpop.permute.xlu0 %1592
        %1594 = vrot.lane.b32.xlu0 %v604, 20
        %v1595 = vpop.permute.xlu0 %1594
        %1596 = vrot.lane.b32.xlu0 %v606, 20
        %v1597 = vpop.permute.xlu0 %1596
        %1598 = vrot.lane.b32.xlu0 %v609, 20
        %v1599 = vpop.permute.xlu0 %1598
        %1600 = vrot.lane.b32.xlu0 %v611, 20
        %v1601 = vpop.permute.xlu0 %1600
        %1602 = vrot.lane.b32.xlu0 %v614, 20
        %v1603 = vpop.permute.xlu0 %1602
        %1604 = vrot.lane.b32.xlu0 %v616, 20
        %v1605 = vpop.permute.xlu0 %1604
        %1606 = vrot.lane.b32.xlu0 %v619, 20
        %v1607 = vpop.permute.xlu0 %1606
        %1608 = vrot.lane.b32.xlu0 %v621, 20
        %v1609 = vpop.permute.xlu0 %1608
        %vm1640 = vcmask 261344
        %1641 = vst.msk [vmem:[#allocation3] sm:$0xff] %vm1640, %v1551
        %1642 = vst.msk [vmem:[#allocation3 + $0x8] sm:$0xff] %vm1640, %v1553
        %1643 = vst.msk [vmem:[#allocation3 + $0x10] sm:$0xff] %vm1640, %v1555
        %1644 = vst.msk [vmem:[#allocation3 + $0x18] sm:$0xff] %vm1640, %v1557
        %1645 = vst.msk [vmem:[#allocation3 + $0x20] sm:$0xff] %vm1640, %v1559
        %1646 = vst.msk [vmem:[#allocation3 + $0x28] sm:$0xff] %vm1640, %v1561
        %1647 = vst.msk [vmem:[#allocation3 + $0x30] sm:$0xff] %vm1640, %v1563
        %1648 = vst.msk [vmem:[#allocation3 + $0x38] sm:$0xff] %vm1640, %v1565
        %1649 = vst.msk [vmem:[#allocation3 + $0x40] sm:$0xff] %vm1640, %v1567
        %1650 = vst.msk [vmem:[#allocation3 + $0x48] sm:$0xff] %vm1640, %v1569
        %1651 = vst.msk [vmem:[#allocation3 + $0x50] sm:$0xff] %vm1640, %v1571
        %1652 = vst.msk [vmem:[#allocation3 + $0x58] sm:$0xff] %vm1640, %v1573
        %1653 = vst.msk [vmem:[#allocation3 + $0x60] sm:$0xff] %vm1640, %v1575
        %1654 = vst.msk [vmem:[#allocation3 + $0x68] sm:$0xff] %vm1640, %v1577
        %1655 = vst.msk [vmem:[#allocation3 + $0x70] sm:$0xff] %vm1640, %v1579
        %1656 = vst.msk [vmem:[#allocation3 + $0x78] sm:$0xff] %vm1640, %v1581
        %1657 = vst.msk [vmem:[#allocation3 + $0x80] sm:$0xff] %vm1640, %v1583
        %1658 = vst.msk [vmem:[#allocation3 + $0x88] sm:$0xff] %vm1640, %v1585
        %1659 = vst.msk [vmem:[#allocation3 + $0x90] sm:$0xff] %vm1640, %v1587
        %1660 = vst.msk [vmem:[#allocation3 + $0x98] sm:$0xff] %vm1640, %v1589
        %1661 = vst.msk [vmem:[#allocation3 + $0xa0] sm:$0xff] %vm1640, %v1591
        %1662 = vst.msk [vmem:[#allocation3 + $0xa8] sm:$0xff] %vm1640, %v1593
        %1663 = vst.msk [vmem:[#allocation3 + $0xb0] sm:$0xff] %vm1640, %v1595
        %1664 = vst.msk [vmem:[#allocation3 + $0xb8] sm:$0xff] %vm1640, %v1597
        %1665 = vst.msk [vmem:[#allocation3 + $0xc0] sm:$0xff] %vm1640, %v1599
        %1666 = vst.msk [vmem:[#allocation3 + $0xc8] sm:$0xff] %vm1640, %v1601
        %1667 = vst.msk [vmem:[#allocation3 + $0xd0] sm:$0xff] %vm1640, %v1603
        %1668 = vst.msk [vmem:[#allocation3 + $0xd8] sm:$0xff] %vm1640, %v1605
        %1669 = vst.msk [vmem:[#allocation3 + $0xe0] sm:$0xff] %vm1640, %v1607
        %1670 = vst.msk [vmem:[#allocation3 + $0xe8] sm:$0xff] %vm1640, %v1609
        %1671 = vrot.lane.b32.xlu0 %v549, 24
        %v1672 = vpop.permute.xlu0 %1671
        %1673 = vrot.lane.b32.xlu0 %v551, 24
        %v1674 = vpop.permute.xlu0 %1673
        %1675 = vrot.lane.b32.xlu0 %v554, 24
        %v1676 = vpop.permute.xlu0 %1675
        %1677 = vrot.lane.b32.xlu0 %v556, 24
        %v1678 = vpop.permute.xlu0 %1677
        %1679 = vrot.lane.b32.xlu0 %v559, 24
        %v1680 = vpop.permute.xlu0 %1679
        %1681 = vrot.lane.b32.xlu0 %v561, 24
        %v1682 = vpop.permute.xlu0 %1681
        %1683 = vrot.lane.b32.xlu0 %v564, 24
        %v1684 = vpop.permute.xlu0 %1683
        %1685 = vrot.lane.b32.xlu0 %v566, 24
        %v1686 = vpop.permute.xlu0 %1685
        %1687 = vrot.lane.b32.xlu0 %v569, 24
        %v1688 = vpop.permute.xlu0 %1687
        %1689 = vrot.lane.b32.xlu0 %v571, 24
        %v1690 = vpop.permute.xlu0 %1689
        %1691 = vrot.lane.b32.xlu0 %v574, 24
        %v1692 = vpop.permute.xlu0 %1691
        %1693 = vrot.lane.b32.xlu0 %v576, 24
        %v1694 = vpop.permute.xlu0 %1693
        %1695 = vrot.lane.b32.xlu0 %v579, 24
        %v1696 = vpop.permute.xlu0 %1695
        %1697 = vrot.lane.b32.xlu0 %v581, 24
        %v1698 = vpop.permute.xlu0 %1697
        %1699 = vrot.lane.b32.xlu0 %v584, 24
        %v1700 = vpop.permute.xlu0 %1699
        %1701 = vrot.lane.b32.xlu0 %v586, 24
        %v1702 = vpop.permute.xlu0 %1701
        %1703 = vrot.lane.b32.xlu0 %v589, 24
        %v1704 = vpop.permute.xlu0 %1703
        %1705 = vrot.lane.b32.xlu0 %v591, 24
        %v1706 = vpop.permute.xlu0 %1705
        %1707 = vrot.lane.b32.xlu0 %v594, 24
        %v1708 = vpop.permute.xlu0 %1707
        %1709 = vrot.lane.b32.xlu0 %v596, 24
        %v1710 = vpop.permute.xlu0 %1709
        %1711 = vrot.lane.b32.xlu0 %v599, 24
        %v1712 = vpop.permute.xlu0 %1711
        %1713 = vrot.lane.b32.xlu0 %v601, 24
        %v1714 = vpop.permute.xlu0 %1713
        %1715 = vrot.lane.b32.xlu0 %v604, 24
        %v1716 = vpop.permute.xlu0 %1715
        %1717 = vrot.lane.b32.xlu0 %v606, 24
        %v1718 = vpop.permute.xlu0 %1717
        %1719 = vrot.lane.b32.xlu0 %v609, 24
        %v1720 = vpop.permute.xlu0 %1719
        %1721 = vrot.lane.b32.xlu0 %v611, 24
        %v1722 = vpop.permute.xlu0 %1721
        %1723 = vrot.lane.b32.xlu0 %v614, 24
        %v1724 = vpop.permute.xlu0 %1723
        %1725 = vrot.lane.b32.xlu0 %v616, 24
        %v1726 = vpop.permute.xlu0 %1725
        %1727 = vrot.lane.b32.xlu0 %v619, 24
        %v1728 = vpop.permute.xlu0 %1727
        %1729 = vrot.lane.b32.xlu0 %v621, 24
        %v1730 = vpop.permute.xlu0 %1729
        %vm1761 = vcmask 294145
        %1762 = vst.msk [vmem:[#allocation3 - $0x1] sm:$0xfe] %vm1761, %v1672
        %vm1763 = vcmask 294144
        %1764 = vst.msk [vmem:[#allocation3 + $0x7] sm:$0xff] %vm1763, %v1674
        %1765 = vst.msk [vmem:[#allocation3 + $0xf] sm:$0xfe] %vm1761, %v1676
        %1766 = vst.msk [vmem:[#allocation3 + $0x17] sm:$0xff] %vm1763, %v1678
        %1767 = vst.msk [vmem:[#allocation3 + $0x1f] sm:$0xfe] %vm1761, %v1680
        %1768 = vst.msk [vmem:[#allocation3 + $0x27] sm:$0xff] %vm1763, %v1682
        %1769 = vst.msk [vmem:[#allocation3 + $0x2f] sm:$0xfe] %vm1761, %v1684
        %1770 = vst.msk [vmem:[#allocation3 + $0x37] sm:$0xff] %vm1763, %v1686
        %1771 = vst.msk [vmem:[#allocation3 + $0x3f] sm:$0xfe] %vm1761, %v1688
        %1772 = vst.msk [vmem:[#allocation3 + $0x47] sm:$0xff] %vm1763, %v1690
        %1773 = vst.msk [vmem:[#allocation3 + $0x4f] sm:$0xfe] %vm1761, %v1692
        %1774 = vst.msk [vmem:[#allocation3 + $0x57] sm:$0xff] %vm1763, %v1694
        %1775 = vst.msk [vmem:[#allocation3 + $0x5f] sm:$0xfe] %vm1761, %v1696
        %1776 = vst.msk [vmem:[#allocation3 + $0x67] sm:$0xff] %vm1763, %v1698
        %1777 = vst.msk [vmem:[#allocation3 + $0x6f] sm:$0xfe] %vm1761, %v1700
        %1778 = vst.msk [vmem:[#allocation3 + $0x77] sm:$0xff] %vm1763, %v1702
        %1779 = vst.msk [vmem:[#allocation3 + $0x7f] sm:$0xfe] %vm1761, %v1704
        %1780 = vst.msk [vmem:[#allocation3 + $0x87] sm:$0xff] %vm1763, %v1706
        %1781 = vst.msk [vmem:[#allocation3 + $0x8f] sm:$0xfe] %vm1761, %v1708
        %1782 = vst.msk [vmem:[#allocation3 + $0x97] sm:$0xff] %vm1763, %v1710
        %1783 = vst.msk [vmem:[#allocation3 + $0x9f] sm:$0xfe] %vm1761, %v1712
        %1784 = vst.msk [vmem:[#allocation3 + $0xa7] sm:$0xff] %vm1763, %v1714
        %1785 = vst.msk [vmem:[#allocation3 + $0xaf] sm:$0xfe] %vm1761, %v1716
        %1786 = vst.msk [vmem:[#allocation3 + $0xb7] sm:$0xff] %vm1763, %v1718
        %1787 = vst.msk [vmem:[#allocation3 + $0xbf] sm:$0xfe] %vm1761, %v1720
        %1788 = vst.msk [vmem:[#allocation3 + $0xc7] sm:$0xff] %vm1763, %v1722
        %1789 = vst.msk [vmem:[#allocation3 + $0xcf] sm:$0xfe] %vm1761, %v1724
        %1790 = vst.msk [vmem:[#allocation3 + $0xd7] sm:$0xff] %vm1763, %v1726
        %1791 = vst.msk [vmem:[#allocation3 + $0xdf] sm:$0xfe] %vm1761, %v1728
        %1792 = vst.msk [vmem:[#allocation3 + $0xe7] sm:$0xff] %vm1763, %v1730
        %vm1793 = vcmask 392480
        %1794 = vst.msk [vmem:[#allocation3] sm:$0xff] %vm1793, 0.0
        %1795 = vst.msk [vmem:[#allocation3 + $0x8] sm:$0xff] %vm1793, 0.0
        %vm1796 = vcmask 589280
        %1797 = vst.msk [vmem:[%s626] sm:$0xff] %vm1796, 0.0
        %1798 = vst.msk [vmem:[%s626 + $0x8] sm:$0xff] %vm1796, 0.0
        %vm1799 = vcmask 319776
        %1800 = vst.msk [vmem:[#allocation3] sm:$0x1] %vm1799, 0.0
        %1801 = vst.msk [vmem:[#allocation3 + $0x10] sm:$0x1] %vm1799, 0.0
        %1802 = vst.msk [vmem:[#allocation3 + $0x20] sm:$0x1] %vm1799, 0.0
        %1803 = vst.msk [vmem:[#allocation3 + $0x30] sm:$0x1] %vm1799, 0.0
        %1804 = vst.msk [vmem:[#allocation3 + $0x40] sm:$0x1] %vm1799, 0.0
        %1805 = vst.msk [vmem:[#allocation3 + $0x50] sm:$0x1] %vm1799, 0.0
        %1806 = vst.msk [vmem:[#allocation3 + $0x60] sm:$0x1] %vm1799, 0.0
        %1807 = vst.msk [vmem:[#allocation3 + $0x70] sm:$0x1] %vm1799, 0.0
        %1808 = vst.msk [vmem:[#allocation3 + $0x80] sm:$0x1] %vm1799, 0.0
        %1809 = vst.msk [vmem:[#allocation3 + $0x90] sm:$0x1] %vm1799, 0.0
        %1810 = vst.msk [vmem:[#allocation3 + $0xa0] sm:$0x1] %vm1799, 0.0
        %1811 = vst.msk [vmem:[#allocation3 + $0xb0] sm:$0x1] %vm1799, 0.0
        %1812 = vst.msk [vmem:[#allocation3 + $0xc0] sm:$0x1] %vm1799, 0.0
        %1813 = vst.msk [vmem:[#allocation3 + $0xd0] sm:$0x1] %vm1799, 0.0
        %1814 = vst.msk [vmem:[#allocation3 + $0xe0] sm:$0x1] %vm1799, 0.0
        %1815 = vst.msk [vmem:[#allocation3 + $0xf0] sm:$0x1] %vm1799, 0.0
        %vm1816 = vcmask 418176
        %1817 = vst.msk [vmem:[#allocation3] sm:$0x1] %vm1816, 0.0
        %1818 = vst.msk [vmem:[#allocation3 + $0x10] sm:$0x1] %vm1816, 0.0
        %1819 = vst.msk [vmem:[#allocation3 + $0x20] sm:$0x1] %vm1816, 0.0
        %1820 = vst.msk [vmem:[#allocation3 + $0x30] sm:$0x1] %vm1816, 0.0
        %1821 = vst.msk [vmem:[#allocation3 + $0x40] sm:$0x1] %vm1816, 0.0
        %1822 = vst.msk [vmem:[#allocation3 + $0x50] sm:$0x1] %vm1816, 0.0
        %1823 = vst.msk [vmem:[#allocation3 + $0x60] sm:$0x1] %vm1816, 0.0
        %1824 = vst.msk [vmem:[#allocation3 + $0x70] sm:$0x1] %vm1816, 0.0
        %1825 = vst.msk [vmem:[#allocation3 + $0x80] sm:$0x1] %vm1816, 0.0
        %1826 = vst.msk [vmem:[#allocation3 + $0x90] sm:$0x1] %vm1816, 0.0
        %1827 = vst.msk [vmem:[#allocation3 + $0xa0] sm:$0x1] %vm1816, 0.0
        %1828 = vst.msk [vmem:[#allocation3 + $0xb0] sm:$0x1] %vm1816, 0.0
        %1829 = vst.msk [vmem:[#allocation3 + $0xc0] sm:$0x1] %vm1816, 0.0
        %1830 = vst.msk [vmem:[#allocation3 + $0xd0] sm:$0x1] %vm1816, 0.0
        %1831 = vst.msk [vmem:[#allocation3 + $0xe0] sm:$0x1] %vm1816, 0.0
        %1832 = vst.msk [vmem:[#allocation3 + $0xf0] sm:$0x1] %vm1816, 0.0
        %vm1833 = vcmask 516576
        %1834 = vst.msk [vmem:[#allocation3] sm:$0x1] %vm1833, 0.0
        %1835 = vst.msk [vmem:[#allocation3 + $0x10] sm:$0x1] %vm1833, 0.0
        %1836 = vst.msk [vmem:[#allocation3 + $0x20] sm:$0x1] %vm1833, 0.0
        %1837 = vst.msk [vmem:[#allocation3 + $0x30] sm:$0x1] %vm1833, 0.0
        %1838 = vst.msk [vmem:[#allocation3 + $0x40] sm:$0x1] %vm1833, 0.0
        %1839 = vst.msk [vmem:[#allocation3 + $0x50] sm:$0x1] %vm1833, 0.0
        %1840 = vst.msk [vmem:[#allocation3 + $0x60] sm:$0x1] %vm1833, 0.0
        %1841 = vst.msk [vmem:[#allocation3 + $0x70] sm:$0x1] %vm1833, 0.0
        %1842 = vst.msk [vmem:[#allocation3 + $0x80] sm:$0x1] %vm1833, 0.0
        %1843 = vst.msk [vmem:[#allocation3 + $0x90] sm:$0x1] %vm1833, 0.0
        %1844 = vst.msk [vmem:[#allocation3 + $0xa0] sm:$0x1] %vm1833, 0.0
        %1845 = vst.msk [vmem:[#allocation3 + $0xb0] sm:$0x1] %vm1833, 0.0
        %1846 = vst.msk [vmem:[#allocation3 + $0xc0] sm:$0x1] %vm1833, 0.0
        %1847 = vst.msk [vmem:[#allocation3 + $0xd0] sm:$0x1] %vm1833, 0.0
        %1848 = vst.msk [vmem:[#allocation3 + $0xe0] sm:$0x1] %vm1833, 0.0
        %1849 = vst.msk [vmem:[#allocation3 + $0xf0] sm:$0x1] %vm1833, 0.0
        %vm1850 = vcmask 385376
        %1851 = vst.msk [vmem:[#allocation3 + $0xf] sm:$0x1] %vm1850, 0.0
        %1852 = vst.msk [vmem:[#allocation3 + $0x1f] sm:$0x1] %vm1850, 0.0
        %1853 = vst.msk [vmem:[#allocation3 + $0x2f] sm:$0x1] %vm1850, 0.0
        %1854 = vst.msk [vmem:[#allocation3 + $0x3f] sm:$0x1] %vm1850, 0.0
        %1855 = vst.msk [vmem:[#allocation3 + $0x4f] sm:$0x1] %vm1850, 0.0
        %1856 = vst.msk [vmem:[#allocation3 + $0x5f] sm:$0x1] %vm1850, 0.0
        %1857 = vst.msk [vmem:[#allocation3 + $0x6f] sm:$0x1] %vm1850, 0.0
        %1858 = vst.msk [vmem:[#allocation3 + $0x7f] sm:$0x1] %vm1850, 0.0
        %1859 = vst.msk [vmem:[#allocation3 + $0x8f] sm:$0x1] %vm1850, 0.0
        %1860 = vst.msk [vmem:[#allocation3 + $0x9f] sm:$0x1] %vm1850, 0.0
        %1861 = vst.msk [vmem:[#allocation3 + $0xaf] sm:$0x1] %vm1850, 0.0
        %1862 = vst.msk [vmem:[#allocation3 + $0xbf] sm:$0x1] %vm1850, 0.0
        %1863 = vst.msk [vmem:[#allocation3 + $0xcf] sm:$0x1] %vm1850, 0.0
        %1864 = vst.msk [vmem:[#allocation3 + $0xdf] sm:$0x1] %vm1850, 0.0
        %1865 = vst.msk [vmem:[#allocation3 + $0xef] sm:$0x1] %vm1850, 0.0
        %1866 = vst.msk [vmem:[#allocation3 + $0xff] sm:$0x1] %vm1850, 0.0
        %vm1867 = vcmask 483776
        %1868 = vst.msk [vmem:[#allocation3 + $0xf] sm:$0x1] %vm1867, 0.0
        %1869 = vst.msk [vmem:[#allocation3 + $0x1f] sm:$0x1] %vm1867, 0.0
        %1870 = vst.msk [vmem:[#allocation3 + $0x2f] sm:$0x1] %vm1867, 0.0
        %1871 = vst.msk [vmem:[#allocation3 + $0x3f] sm:$0x1] %vm1867, 0.0
        %1872 = vst.msk [vmem:[#allocation3 + $0x4f] sm:$0x1] %vm1867, 0.0
        %1873 = vst.msk [vmem:[#allocation3 + $0x5f] sm:$0x1] %vm1867, 0.0
        %1874 = vst.msk [vmem:[#allocation3 + $0x6f] sm:$0x1] %vm1867, 0.0
        %1875 = vst.msk [vmem:[#allocation3 + $0x7f] sm:$0x1] %vm1867, 0.0
        %1876 = vst.msk [vmem:[#allocation3 + $0x8f] sm:$0x1] %vm1867, 0.0
        %1877 = vst.msk [vmem:[#allocation3 + $0x9f] sm:$0x1] %vm1867, 0.0
        %1878 = vst.msk [vmem:[#allocation3 + $0xaf] sm:$0x1] %vm1867, 0.0
        %1879 = vst.msk [vmem:[#allocation3 + $0xbf] sm:$0x1] %vm1867, 0.0
        %1880 = vst.msk [vmem:[#allocation3 + $0xcf] sm:$0x1] %vm1867, 0.0
        %1881 = vst.msk [vmem:[#allocation3 + $0xdf] sm:$0x1] %vm1867, 0.0
        %1882 = vst.msk [vmem:[#allocation3 + $0xef] sm:$0x1] %vm1867, 0.0
        %1883 = vst.msk [vmem:[#allocation3 + $0xff] sm:$0x1] %vm1867, 0.0
        %vm1884 = vcmask 582176
        %1885 = vst.msk [vmem:[#allocation3 + $0xf] sm:$0x1] %vm1884, 0.0
        %1886 = vst.msk [vmem:[#allocation3 + $0x1f] sm:$0x1] %vm1884, 0.0
        %1887 = vst.msk [vmem:[#allocation3 + $0x2f] sm:$0x1] %vm1884, 0.0
        %1888 = vst.msk [vmem:[#allocation3 + $0x3f] sm:$0x1] %vm1884, 0.0
        %1889 = vst.msk [vmem:[#allocation3 + $0x4f] sm:$0x1] %vm1884, 0.0
        %1890 = vst.msk [vmem:[#allocation3 + $0x5f] sm:$0x1] %vm1884, 0.0
        %1891 = vst.msk [vmem:[#allocation3 + $0x6f] sm:$0x1] %vm1884, 0.0
        %1892 = vst.msk [vmem:[#allocation3 + $0x7f] sm:$0x1] %vm1884, 0.0
        %1893 = vst.msk [vmem:[#allocation3 + $0x8f] sm:$0x1] %vm1884, 0.0
        %1894 = vst.msk [vmem:[#allocation3 + $0x9f] sm:$0x1] %vm1884, 0.0
        %1895 = vst.msk [vmem:[#allocation3 + $0xaf] sm:$0x1] %vm1884, 0.0
        %1896 = vst.msk [vmem:[#allocation3 + $0xbf] sm:$0x1] %vm1884, 0.0
        %1897 = vst.msk [vmem:[#allocation3 + $0xcf] sm:$0x1] %vm1884, 0.0
        %1898 = vst.msk [vmem:[#allocation3 + $0xdf] sm:$0x1] %vm1884, 0.0
        %1899 = vst.msk [vmem:[#allocation3 + $0xef] sm:$0x1] %vm1884, 0.0
        %1900 = vst.msk [vmem:[#allocation3 + $0xff] sm:$0x1] %vm1884, 0.0
        %1901 = vrot.lane.b32.xlu0 %v544, 24
        %v1902 = vpop.permute.xlu0 %1901
        %1903 = vrot.lane.b32.xlu0 %v546, 24
        %v1904 = vpop.permute.xlu0 %1903
        %vm1907 = vcmask 326944
        %1908 = vst.msk [vmem:[%s852 + $0x1] sm:$0xff] %vm1907, %v1902
        %vm1909 = vcmask 325920
        %1910 = vst.msk [vmem:[%s852 + $0x9] sm:$0x7f] %vm1909, %v1904
        %1911 = vst.msk [vmem:[%s852 + $0x11] sm:$0xff] %vm1907, %v1672
        %1912 = vst.msk [vmem:[%s852 + $0x19] sm:$0x7f] %vm1909, %v1674
        %1913 = vst.msk [vmem:[%s852 + $0x21] sm:$0xff] %vm1907, %v1676
        %1914 = vst.msk [vmem:[%s852 + $0x29] sm:$0x7f] %vm1909, %v1678
        %1915 = vst.msk [vmem:[%s852 + $0x31] sm:$0xff] %vm1907, %v1680
        %1916 = vst.msk [vmem:[%s852 + $0x39] sm:$0x7f] %vm1909, %v1682
        %1917 = vst.msk [vmem:[%s852 + $0x41] sm:$0xff] %vm1907, %v1684
        %1918 = vst.msk [vmem:[%s852 + $0x49] sm:$0x7f] %vm1909, %v1686
        %1919 = vst.msk [vmem:[%s852 + $0x51] sm:$0xff] %vm1907, %v1688
        %1920 = vst.msk [vmem:[%s852 + $0x59] sm:$0x7f] %vm1909, %v1690
        %1921 = vst.msk [vmem:[%s852 + $0x61] sm:$0xff] %vm1907, %v1692
        %1922 = vst.msk [vmem:[%s852 + $0x69] sm:$0x7f] %vm1909, %v1694
        %1923 = vst.msk [vmem:[%s852 + $0x71] sm:$0xff] %vm1907, %v1696
        %1924 = vst.msk [vmem:[%s852 + $0x79] sm:$0x7f] %vm1909, %v1698
        %1925 = vst.msk [vmem:[%s852 + $0x81] sm:$0xff] %vm1907, %v1700
        %1926 = vst.msk [vmem:[%s852 + $0x89] sm:$0x7f] %vm1909, %v1702
        %1927 = vst.msk [vmem:[%s852 + $0x91] sm:$0xff] %vm1907, %v1704
        %1928 = vst.msk [vmem:[%s852 + $0x99] sm:$0x7f] %vm1909, %v1706
        %1929 = vst.msk [vmem:[%s852 + $0xa1] sm:$0xff] %vm1907, %v1708
        %1930 = vst.msk [vmem:[%s852 + $0xa9] sm:$0x7f] %vm1909, %v1710
        %1931 = vst.msk [vmem:[%s852 + $0xb1] sm:$0xff] %vm1907, %v1712
        %1932 = vst.msk [vmem:[%s852 + $0xb9] sm:$0x7f] %vm1909, %v1714
        %1933 = vst.msk [vmem:[%s852 + $0xc1] sm:$0xff] %vm1907, %v1716
        %1934 = vst.msk [vmem:[%s852 + $0xc9] sm:$0x7f] %vm1909, %v1718
        %1935 = vst.msk [vmem:[%s852 + $0xd1] sm:$0xff] %vm1907, %v1720
        %1936 = vst.msk [vmem:[%s852 + $0xd9] sm:$0x7f] %vm1909, %v1722
        %1937 = vst.msk [vmem:[%s852 + $0xe1] sm:$0xff] %vm1907, %v1724
        %1938 = vst.msk [vmem:[%s852 + $0xe9] sm:$0x7f] %vm1909, %v1726
        %1939 = vrot.lane.b32.xlu0 %v544, 28
        %v1940 = vpop.permute.xlu0 %1939
        %1941 = vrot.lane.b32.xlu0 %v546, 28
        %v1942 = vpop.permute.xlu0 %1941
        %1943 = vrot.lane.b32.xlu0 %v549, 28
        %v1944 = vpop.permute.xlu0 %1943
        %1945 = vrot.lane.b32.xlu0 %v551, 28
        %v1946 = vpop.permute.xlu0 %1945
        %1947 = vrot.lane.b32.xlu0 %v554, 28
        %v1948 = vpop.permute.xlu0 %1947
        %1949 = vrot.lane.b32.xlu0 %v556, 28
        %v1950 = vpop.permute.xlu0 %1949
        %1951 = vrot.lane.b32.xlu0 %v559, 28
        %v1952 = vpop.permute.xlu0 %1951
        %1953 = vrot.lane.b32.xlu0 %v561, 28
        %v1954 = vpop.permute.xlu0 %1953
        %1955 = vrot.lane.b32.xlu0 %v564, 28
        %v1956 = vpop.permute.xlu0 %1955
        %1957 = vrot.lane.b32.xlu0 %v566, 28
        %v1958 = vpop.permute.xlu0 %1957
        %1959 = vrot.lane.b32.xlu0 %v569, 28
        %v1960 = vpop.permute.xlu0 %1959
        %1961 = vrot.lane.b32.xlu0 %v571, 28
        %v1962 = vpop.permute.xlu0 %1961
        %1963 = vrot.lane.b32.xlu0 %v574, 28
        %v1964 = vpop.permute.xlu0 %1963
        %1965 = vrot.lane.b32.xlu0 %v576, 28
        %v1966 = vpop.permute.xlu0 %1965
        %1967 = vrot.lane.b32.xlu0 %v579, 28
        %v1968 = vpop.permute.xlu0 %1967
        %1969 = vrot.lane.b32.xlu0 %v581, 28
        %v1970 = vpop.permute.xlu0 %1969
        %1971 = vrot.lane.b32.xlu0 %v584, 28
        %v1972 = vpop.permute.xlu0 %1971
        %1973 = vrot.lane.b32.xlu0 %v586, 28
        %v1974 = vpop.permute.xlu0 %1973
        %1975 = vrot.lane.b32.xlu0 %v589, 28
        %v1976 = vpop.permute.xlu0 %1975
        %1977 = vrot.lane.b32.xlu0 %v591, 28
        %v1978 = vpop.permute.xlu0 %1977
        %1979 = vrot.lane.b32.xlu0 %v594, 28
        %v1980 = vpop.permute.xlu0 %1979
        %1981 = vrot.lane.b32.xlu0 %v596, 28
        %v1982 = vpop.permute.xlu0 %1981
        %1983 = vrot.lane.b32.xlu0 %v599, 28
        %v1984 = vpop.permute.xlu0 %1983
        %1985 = vrot.lane.b32.xlu0 %v601, 28
        %v1986 = vpop.permute.xlu0 %1985
        %1987 = vrot.lane.b32.xlu0 %v604, 28
        %v1988 = vpop.permute.xlu0 %1987
        %1989 = vrot.lane.b32.xlu0 %v606, 28
        %v1990 = vpop.permute.xlu0 %1989
        %1991 = vrot.lane.b32.xlu0 %v609, 28
        %v1992 = vpop.permute.xlu0 %1991
        %1993 = vrot.lane.b32.xlu0 %v611, 28
        %v1994 = vpop.permute.xlu0 %1993
        %1995 = vrot.lane.b32.xlu0 %v614, 28
        %v1996 = vpop.permute.xlu0 %1995
        %1997 = vrot.lane.b32.xlu0 %v616, 28
        %v1998 = vpop.permute.xlu0 %1997
        %vm2029 = vcmask 359744
        %2030 = vst.msk [vmem:[%s852] sm:$0xff] %vm2029, %v1940
        %2031 = vst.msk [vmem:[%s852 + $0x8] sm:$0xff] %vm2029, %v1942
        %2032 = vst.msk [vmem:[%s852 + $0x10] sm:$0xff] %vm2029, %v1944
        %2033 = vst.msk [vmem:[%s852 + $0x18] sm:$0xff] %vm2029, %v1946
        %2034 = vst.msk [vmem:[%s852 + $0x20] sm:$0xff] %vm2029, %v1948
        %2035 = vst.msk [vmem:[%s852 + $0x28] sm:$0xff] %vm2029, %v1950
        %2036 = vst.msk [vmem:[%s852 + $0x30] sm:$0xff] %vm2029, %v1952
        %2037 = vst.msk [vmem:[%s852 + $0x38] sm:$0xff] %vm2029, %v1954
        %2038 = vst.msk [vmem:[%s852 + $0x40] sm:$0xff] %vm2029, %v1956
        %2039 = vst.msk [vmem:[%s852 + $0x48] sm:$0xff] %vm2029, %v1958
        %2040 = vst.msk [vmem:[%s852 + $0x50] sm:$0xff] %vm2029, %v1960
        %2041 = vst.msk [vmem:[%s852 + $0x58] sm:$0xff] %vm2029, %v1962
        %2042 = vst.msk [vmem:[%s852 + $0x60] sm:$0xff] %vm2029, %v1964
        %2043 = vst.msk [vmem:[%s852 + $0x68] sm:$0xff] %vm2029, %v1966
        %2044 = vst.msk [vmem:[%s852 + $0x70] sm:$0xff] %vm2029, %v1968
        %2045 = vst.msk [vmem:[%s852 + $0x78] sm:$0xff] %vm2029, %v1970
        %2046 = vst.msk [vmem:[%s852 + $0x80] sm:$0xff] %vm2029, %v1972
        %2047 = vst.msk [vmem:[%s852 + $0x88] sm:$0xff] %vm2029, %v1974
        %2048 = vst.msk [vmem:[%s852 + $0x90] sm:$0xff] %vm2029, %v1976
        %2049 = vst.msk [vmem:[%s852 + $0x98] sm:$0xff] %vm2029, %v1978
        %2050 = vst.msk [vmem:[%s852 + $0xa0] sm:$0xff] %vm2029, %v1980
        %2051 = vst.msk [vmem:[%s852 + $0xa8] sm:$0xff] %vm2029, %v1982
        %2052 = vst.msk [vmem:[%s852 + $0xb0] sm:$0xff] %vm2029, %v1984
        %2053 = vst.msk [vmem:[%s852 + $0xb8] sm:$0xff] %vm2029, %v1986
        %2054 = vst.msk [vmem:[%s852 + $0xc0] sm:$0xff] %vm2029, %v1988
        %2055 = vst.msk [vmem:[%s852 + $0xc8] sm:$0xff] %vm2029, %v1990
        %2056 = vst.msk [vmem:[%s852 + $0xd0] sm:$0xff] %vm2029, %v1992
        %2057 = vst.msk [vmem:[%s852 + $0xd8] sm:$0xff] %vm2029, %v1994
        %2058 = vst.msk [vmem:[%s852 + $0xe0] sm:$0xff] %vm2029, %v1996
        %2059 = vst.msk [vmem:[%s852 + $0xe8] sm:$0xff] %vm2029, %v1998
        %2060 = vrot.lane.b32.xlu0 %v544, 32
        %v2061 = vpop.permute.xlu0 %2060
        %2062 = vrot.lane.b32.xlu0 %v546, 32
        %v2063 = vpop.permute.xlu0 %2062
        %2064 = vrot.lane.b32.xlu0 %v549, 32
        %v2065 = vpop.permute.xlu0 %2064
        %2066 = vrot.lane.b32.xlu0 %v551, 32
        %v2067 = vpop.permute.xlu0 %2066
        %2068 = vrot.lane.b32.xlu0 %v554, 32
        %v2069 = vpop.permute.xlu0 %2068
        %2070 = vrot.lane.b32.xlu0 %v556, 32
        %v2071 = vpop.permute.xlu0 %2070
        %2072 = vrot.lane.b32.xlu0 %v559, 32
        %v2073 = vpop.permute.xlu0 %2072
        %2074 = vrot.lane.b32.xlu0 %v561, 32
        %v2075 = vpop.permute.xlu0 %2074
        %2076 = vrot.lane.b32.xlu0 %v564, 32
        %v2077 = vpop.permute.xlu0 %2076
        %2078 = vrot.lane.b32.xlu0 %v566, 32
        %v2079 = vpop.permute.xlu0 %2078
        %2080 = vrot.lane.b32.xlu0 %v569, 32
        %v2081 = vpop.permute.xlu0 %2080
        %2082 = vrot.lane.b32.xlu0 %v571, 32
        %v2083 = vpop.permute.xlu0 %2082
        %2084 = vrot.lane.b32.xlu0 %v574, 32
        %v2085 = vpop.permute.xlu0 %2084
        %2086 = vrot.lane.b32.xlu0 %v576, 32
        %v2087 = vpop.permute.xlu0 %2086
        %2088 = vrot.lane.b32.xlu0 %v579, 32
        %v2089 = vpop.permute.xlu0 %2088
        %2090 = vrot.lane.b32.xlu0 %v581, 32
        %v2091 = vpop.permute.xlu0 %2090
        %2092 = vrot.lane.b32.xlu0 %v584, 32
        %v2093 = vpop.permute.xlu0 %2092
        %2094 = vrot.lane.b32.xlu0 %v586, 32
        %v2095 = vpop.permute.xlu0 %2094
        %2096 = vrot.lane.b32.xlu0 %v589, 32
        %v2097 = vpop.permute.xlu0 %2096
        %2098 = vrot.lane.b32.xlu0 %v591, 32
        %v2099 = vpop.permute.xlu0 %2098
        %2100 = vrot.lane.b32.xlu0 %v594, 32
        %v2101 = vpop.permute.xlu0 %2100
        %2102 = vrot.lane.b32.xlu0 %v596, 32
        %v2103 = vpop.permute.xlu0 %2102
        %2104 = vrot.lane.b32.xlu0 %v599, 32
        %v2105 = vpop.permute.xlu0 %2104
        %2106 = vrot.lane.b32.xlu0 %v601, 32
        %v2107 = vpop.permute.xlu0 %2106
        %2108 = vrot.lane.b32.xlu0 %v604, 32
        %v2109 = vpop.permute.xlu0 %2108
        %2110 = vrot.lane.b32.xlu0 %v606, 32
        %v2111 = vpop.permute.xlu0 %2110
        %2112 = vrot.lane.b32.xlu0 %v609, 32
        %v2113 = vpop.permute.xlu0 %2112
        %2114 = vrot.lane.b32.xlu0 %v611, 32
        %v2115 = vpop.permute.xlu0 %2114
        %2116 = vrot.lane.b32.xlu0 %v614, 32
        %v2117 = vpop.permute.xlu0 %2116
        %2118 = vrot.lane.b32.xlu0 %v616, 32
        %v2119 = vpop.permute.xlu0 %2118
        %vm2150 = vcmask 392545
        %2151 = vst.msk [vmem:[%s852 - $0x1] sm:$0xfe] %vm2150, %v2061
        %vm2152 = vcmask 392544
        %2153 = vst.msk [vmem:[%s852 + $0x7] sm:$0xff] %vm2152, %v2063
        %2154 = vst.msk [vmem:[%s852 + $0xf] sm:$0xfe] %vm2150, %v2065
        %2155 = vst.msk [vmem:[%s852 + $0x17] sm:$0xff] %vm2152, %v2067
        %2156 = vst.msk [vmem:[%s852 + $0x1f] sm:$0xfe] %vm2150, %v2069
        %2157 = vst.msk [vmem:[%s852 + $0x27] sm:$0xff] %vm2152, %v2071
        %2158 = vst.msk [vmem:[%s852 + $0x2f] sm:$0xfe] %vm2150, %v2073
        %2159 = vst.msk [vmem:[%s852 + $0x37] sm:$0xff] %vm2152, %v2075
        %2160 = vst.msk [vmem:[%s852 + $0x3f] sm:$0xfe] %vm2150, %v2077
        %2161 = vst.msk [vmem:[%s852 + $0x47] sm:$0xff] %vm2152, %v2079
        %2162 = vst.msk [vmem:[%s852 + $0x4f] sm:$0xfe] %vm2150, %v2081
        %2163 = vst.msk [vmem:[%s852 + $0x57] sm:$0xff] %vm2152, %v2083
        %2164 = vst.msk [vmem:[%s852 + $0x5f] sm:$0xfe] %vm2150, %v2085
        %2165 = vst.msk [vmem:[%s852 + $0x67] sm:$0xff] %vm2152, %v2087
        %2166 = vst.msk [vmem:[%s852 + $0x6f] sm:$0xfe] %vm2150, %v2089
        %2167 = vst.msk [vmem:[%s852 + $0x77] sm:$0xff] %vm2152, %v2091
        %2168 = vst.msk [vmem:[%s852 + $0x7f] sm:$0xfe] %vm2150, %v2093
        %2169 = vst.msk [vmem:[%s852 + $0x87] sm:$0xff] %vm2152, %v2095
        %2170 = vst.msk [vmem:[%s852 + $0x8f] sm:$0xfe] %vm2150, %v2097
        %2171 = vst.msk [vmem:[%s852 + $0x97] sm:$0xff] %vm2152, %v2099
        %2172 = vst.msk [vmem:[%s852 + $0x9f] sm:$0xfe] %vm2150, %v2101
        %2173 = vst.msk [vmem:[%s852 + $0xa7] sm:$0xff] %vm2152, %v2103
        %2174 = vst.msk [vmem:[%s852 + $0xaf] sm:$0xfe] %vm2150, %v2105
        %2175 = vst.msk [vmem:[%s852 + $0xb7] sm:$0xff] %vm2152, %v2107
        %2176 = vst.msk [vmem:[%s852 + $0xbf] sm:$0xfe] %vm2150, %v2109
        %2177 = vst.msk [vmem:[%s852 + $0xc7] sm:$0xff] %vm2152, %v2111
        %2178 = vst.msk [vmem:[%s852 + $0xcf] sm:$0xfe] %vm2150, %v2113
        %2179 = vst.msk [vmem:[%s852 + $0xd7] sm:$0xff] %vm2152, %v2115
        %2180 = vst.msk [vmem:[%s852 + $0xdf] sm:$0xfe] %vm2150, %v2117
        %2181 = vst.msk [vmem:[%s852 + $0xe7] sm:$0xff] %vm2152, %v2119
        %2182 = vrot.lane.b32.xlu0 %v544, 36
        %v2183 = vpop.permute.xlu0 %2182
        %2184 = vrot.lane.b32.xlu0 %v546, 36
        %v2185 = vpop.permute.xlu0 %2184
        %2186 = vrot.lane.b32.xlu0 %v549, 36
        %v2187 = vpop.permute.xlu0 %2186
        %2188 = vrot.lane.b32.xlu0 %v551, 36
        %v2189 = vpop.permute.xlu0 %2188
        %2190 = vrot.lane.b32.xlu0 %v554, 36
        %v2191 = vpop.permute.xlu0 %2190
        %2192 = vrot.lane.b32.xlu0 %v556, 36
        %v2193 = vpop.permute.xlu0 %2192
        %2194 = vrot.lane.b32.xlu0 %v559, 36
        %v2195 = vpop.permute.xlu0 %2194
        %2196 = vrot.lane.b32.xlu0 %v561, 36
        %v2197 = vpop.permute.xlu0 %2196
        %2198 = vrot.lane.b32.xlu0 %v564, 36
        %v2199 = vpop.permute.xlu0 %2198
        %2200 = vrot.lane.b32.xlu0 %v566, 36
        %v2201 = vpop.permute.xlu0 %2200
        %2202 = vrot.lane.b32.xlu0 %v569, 36
        %v2203 = vpop.permute.xlu0 %2202
        %2204 = vrot.lane.b32.xlu0 %v571, 36
        %v2205 = vpop.permute.xlu0 %2204
        %2206 = vrot.lane.b32.xlu0 %v574, 36
        %v2207 = vpop.permute.xlu0 %2206
        %2208 = vrot.lane.b32.xlu0 %v576, 36
        %v2209 = vpop.permute.xlu0 %2208
        %2210 = vrot.lane.b32.xlu0 %v579, 36
        %v2211 = vpop.permute.xlu0 %2210
        %2212 = vrot.lane.b32.xlu0 %v581, 36
        %v2213 = vpop.permute.xlu0 %2212
        %2214 = vrot.lane.b32.xlu0 %v584, 36
        %v2215 = vpop.permute.xlu0 %2214
        %2216 = vrot.lane.b32.xlu0 %v586, 36
        %v2217 = vpop.permute.xlu0 %2216
        %2218 = vrot.lane.b32.xlu0 %v589, 36
        %v2219 = vpop.permute.xlu0 %2218
        %2220 = vrot.lane.b32.xlu0 %v591, 36
        %v2221 = vpop.permute.xlu0 %2220
        %2222 = vrot.lane.b32.xlu0 %v594, 36
        %v2223 = vpop.permute.xlu0 %2222
        %2224 = vrot.lane.b32.xlu0 %v596, 36
        %v2225 = vpop.permute.xlu0 %2224
        %2226 = vrot.lane.b32.xlu0 %v599, 36
        %v2227 = vpop.permute.xlu0 %2226
        %2228 = vrot.lane.b32.xlu0 %v601, 36
        %v2229 = vpop.permute.xlu0 %2228
        %2230 = vrot.lane.b32.xlu0 %v604, 36
        %v2231 = vpop.permute.xlu0 %2230
        %2232 = vrot.lane.b32.xlu0 %v606, 36
        %v2233 = vpop.permute.xlu0 %2232
        %2234 = vrot.lane.b32.xlu0 %v609, 36
        %v2235 = vpop.permute.xlu0 %2234
        %2236 = vrot.lane.b32.xlu0 %v611, 36
        %v2237 = vpop.permute.xlu0 %2236
        %2238 = vrot.lane.b32.xlu0 %v614, 36
        %v2239 = vpop.permute.xlu0 %2238
        %2240 = vrot.lane.b32.xlu0 %v616, 36
        %v2241 = vpop.permute.xlu0 %2240
        %2242 = vrot.lane.b32.xlu0 %v619, 36
        %v2243 = vpop.permute.xlu0 %2242
        %2244 = vrot.lane.b32.xlu0 %v621, 36
        %v2245 = vpop.permute.xlu0 %2244
        %vm2278 = vcmask 425344
        %2279 = vst.msk [vmem:[#allocation3 + $0x1] sm:$0xff] %vm2278, %v2183
        %vm2280 = vcmask 424320
        %2281 = vst.msk [vmem:[#allocation3 + $0x9] sm:$0x7f] %vm2280, %v2185
        %2282 = vst.msk [vmem:[#allocation3 + $0x11] sm:$0xff] %vm2278, %v2187
        %2283 = vst.msk [vmem:[#allocation3 + $0x19] sm:$0x7f] %vm2280, %v2189
        %2284 = vst.msk [vmem:[#allocation3 + $0x21] sm:$0xff] %vm2278, %v2191
        %2285 = vst.msk [vmem:[#allocation3 + $0x29] sm:$0x7f] %vm2280, %v2193
        %2286 = vst.msk [vmem:[#allocation3 + $0x31] sm:$0xff] %vm2278, %v2195
        %2287 = vst.msk [vmem:[#allocation3 + $0x39] sm:$0x7f] %vm2280, %v2197
        %2288 = vst.msk [vmem:[#allocation3 + $0x41] sm:$0xff] %vm2278, %v2199
        %2289 = vst.msk [vmem:[#allocation3 + $0x49] sm:$0x7f] %vm2280, %v2201
        %2290 = vst.msk [vmem:[#allocation3 + $0x51] sm:$0xff] %vm2278, %v2203
        %2291 = vst.msk [vmem:[#allocation3 + $0x59] sm:$0x7f] %vm2280, %v2205
        %2292 = vst.msk [vmem:[#allocation3 + $0x61] sm:$0xff] %vm2278, %v2207
        %2293 = vst.msk [vmem:[#allocation3 + $0x69] sm:$0x7f] %vm2280, %v2209
        %2294 = vst.msk [vmem:[#allocation3 + $0x71] sm:$0xff] %vm2278, %v2211
        %2295 = vst.msk [vmem:[#allocation3 + $0x79] sm:$0x7f] %vm2280, %v2213
        %2296 = vst.msk [vmem:[#allocation3 + $0x81] sm:$0xff] %vm2278, %v2215
        %2297 = vst.msk [vmem:[#allocation3 + $0x89] sm:$0x7f] %vm2280, %v2217
        %2298 = vst.msk [vmem:[#allocation3 + $0x91] sm:$0xff] %vm2278, %v2219
        %2299 = vst.msk [vmem:[#allocation3 + $0x99] sm:$0x7f] %vm2280, %v2221
        %2300 = vst.msk [vmem:[#allocation3 + $0xa1] sm:$0xff] %vm2278, %v2223
        %2301 = vst.msk [vmem:[#allocation3 + $0xa9] sm:$0x7f] %vm2280, %v2225
        %2302 = vst.msk [vmem:[#allocation3 + $0xb1] sm:$0xff] %vm2278, %v2227
        %2303 = vst.msk [vmem:[#allocation3 + $0xb9] sm:$0x7f] %vm2280, %v2229
        %2304 = vst.msk [vmem:[#allocation3 + $0xc1] sm:$0xff] %vm2278, %v2231
        %2305 = vst.msk [vmem:[#allocation3 + $0xc9] sm:$0x7f] %vm2280, %v2233
        %2306 = vst.msk [vmem:[#allocation3 + $0xd1] sm:$0xff] %vm2278, %v2235
        %2307 = vst.msk [vmem:[#allocation3 + $0xd9] sm:$0x7f] %vm2280, %v2237
        %2308 = vst.msk [vmem:[#allocation3 + $0xe1] sm:$0xff] %vm2278, %v2239
        %2309 = vst.msk [vmem:[#allocation3 + $0xe9] sm:$0x7f] %vm2280, %v2241
        %2310 = vst.msk [vmem:[#allocation3 + $0xf1] sm:$0xff] %vm2278, %v2243
        %2311 = vst.msk [vmem:[#allocation3 + $0xf9] sm:$0x7f] %vm2280, %v2245
        %2312 = vrot.lane.b32.xlu0 %v544, 40
        %v2313 = vpop.permute.xlu0 %2312
        %2314 = vrot.lane.b32.xlu0 %v546, 40
        %v2315 = vpop.permute.xlu0 %2314
        %2316 = vrot.lane.b32.xlu0 %v549, 40
        %v2317 = vpop.permute.xlu0 %2316
        %2318 = vrot.lane.b32.xlu0 %v551, 40
        %v2319 = vpop.permute.xlu0 %2318
        %2320 = vrot.lane.b32.xlu0 %v554, 40
        %v2321 = vpop.permute.xlu0 %2320
        %2322 = vrot.lane.b32.xlu0 %v556, 40
        %v2323 = vpop.permute.xlu0 %2322
        %2324 = vrot.lane.b32.xlu0 %v559, 40
        %v2325 = vpop.permute.xlu0 %2324
        %2326 = vrot.lane.b32.xlu0 %v561, 40
        %v2327 = vpop.permute.xlu0 %2326
        %2328 = vrot.lane.b32.xlu0 %v564, 40
        %v2329 = vpop.permute.xlu0 %2328
        %2330 = vrot.lane.b32.xlu0 %v566, 40
        %v2331 = vpop.permute.xlu0 %2330
        %2332 = vrot.lane.b32.xlu0 %v569, 40
        %v2333 = vpop.permute.xlu0 %2332
        %2334 = vrot.lane.b32.xlu0 %v571, 40
        %v2335 = vpop.permute.xlu0 %2334
        %2336 = vrot.lane.b32.xlu0 %v574, 40
        %v2337 = vpop.permute.xlu0 %2336
        %2338 = vrot.lane.b32.xlu0 %v576, 40
        %v2339 = vpop.permute.xlu0 %2338
        %2340 = vrot.lane.b32.xlu0 %v579, 40
        %v2341 = vpop.permute.xlu0 %2340
        %2342 = vrot.lane.b32.xlu0 %v581, 40
        %v2343 = vpop.permute.xlu0 %2342
        %2344 = vrot.lane.b32.xlu0 %v584, 40
        %v2345 = vpop.permute.xlu0 %2344
        %2346 = vrot.lane.b32.xlu0 %v586, 40
        %v2347 = vpop.permute.xlu0 %2346
        %2348 = vrot.lane.b32.xlu0 %v589, 40
        %v2349 = vpop.permute.xlu0 %2348
        %2350 = vrot.lane.b32.xlu0 %v591, 40
        %v2351 = vpop.permute.xlu0 %2350
        %2352 = vrot.lane.b32.xlu0 %v594, 40
        %v2353 = vpop.permute.xlu0 %2352
        %2354 = vrot.lane.b32.xlu0 %v596, 40
        %v2355 = vpop.permute.xlu0 %2354
        %2356 = vrot.lane.b32.xlu0 %v599, 40
        %v2357 = vpop.permute.xlu0 %2356
        %2358 = vrot.lane.b32.xlu0 %v601, 40
        %v2359 = vpop.permute.xlu0 %2358
        %2360 = vrot.lane.b32.xlu0 %v604, 40
        %v2361 = vpop.permute.xlu0 %2360
        %2362 = vrot.lane.b32.xlu0 %v606, 40
        %v2363 = vpop.permute.xlu0 %2362
        %2364 = vrot.lane.b32.xlu0 %v609, 40
        %v2365 = vpop.permute.xlu0 %2364
        %2366 = vrot.lane.b32.xlu0 %v611, 40
        %v2367 = vpop.permute.xlu0 %2366
        %2368 = vrot.lane.b32.xlu0 %v614, 40
        %v2369 = vpop.permute.xlu0 %2368
        %2370 = vrot.lane.b32.xlu0 %v616, 40
        %v2371 = vpop.permute.xlu0 %2370
        %2372 = vrot.lane.b32.xlu0 %v619, 40
        %v2373 = vpop.permute.xlu0 %2372
        %2374 = vrot.lane.b32.xlu0 %v621, 40
        %v2375 = vpop.permute.xlu0 %2374
        %vm2408 = vcmask 458144
        %2409 = vst.msk [vmem:[#allocation3] sm:$0xff] %vm2408, %v2313
        %2410 = vst.msk [vmem:[#allocation3 + $0x8] sm:$0xff] %vm2408, %v2315
        %2411 = vst.msk [vmem:[#allocation3 + $0x10] sm:$0xff] %vm2408, %v2317
        %2412 = vst.msk [vmem:[#allocation3 + $0x18] sm:$0xff] %vm2408, %v2319
        %2413 = vst.msk [vmem:[#allocation3 + $0x20] sm:$0xff] %vm2408, %v2321
        %2414 = vst.msk [vmem:[#allocation3 + $0x28] sm:$0xff] %vm2408, %v2323
        %2415 = vst.msk [vmem:[#allocation3 + $0x30] sm:$0xff] %vm2408, %v2325
        %2416 = vst.msk [vmem:[#allocation3 + $0x38] sm:$0xff] %vm2408, %v2327
        %2417 = vst.msk [vmem:[#allocation3 + $0x40] sm:$0xff] %vm2408, %v2329
        %2418 = vst.msk [vmem:[#allocation3 + $0x48] sm:$0xff] %vm2408, %v2331
        %2419 = vst.msk [vmem:[#allocation3 + $0x50] sm:$0xff] %vm2408, %v2333
        %2420 = vst.msk [vmem:[#allocation3 + $0x58] sm:$0xff] %vm2408, %v2335
        %2421 = vst.msk [vmem:[#allocation3 + $0x60] sm:$0xff] %vm2408, %v2337
        %2422 = vst.msk [vmem:[#allocation3 + $0x68] sm:$0xff] %vm2408, %v2339
        %2423 = vst.msk [vmem:[#allocation3 + $0x70] sm:$0xff] %vm2408, %v2341
        %2424 = vst.msk [vmem:[#allocation3 + $0x78] sm:$0xff] %vm2408, %v2343
        %2425 = vst.msk [vmem:[#allocation3 + $0x80] sm:$0xff] %vm2408, %v2345
        %2426 = vst.msk [vmem:[#allocation3 + $0x88] sm:$0xff] %vm2408, %v2347
        %2427 = vst.msk [vmem:[#allocation3 + $0x90] sm:$0xff] %vm2408, %v2349
        %2428 = vst.msk [vmem:[#allocation3 + $0x98] sm:$0xff] %vm2408, %v2351
        %2429 = vst.msk [vmem:[#allocation3 + $0xa0] sm:$0xff] %vm2408, %v2353
        %2430 = vst.msk [vmem:[#allocation3 + $0xa8] sm:$0xff] %vm2408, %v2355
        %2431 = vst.msk [vmem:[#allocation3 + $0xb0] sm:$0xff] %vm2408, %v2357
        %2432 = vst.msk [vmem:[#allocation3 + $0xb8] sm:$0xff] %vm2408, %v2359
        %2433 = vst.msk [vmem:[#allocation3 + $0xc0] sm:$0xff] %vm2408, %v2361
        %2434 = vst.msk [vmem:[#allocation3 + $0xc8] sm:$0xff] %vm2408, %v2363
        %2435 = vst.msk [vmem:[#allocation3 + $0xd0] sm:$0xff] %vm2408, %v2365
        %2436 = vst.msk [vmem:[#allocation3 + $0xd8] sm:$0xff] %vm2408, %v2367
        %2437 = vst.msk [vmem:[#allocation3 + $0xe0] sm:$0xff] %vm2408, %v2369
        %2438 = vst.msk [vmem:[#allocation3 + $0xe8] sm:$0xff] %vm2408, %v2371
        %2439 = vst.msk [vmem:[#allocation3 + $0xf0] sm:$0xff] %vm2408, %v2373
        %2440 = vst.msk [vmem:[#allocation3 + $0xf8] sm:$0xff] %vm2408, %v2375
        %2441 = vrot.lane.b32.xlu0 %v544, 44
        %v2442 = vpop.permute.xlu0 %2441
        %2443 = vrot.lane.b32.xlu0 %v546, 44
        %v2444 = vpop.permute.xlu0 %2443
        %2445 = vrot.lane.b32.xlu0 %v549, 44
        %v2446 = vpop.permute.xlu0 %2445
        %2447 = vrot.lane.b32.xlu0 %v551, 44
        %v2448 = vpop.permute.xlu0 %2447
        %2449 = vrot.lane.b32.xlu0 %v554, 44
        %v2450 = vpop.permute.xlu0 %2449
        %2451 = vrot.lane.b32.xlu0 %v556, 44
        %v2452 = vpop.permute.xlu0 %2451
        %2453 = vrot.lane.b32.xlu0 %v559, 44
        %v2454 = vpop.permute.xlu0 %2453
        %2455 = vrot.lane.b32.xlu0 %v561, 44
        %v2456 = vpop.permute.xlu0 %2455
        %2457 = vrot.lane.b32.xlu0 %v564, 44
        %v2458 = vpop.permute.xlu0 %2457
        %2459 = vrot.lane.b32.xlu0 %v566, 44
        %v2460 = vpop.permute.xlu0 %2459
        %2461 = vrot.lane.b32.xlu0 %v569, 44
        %v2462 = vpop.permute.xlu0 %2461
        %2463 = vrot.lane.b32.xlu0 %v571, 44
        %v2464 = vpop.permute.xlu0 %2463
        %2465 = vrot.lane.b32.xlu0 %v574, 44
        %v2466 = vpop.permute.xlu0 %2465
        %2467 = vrot.lane.b32.xlu0 %v576, 44
        %v2468 = vpop.permute.xlu0 %2467
        %2469 = vrot.lane.b32.xlu0 %v579, 44
        %v2470 = vpop.permute.xlu0 %2469
        %2471 = vrot.lane.b32.xlu0 %v581, 44
        %v2472 = vpop.permute.xlu0 %2471
        %2473 = vrot.lane.b32.xlu0 %v584, 44
        %v2474 = vpop.permute.xlu0 %2473
        %2475 = vrot.lane.b32.xlu0 %v586, 44
        %v2476 = vpop.permute.xlu0 %2475
        %2477 = vrot.lane.b32.xlu0 %v589, 44
        %v2478 = vpop.permute.xlu0 %2477
        %2479 = vrot.lane.b32.xlu0 %v591, 44
        %v2480 = vpop.permute.xlu0 %2479
        %2481 = vrot.lane.b32.xlu0 %v594, 44
        %v2482 = vpop.permute.xlu0 %2481
        %2483 = vrot.lane.b32.xlu0 %v596, 44
        %v2484 = vpop.permute.xlu0 %2483
        %2485 = vrot.lane.b32.xlu0 %v599, 44
        %v2486 = vpop.permute.xlu0 %2485
        %2487 = vrot.lane.b32.xlu0 %v601, 44
        %v2488 = vpop.permute.xlu0 %2487
        %2489 = vrot.lane.b32.xlu0 %v604, 44
        %v2490 = vpop.permute.xlu0 %2489
        %2491 = vrot.lane.b32.xlu0 %v606, 44
        %v2492 = vpop.permute.xlu0 %2491
        %2493 = vrot.lane.b32.xlu0 %v609, 44
        %v2494 = vpop.permute.xlu0 %2493
        %2495 = vrot.lane.b32.xlu0 %v611, 44
        %v2496 = vpop.permute.xlu0 %2495
        %2497 = vrot.lane.b32.xlu0 %v614, 44
        %v2498 = vpop.permute.xlu0 %2497
        %2499 = vrot.lane.b32.xlu0 %v616, 44
        %v2500 = vpop.permute.xlu0 %2499
        %2501 = vrot.lane.b32.xlu0 %v619, 44
        %v2502 = vpop.permute.xlu0 %2501
        %2503 = vrot.lane.b32.xlu0 %v621, 44
        %v2504 = vpop.permute.xlu0 %2503
        %vm2537 = vcmask 490945
        %2538 = vst.msk [vmem:[#allocation3 - $0x1] sm:$0xfe] %vm2537, %v2442
        %vm2539 = vcmask 490944
        %2540 = vst.msk [vmem:[#allocation3 + $0x7] sm:$0xff] %vm2539, %v2444
        %2541 = vst.msk [vmem:[#allocation3 + $0xf] sm:$0xfe] %vm2537, %v2446
        %2542 = vst.msk [vmem:[#allocation3 + $0x17] sm:$0xff] %vm2539, %v2448
        %2543 = vst.msk [vmem:[#allocation3 + $0x1f] sm:$0xfe] %vm2537, %v2450
        %2544 = vst.msk [vmem:[#allocation3 + $0x27] sm:$0xff] %vm2539, %v2452
        %2545 = vst.msk [vmem:[#allocation3 + $0x2f] sm:$0xfe] %vm2537, %v2454
        %2546 = vst.msk [vmem:[#allocation3 + $0x37] sm:$0xff] %vm2539, %v2456
        %2547 = vst.msk [vmem:[#allocation3 + $0x3f] sm:$0xfe] %vm2537, %v2458
        %2548 = vst.msk [vmem:[#allocation3 + $0x47] sm:$0xff] %vm2539, %v2460
        %2549 = vst.msk [vmem:[#allocation3 + $0x4f] sm:$0xfe] %vm2537, %v2462
        %2550 = vst.msk [vmem:[#allocation3 + $0x57] sm:$0xff] %vm2539, %v2464
        %2551 = vst.msk [vmem:[#allocation3 + $0x5f] sm:$0xfe] %vm2537, %v2466
        %2552 = vst.msk [vmem:[#allocation3 + $0x67] sm:$0xff] %vm2539, %v2468
        %2553 = vst.msk [vmem:[#allocation3 + $0x6f] sm:$0xfe] %vm2537, %v2470
        %2554 = vst.msk [vmem:[#allocation3 + $0x77] sm:$0xff] %vm2539, %v2472
        %2555 = vst.msk [vmem:[#allocation3 + $0x7f] sm:$0xfe] %vm2537, %v2474
        %2556 = vst.msk [vmem:[#allocation3 + $0x87] sm:$0xff] %vm2539, %v2476
        %2557 = vst.msk [vmem:[#allocation3 + $0x8f] sm:$0xfe] %vm2537, %v2478
        %2558 = vst.msk [vmem:[#allocation3 + $0x97] sm:$0xff] %vm2539, %v2480
        %2559 = vst.msk [vmem:[#allocation3 + $0x9f] sm:$0xfe] %vm2537, %v2482
        %2560 = vst.msk [vmem:[#allocation3 + $0xa7] sm:$0xff] %vm2539, %v2484
        %2561 = vst.msk [vmem:[#allocation3 + $0xaf] sm:$0xfe] %vm2537, %v2486
        %2562 = vst.msk [vmem:[#allocation3 + $0xb7] sm:$0xff] %vm2539, %v2488
        %2563 = vst.msk [vmem:[#allocation3 + $0xbf] sm:$0xfe] %vm2537, %v2490
        %2564 = vst.msk [vmem:[#allocation3 + $0xc7] sm:$0xff] %vm2539, %v2492
        %2565 = vst.msk [vmem:[#allocation3 + $0xcf] sm:$0xfe] %vm2537, %v2494
        %2566 = vst.msk [vmem:[#allocation3 + $0xd7] sm:$0xff] %vm2539, %v2496
        %2567 = vst.msk [vmem:[#allocation3 + $0xdf] sm:$0xfe] %vm2537, %v2498
        %2568 = vst.msk [vmem:[#allocation3 + $0xe7] sm:$0xff] %vm2539, %v2500
        %2569 = vst.msk [vmem:[#allocation3 + $0xef] sm:$0xfe] %vm2537, %v2502
        %2570 = vst.msk [vmem:[#allocation3 + $0xf7] sm:$0xff] %vm2539, %v2504
        %2571 = vrot.lane.b32.xlu0 %v549, 48
        %v2572 = vpop.permute.xlu0 %2571
        %2573 = vrot.lane.b32.xlu0 %v551, 48
        %v2574 = vpop.permute.xlu0 %2573
        %2575 = vrot.lane.b32.xlu0 %v554, 48
        %v2576 = vpop.permute.xlu0 %2575
        %2577 = vrot.lane.b32.xlu0 %v556, 48
        %v2578 = vpop.permute.xlu0 %2577
        %2579 = vrot.lane.b32.xlu0 %v559, 48
        %v2580 = vpop.permute.xlu0 %2579
        %2581 = vrot.lane.b32.xlu0 %v561, 48
        %v2582 = vpop.permute.xlu0 %2581
        %2583 = vrot.lane.b32.xlu0 %v564, 48
        %v2584 = vpop.permute.xlu0 %2583
        %2585 = vrot.lane.b32.xlu0 %v566, 48
        %v2586 = vpop.permute.xlu0 %2585
        %2587 = vrot.lane.b32.xlu0 %v569, 48
        %v2588 = vpop.permute.xlu0 %2587
        %2589 = vrot.lane.b32.xlu0 %v571, 48
        %v2590 = vpop.permute.xlu0 %2589
        %2591 = vrot.lane.b32.xlu0 %v574, 48
        %v2592 = vpop.permute.xlu0 %2591
        %2593 = vrot.lane.b32.xlu0 %v576, 48
        %v2594 = vpop.permute.xlu0 %2593
        %2595 = vrot.lane.b32.xlu0 %v579, 48
        %v2596 = vpop.permute.xlu0 %2595
        %2597 = vrot.lane.b32.xlu0 %v581, 48
        %v2598 = vpop.permute.xlu0 %2597
        %2599 = vrot.lane.b32.xlu0 %v584, 48
        %v2600 = vpop.permute.xlu0 %2599
        %2601 = vrot.lane.b32.xlu0 %v586, 48
        %v2602 = vpop.permute.xlu0 %2601
        %2603 = vrot.lane.b32.xlu0 %v589, 48
        %v2604 = vpop.permute.xlu0 %2603
        %2605 = vrot.lane.b32.xlu0 %v591, 48
        %v2606 = vpop.permute.xlu0 %2605
        %2607 = vrot.lane.b32.xlu0 %v594, 48
        %v2608 = vpop.permute.xlu0 %2607
        %2609 = vrot.lane.b32.xlu0 %v596, 48
        %v2610 = vpop.permute.xlu0 %2609
        %2611 = vrot.lane.b32.xlu0 %v599, 48
        %v2612 = vpop.permute.xlu0 %2611
        %2613 = vrot.lane.b32.xlu0 %v601, 48
        %v2614 = vpop.permute.xlu0 %2613
        %2615 = vrot.lane.b32.xlu0 %v604, 48
        %v2616 = vpop.permute.xlu0 %2615
        %2617 = vrot.lane.b32.xlu0 %v606, 48
        %v2618 = vpop.permute.xlu0 %2617
        %2619 = vrot.lane.b32.xlu0 %v609, 48
        %v2620 = vpop.permute.xlu0 %2619
        %2621 = vrot.lane.b32.xlu0 %v611, 48
        %v2622 = vpop.permute.xlu0 %2621
        %2623 = vrot.lane.b32.xlu0 %v614, 48
        %v2624 = vpop.permute.xlu0 %2623
        %2625 = vrot.lane.b32.xlu0 %v616, 48
        %v2626 = vpop.permute.xlu0 %2625
        %2627 = vrot.lane.b32.xlu0 %v619, 48
        %v2628 = vpop.permute.xlu0 %2627
        %2629 = vrot.lane.b32.xlu0 %v621, 48
        %v2630 = vpop.permute.xlu0 %2629
        %vm2661 = vcmask 523744
        %2662 = vst.msk [vmem:[#allocation3 + $0x1] sm:$0xff] %vm2661, %v2572
        %vm2663 = vcmask 522720
        %2664 = vst.msk [vmem:[#allocation3 + $0x9] sm:$0x7f] %vm2663, %v2574
        %2665 = vst.msk [vmem:[#allocation3 + $0x11] sm:$0xff] %vm2661, %v2576
        %2666 = vst.msk [vmem:[#allocation3 + $0x19] sm:$0x7f] %vm2663, %v2578
        %2667 = vst.msk [vmem:[#allocation3 + $0x21] sm:$0xff] %vm2661, %v2580
        %2668 = vst.msk [vmem:[#allocation3 + $0x29] sm:$0x7f] %vm2663, %v2582
        %2669 = vst.msk [vmem:[#allocation3 + $0x31] sm:$0xff] %vm2661, %v2584
        %2670 = vst.msk [vmem:[#allocation3 + $0x39] sm:$0x7f] %vm2663, %v2586
        %2671 = vst.msk [vmem:[#allocation3 + $0x41] sm:$0xff] %vm2661, %v2588
        %2672 = vst.msk [vmem:[#allocation3 + $0x49] sm:$0x7f] %vm2663, %v2590
        %2673 = vst.msk [vmem:[#allocation3 + $0x51] sm:$0xff] %vm2661, %v2592
        %2674 = vst.msk [vmem:[#allocation3 + $0x59] sm:$0x7f] %vm2663, %v2594
        %2675 = vst.msk [vmem:[#allocation3 + $0x61] sm:$0xff] %vm2661, %v2596
        %2676 = vst.msk [vmem:[#allocation3 + $0x69] sm:$0x7f] %vm2663, %v2598
        %2677 = vst.msk [vmem:[#allocation3 + $0x71] sm:$0xff] %vm2661, %v2600
        %2678 = vst.msk [vmem:[#allocation3 + $0x79] sm:$0x7f] %vm2663, %v2602
        %2679 = vst.msk [vmem:[#allocation3 + $0x81] sm:$0xff] %vm2661, %v2604
        %2680 = vst.msk [vmem:[#allocation3 + $0x89] sm:$0x7f] %vm2663, %v2606
        %2681 = vst.msk [vmem:[#allocation3 + $0x91] sm:$0xff] %vm2661, %v2608
        %2682 = vst.msk [vmem:[#allocation3 + $0x99] sm:$0x7f] %vm2663, %v2610
        %2683 = vst.msk [vmem:[#allocation3 + $0xa1] sm:$0xff] %vm2661, %v2612
        %2684 = vst.msk [vmem:[#allocation3 + $0xa9] sm:$0x7f] %vm2663, %v2614
        %2685 = vst.msk [vmem:[#allocation3 + $0xb1] sm:$0xff] %vm2661, %v2616
        %2686 = vst.msk [vmem:[#allocation3 + $0xb9] sm:$0x7f] %vm2663, %v2618
        %2687 = vst.msk [vmem:[#allocation3 + $0xc1] sm:$0xff] %vm2661, %v2620
        %2688 = vst.msk [vmem:[#allocation3 + $0xc9] sm:$0x7f] %vm2663, %v2622
        %2689 = vst.msk [vmem:[#allocation3 + $0xd1] sm:$0xff] %vm2661, %v2624
        %2690 = vst.msk [vmem:[#allocation3 + $0xd9] sm:$0x7f] %vm2663, %v2626
        %2691 = vst.msk [vmem:[#allocation3 + $0xe1] sm:$0xff] %vm2661, %v2628
        %2692 = vst.msk [vmem:[#allocation3 + $0xe9] sm:$0x7f] %vm2663, %v2630
        %2693 = vrot.lane.b32.xlu0 %v549, 52
        %v2694 = vpop.permute.xlu0 %2693
        %2695 = vrot.lane.b32.xlu0 %v551, 52
        %v2696 = vpop.permute.xlu0 %2695
        %2697 = vrot.lane.b32.xlu0 %v554, 52
        %v2698 = vpop.permute.xlu0 %2697
        %2699 = vrot.lane.b32.xlu0 %v556, 52
        %v2700 = vpop.permute.xlu0 %2699
        %2701 = vrot.lane.b32.xlu0 %v559, 52
        %v2702 = vpop.permute.xlu0 %2701
        %2703 = vrot.lane.b32.xlu0 %v561, 52
        %v2704 = vpop.permute.xlu0 %2703
        %2705 = vrot.lane.b32.xlu0 %v564, 52
        %v2706 = vpop.permute.xlu0 %2705
        %2707 = vrot.lane.b32.xlu0 %v566, 52
        %v2708 = vpop.permute.xlu0 %2707
        %2709 = vrot.lane.b32.xlu0 %v569, 52
        %v2710 = vpop.permute.xlu0 %2709
        %2711 = vrot.lane.b32.xlu0 %v571, 52
        %v2712 = vpop.permute.xlu0 %2711
        %2713 = vrot.lane.b32.xlu0 %v574, 52
        %v2714 = vpop.permute.xlu0 %2713
        %2715 = vrot.lane.b32.xlu0 %v576, 52
        %v2716 = vpop.permute.xlu0 %2715
        %2717 = vrot.lane.b32.xlu0 %v579, 52
        %v2718 = vpop.permute.xlu0 %2717
        %2719 = vrot.lane.b32.xlu0 %v581, 52
        %v2720 = vpop.permute.xlu0 %2719
        %2721 = vrot.lane.b32.xlu0 %v584, 52
        %v2722 = vpop.permute.xlu0 %2721
        %2723 = vrot.lane.b32.xlu0 %v586, 52
        %v2724 = vpop.permute.xlu0 %2723
        %2725 = vrot.lane.b32.xlu0 %v589, 52
        %v2726 = vpop.permute.xlu0 %2725
        %2727 = vrot.lane.b32.xlu0 %v591, 52
        %v2728 = vpop.permute.xlu0 %2727
        %2729 = vrot.lane.b32.xlu0 %v594, 52
        %v2730 = vpop.permute.xlu0 %2729
        %2731 = vrot.lane.b32.xlu0 %v596, 52
        %v2732 = vpop.permute.xlu0 %2731
        %2733 = vrot.lane.b32.xlu0 %v599, 52
        %v2734 = vpop.permute.xlu0 %2733
        %2735 = vrot.lane.b32.xlu0 %v601, 52
        %v2736 = vpop.permute.xlu0 %2735
        %2737 = vrot.lane.b32.xlu0 %v604, 52
        %v2738 = vpop.permute.xlu0 %2737
        %2739 = vrot.lane.b32.xlu0 %v606, 52
        %v2740 = vpop.permute.xlu0 %2739
        %2741 = vrot.lane.b32.xlu0 %v609, 52
        %v2742 = vpop.permute.xlu0 %2741
        %2743 = vrot.lane.b32.xlu0 %v611, 52
        %v2744 = vpop.permute.xlu0 %2743
        %2745 = vrot.lane.b32.xlu0 %v614, 52
        %v2746 = vpop.permute.xlu0 %2745
        %2747 = vrot.lane.b32.xlu0 %v616, 52
        %v2748 = vpop.permute.xlu0 %2747
        %2749 = vrot.lane.b32.xlu0 %v619, 52
        %v2750 = vpop.permute.xlu0 %2749
        %2751 = vrot.lane.b32.xlu0 %v621, 52
        %v2752 = vpop.permute.xlu0 %2751
        %vm2783 = vcmask 556544
        %2784 = vst.msk [vmem:[#allocation3] sm:$0xff] %vm2783, %v2694
        %2785 = vst.msk [vmem:[#allocation3 + $0x8] sm:$0xff] %vm2783, %v2696
        %2786 = vst.msk [vmem:[#allocation3 + $0x10] sm:$0xff] %vm2783, %v2698
        %2787 = vst.msk [vmem:[#allocation3 + $0x18] sm:$0xff] %vm2783, %v2700
        %2788 = vst.msk [vmem:[#allocation3 + $0x20] sm:$0xff] %vm2783, %v2702
        %2789 = vst.msk [vmem:[#allocation3 + $0x28] sm:$0xff] %vm2783, %v2704
        %2790 = vst.msk [vmem:[#allocation3 + $0x30] sm:$0xff] %vm2783, %v2706
        %2791 = vst.msk [vmem:[#allocation3 + $0x38] sm:$0xff] %vm2783, %v2708
        %2792 = vst.msk [vmem:[#allocation3 + $0x40] sm:$0xff] %vm2783, %v2710
        %2793 = vst.msk [vmem:[#allocation3 + $0x48] sm:$0xff] %vm2783, %v2712
        %2794 = vst.msk [vmem:[#allocation3 + $0x50] sm:$0xff] %vm2783, %v2714
        %2795 = vst.msk [vmem:[#allocation3 + $0x58] sm:$0xff] %vm2783, %v2716
        %2796 = vst.msk [vmem:[#allocation3 + $0x60] sm:$0xff] %vm2783, %v2718
        %2797 = vst.msk [vmem:[#allocation3 + $0x68] sm:$0xff] %vm2783, %v2720
        %2798 = vst.msk [vmem:[#allocation3 + $0x70] sm:$0xff] %vm2783, %v2722
        %2799 = vst.msk [vmem:[#allocation3 + $0x78] sm:$0xff] %vm2783, %v2724
        %2800 = vst.msk [vmem:[#allocation3 + $0x80] sm:$0xff] %vm2783, %v2726
        %2801 = vst.msk [vmem:[#allocation3 + $0x88] sm:$0xff] %vm2783, %v2728
        %2802 = vst.msk [vmem:[#allocation3 + $0x90] sm:$0xff] %vm2783, %v2730
        %2803 = vst.msk [vmem:[#allocation3 + $0x98] sm:$0xff] %vm2783, %v2732
        %2804 = vst.msk [vmem:[#allocation3 + $0xa0] sm:$0xff] %vm2783, %v2734
        %2805 = vst.msk [vmem:[#allocation3 + $0xa8] sm:$0xff] %vm2783, %v2736
        %2806 = vst.msk [vmem:[#allocation3 + $0xb0] sm:$0xff] %vm2783, %v2738
        %2807 = vst.msk [vmem:[#allocation3 + $0xb8] sm:$0xff] %vm2783, %v2740
        %2808 = vst.msk [vmem:[#allocation3 + $0xc0] sm:$0xff] %vm2783, %v2742
        %2809 = vst.msk [vmem:[#allocation3 + $0xc8] sm:$0xff] %vm2783, %v2744
        %2810 = vst.msk [vmem:[#allocation3 + $0xd0] sm:$0xff] %vm2783, %v2746
        %2811 = vst.msk [vmem:[#allocation3 + $0xd8] sm:$0xff] %vm2783, %v2748
        %2812 = vst.msk [vmem:[#allocation3 + $0xe0] sm:$0xff] %vm2783, %v2750
        %2813 = vst.msk [vmem:[#allocation3 + $0xe8] sm:$0xff] %vm2783, %v2752
        %2814 = vrot.lane.b32.xlu0 %v549, 56
        %v2815 = vpop.permute.xlu0 %2814
        %2816 = vrot.lane.b32.xlu0 %v551, 56
        %v2817 = vpop.permute.xlu0 %2816
        %2818 = vrot.lane.b32.xlu0 %v554, 56
        %v2819 = vpop.permute.xlu0 %2818
        %2820 = vrot.lane.b32.xlu0 %v556, 56
        %v2821 = vpop.permute.xlu0 %2820
        %2822 = vrot.lane.b32.xlu0 %v559, 56
        %v2823 = vpop.permute.xlu0 %2822
        %2824 = vrot.lane.b32.xlu0 %v561, 56
        %v2825 = vpop.permute.xlu0 %2824
        %2826 = vrot.lane.b32.xlu0 %v564, 56
        %v2827 = vpop.permute.xlu0 %2826
        %2828 = vrot.lane.b32.xlu0 %v566, 56
        %v2829 = vpop.permute.xlu0 %2828
        %2830 = vrot.lane.b32.xlu0 %v569, 56
        %v2831 = vpop.permute.xlu0 %2830
        %2832 = vrot.lane.b32.xlu0 %v571, 56
        %v2833 = vpop.permute.xlu0 %2832
        %2834 = vrot.lane.b32.xlu0 %v574, 56
        %v2835 = vpop.permute.xlu0 %2834
        %2836 = vrot.lane.b32.xlu0 %v576, 56
        %v2837 = vpop.permute.xlu0 %2836
        %2838 = vrot.lane.b32.xlu0 %v579, 56
        %v2839 = vpop.permute.xlu0 %2838
        %2840 = vrot.lane.b32.xlu0 %v581, 56
        %v2841 = vpop.permute.xlu0 %2840
        %2842 = vrot.lane.b32.xlu0 %v584, 56
        %v2843 = vpop.permute.xlu0 %2842
        %2844 = vrot.lane.b32.xlu0 %v586, 56
        %v2845 = vpop.permute.xlu0 %2844
        %2846 = vrot.lane.b32.xlu0 %v589, 56
        %v2847 = vpop.permute.xlu0 %2846
        %2848 = vrot.lane.b32.xlu0 %v591, 56
        %v2849 = vpop.permute.xlu0 %2848
        %2850 = vrot.lane.b32.xlu0 %v594, 56
        %v2851 = vpop.permute.xlu0 %2850
        %2852 = vrot.lane.b32.xlu0 %v596, 56
        %v2853 = vpop.permute.xlu0 %2852
        %2854 = vrot.lane.b32.xlu0 %v599, 56
        %v2855 = vpop.permute.xlu0 %2854
        %2856 = vrot.lane.b32.xlu0 %v601, 56
        %v2857 = vpop.permute.xlu0 %2856
        %2858 = vrot.lane.b32.xlu0 %v604, 56
        %v2859 = vpop.permute.xlu0 %2858
        %2860 = vrot.lane.b32.xlu0 %v606, 56
        %v2861 = vpop.permute.xlu0 %2860
        %2862 = vrot.lane.b32.xlu0 %v609, 56
        %v2863 = vpop.permute.xlu0 %2862
        %2864 = vrot.lane.b32.xlu0 %v611, 56
        %v2865 = vpop.permute.xlu0 %2864
        %2866 = vrot.lane.b32.xlu0 %v614, 56
        %v2867 = vpop.permute.xlu0 %2866
        %2868 = vrot.lane.b32.xlu0 %v616, 56
        %v2869 = vpop.permute.xlu0 %2868
        %2870 = vrot.lane.b32.xlu0 %v619, 56
        %v2871 = vpop.permute.xlu0 %2870
        %2872 = vrot.lane.b32.xlu0 %v621, 56
        %v2873 = vpop.permute.xlu0 %2872
        %vm2904 = vcmask 589345
        %2905 = vst.msk [vmem:[#allocation3 - $0x1] sm:$0xfe] %vm2904, %v2815
        %vm2906 = vcmask 589344
        %2907 = vst.msk [vmem:[#allocation3 + $0x7] sm:$0xff] %vm2906, %v2817
        %2908 = vst.msk [vmem:[#allocation3 + $0xf] sm:$0xfe] %vm2904, %v2819
        %2909 = vst.msk [vmem:[#allocation3 + $0x17] sm:$0xff] %vm2906, %v2821
        %2910 = vst.msk [vmem:[#allocation3 + $0x1f] sm:$0xfe] %vm2904, %v2823
        %2911 = vst.msk [vmem:[#allocation3 + $0x27] sm:$0xff] %vm2906, %v2825
        %2912 = vst.msk [vmem:[#allocation3 + $0x2f] sm:$0xfe] %vm2904, %v2827
        %2913 = vst.msk [vmem:[#allocation3 + $0x37] sm:$0xff] %vm2906, %v2829
        %2914 = vst.msk [vmem:[#allocation3 + $0x3f] sm:$0xfe] %vm2904, %v2831
        %2915 = vst.msk [vmem:[#allocation3 + $0x47] sm:$0xff] %vm2906, %v2833
        %2916 = vst.msk [vmem:[#allocation3 + $0x4f] sm:$0xfe] %vm2904, %v2835
        %2917 = vst.msk [vmem:[#allocation3 + $0x57] sm:$0xff] %vm2906, %v2837
        %2918 = vst.msk [vmem:[#allocation3 + $0x5f] sm:$0xfe] %vm2904, %v2839
        %2919 = vst.msk [vmem:[#allocation3 + $0x67] sm:$0xff] %vm2906, %v2841
        %2920 = vst.msk [vmem:[#allocation3 + $0x6f] sm:$0xfe] %vm2904, %v2843
        %2921 = vst.msk [vmem:[#allocation3 + $0x77] sm:$0xff] %vm2906, %v2845
        %2922 = vst.msk [vmem:[#allocation3 + $0x7f] sm:$0xfe] %vm2904, %v2847
        %2923 = vst.msk [vmem:[#allocation3 + $0x87] sm:$0xff] %vm2906, %v2849
        %2924 = vst.msk [vmem:[#allocation3 + $0x8f] sm:$0xfe] %vm2904, %v2851
        %2925 = vst.msk [vmem:[#allocation3 + $0x97] sm:$0xff] %vm2906, %v2853
        %2926 = vst.msk [vmem:[#allocation3 + $0x9f] sm:$0xfe] %vm2904, %v2855
        %2927 = vst.msk [vmem:[#allocation3 + $0xa7] sm:$0xff] %vm2906, %v2857
        %2928 = vst.msk [vmem:[#allocation3 + $0xaf] sm:$0xfe] %vm2904, %v2859
        %2929 = vst.msk [vmem:[#allocation3 + $0xb7] sm:$0xff] %vm2906, %v2861
        %2930 = vst.msk [vmem:[#allocation3 + $0xbf] sm:$0xfe] %vm2904, %v2863
        %2931 = vst.msk [vmem:[#allocation3 + $0xc7] sm:$0xff] %vm2906, %v2865
        %2932 = vst.msk [vmem:[#allocation3 + $0xcf] sm:$0xfe] %vm2904, %v2867
        %2933 = vst.msk [vmem:[#allocation3 + $0xd7] sm:$0xff] %vm2906, %v2869
        %2934 = vst.msk [vmem:[#allocation3 + $0xdf] sm:$0xfe] %vm2904, %v2871
        %2935 = vst.msk [vmem:[#allocation3 + $0xe7] sm:$0xff] %vm2906, %v2873
        %v2936 = vld [vmem:[#allocation3] sm:$0xff]
        %v2937 = vld [vmem:[#allocation3 + $0x8] sm:$0xff]
        %v2938 = vld [vmem:[#allocation3 + $0x10] sm:$0xff]
        %v2939 = vld [vmem:[#allocation3 + $0x18] sm:$0xff]
        %v2940 = vld [vmem:[#allocation3 + $0x20] sm:$0xff]
        %v2941 = vld [vmem:[#allocation3 + $0x28] sm:$0xff]
        %v2942 = vld [vmem:[#allocation3 + $0x30] sm:$0xff]
        %v2943 = vld [vmem:[#allocation3 + $0x38] sm:$0xff]
        %v2944 = vld [vmem:[#allocation3 + $0x40] sm:$0xff]
        %v2945 = vld [vmem:[#allocation3 + $0x48] sm:$0xff]
        %v2946 = vld [vmem:[#allocation3 + $0x50] sm:$0xff]
        %v2947 = vld [vmem:[#allocation3 + $0x58] sm:$0xff]
        %v2948 = vld [vmem:[#allocation3 + $0x60] sm:$0xff]
        %v2949 = vld [vmem:[#allocation3 + $0x68] sm:$0xff]
        %v2950 = vld [vmem:[#allocation3 + $0x70] sm:$0xff]
        %v2951 = vld [vmem:[#allocation3 + $0x78] sm:$0xff]
        %v2952 = vld [vmem:[#allocation3 + $0x80] sm:$0xff]
        %v2953 = vld [vmem:[#allocation3 + $0x88] sm:$0xff]
        %v2954 = vld [vmem:[#allocation3 + $0x90] sm:$0xff]
        %v2955 = vld [vmem:[#allocation3 + $0x98] sm:$0xff]
        %v2956 = vld [vmem:[#allocation3 + $0xa0] sm:$0xff]
        %v2957 = vld [vmem:[#allocation3 + $0xa8] sm:$0xff]
        %v2958 = vld [vmem:[#allocation3 + $0xb0] sm:$0xff]
        %v2959 = vld [vmem:[#allocation3 + $0xb8] sm:$0xff]
        %v2960 = vld [vmem:[#allocation3 + $0xc0] sm:$0xff]
        %v2961 = vld [vmem:[#allocation3 + $0xc8] sm:$0xff]
        %v2962 = vld [vmem:[#allocation3 + $0xd0] sm:$0xff]
        %v2963 = vld [vmem:[#allocation3 + $0xd8] sm:$0xff]
        %v2964 = vld [vmem:[#allocation3 + $0xe0] sm:$0xff]
        %v2965 = vld [vmem:[#allocation3 + $0xe8] sm:$0xff]
        %v2966 = vld [vmem:[#allocation3 + $0xf0] sm:$0xff]
        %v2967 = vld [vmem:[#allocation3 + $0xf8] sm:$0xff]
        %v2968 = vpack.c.bf16 %v2936, %v2936
        %v2969 = vpack.c.bf16 %v2937, %v2937
        %v2970 = vpack.c.bf16 %v2938, %v2938
        %v2971 = vpack.c.bf16 %v2939, %v2939
        %v2972 = vpack.c.bf16 %v2940, %v2940
        %v2973 = vpack.c.bf16 %v2941, %v2941
        %v2974 = vpack.c.bf16 %v2942, %v2942
        %v2975 = vpack.c.bf16 %v2943, %v2943
        %v2976 = vpack.c.bf16 %v2944, %v2944
        %v2977 = vpack.c.bf16 %v2945, %v2945
        %v2978 = vpack.c.bf16 %v2946, %v2946
        %v2979 = vpack.c.bf16 %v2947, %v2947
        %v2980 = vpack.c.bf16 %v2948, %v2948
        %v2981 = vpack.c.bf16 %v2949, %v2949
        %v2982 = vpack.c.bf16 %v2950, %v2950
        %v2983 = vpack.c.bf16 %v2951, %v2951
        %v2984 = vpack.c.bf16 %v2952, %v2952
        %v2985 = vpack.c.bf16 %v2953, %v2953
        %v2986 = vpack.c.bf16 %v2954, %v2954
        %v2987 = vpack.c.bf16 %v2955, %v2955
        %v2988 = vpack.c.bf16 %v2956, %v2956
        %v2989 = vpack.c.bf16 %v2957, %v2957
        %v2990 = vpack.c.bf16 %v2958, %v2958
        %v2991 = vpack.c.bf16 %v2959, %v2959
        %v2992 = vpack.c.bf16 %v2960, %v2960
        %v2993 = vpack.c.bf16 %v2961, %v2961
        %v2994 = vpack.c.bf16 %v2962, %v2962
        %v2995 = vpack.c.bf16 %v2963, %v2963
        %v2996 = vpack.c.bf16 %v2964, %v2964
        %v2997 = vpack.c.bf16 %v2965, %v2965
        %v2998 = vpack.c.bf16 %v2966, %v2966
        %v2999 = vpack.c.bf16 %v2967, %v2967
        %v3000 = vld [vmem:[%s3] sm:$0xf]
        %v3001 = vld [vmem:[%s3 + $0x4] sm:$0xf]
        %v3002 = vld [vmem:[%s3 + $0x8] sm:$0xf]
        %v3003 = vld [vmem:[%s3 + $0xc] sm:$0xf]
        %v3004 = vld [vmem:[%s3 + $0x10] sm:$0x3]
        %v3005 = vld [vmem:[%s4] sm:$0x1]
        %v3007 = vperm.slane %v3005, 0
        %v3041 = vunpack.c.l.b16 %v2968
        %v3042 = vunpack.c.l.b16 %v2969
        %v3043 = vunpack.c.l.b16 %v2970
        %v3044 = vunpack.c.l.b16 %v2971
        %v3045 = vunpack.c.l.b16 %v2972
        %v3046 = vunpack.c.l.b16 %v2973
        %v3047 = vunpack.c.l.b16 %v2974
        %v3048 = vunpack.c.l.b16 %v2975
        %v3049 = vunpack.c.l.b16 %v2976
        %v3050 = vunpack.c.l.b16 %v2977
        %v3051 = vunpack.c.l.b16 %v2978
        %v3052 = vunpack.c.l.b16 %v2979
        %v3053 = vunpack.c.l.b16 %v2980
        %v3054 = vunpack.c.l.b16 %v2981
        %v3055 = vunpack.c.l.b16 %v2982
        %v3056 = vunpack.c.l.b16 %v2983
        %v3057 = vunpack.c.l.b16 %v2984
        %v3058 = vunpack.c.l.b16 %v2985
        %v3059 = vunpack.c.l.b16 %v2986
        %v3060 = vunpack.c.l.b16 %v2987
        %v3061 = vunpack.c.l.b16 %v2988
        %v3062 = vunpack.c.l.b16 %v2989
        %v3063 = vunpack.c.l.b16 %v2990
        %v3064 = vunpack.c.l.b16 %v2991
        %v3065 = vunpack.c.l.b16 %v2992
        %v3066 = vunpack.c.l.b16 %v2993
        %v3067 = vunpack.c.l.b16 %v2994
        %v3068 = vunpack.c.l.b16 %v2995
        %v3069 = vunpack.c.l.b16 %v2996
        %v3070 = vunpack.c.l.b16 %v2997
        %v3071 = vunpack.c.l.b16 %v2998
        %v3072 = vunpack.c.l.b16 %v2999
        %v3073 = vpack.c.b16 %v3042, %v3041
        %v3074 = vpack.c.b16 %v3044, %v3043
        %v3075 = vpack.c.b16 %v3046, %v3045
        %v3076 = vpack.c.b16 %v3048, %v3047
        %v3077 = vpack.c.b16 %v3050, %v3049
        %v3078 = vpack.c.b16 %v3052, %v3051
        %v3079 = vpack.c.b16 %v3054, %v3053
        %v3080 = vpack.c.b16 %v3056, %v3055
        %v3081 = vpack.c.b16 %v3058, %v3057
        %v3082 = vpack.c.b16 %v3060, %v3059
        %v3083 = vpack.c.b16 %v3062, %v3061
        %v3084 = vpack.c.b16 %v3064, %v3063
        %v3085 = vpack.c.b16 %v3066, %v3065
        %v3086 = vpack.c.b16 %v3068, %v3067
        %v3087 = vpack.c.b16 %v3070, %v3069
        %v3088 = vpack.c.b16 %v3072, %v3071
        %v3094 = vunpack.c.l.b16 %v3000
        %v3095 = vunpack.c.l.b16 %v3001
        %v3096 = vunpack.c.l.b16 %v3002
        %v3097 = vunpack.c.l.b16 %v3003
        %v3098 = vunpack.c.l.b16 %v3004
        %v3099 = vpack.c.b16 %v3095, %v3094
        %v3100 = vpack.c.b16 %v3097, %v3096
        %v3101 = vpack.c.b16 %v3098, %v3098
        %vm3104 = vcmask 293888
        %v3106 = vsel %vm3104, %v3073, 0
        %v3109 = vsel %vm3104, %v3074, 0
        %v3112 = vsel %vm3104, %v3075, 0
        %v3115 = vsel %vm3104, %v3076, 0
        %v3118 = vsel %vm3104, %v3077, 0
        %v3121 = vsel %vm3104, %v3078, 0
        %v3124 = vsel %vm3104, %v3079, 0
        %v3127 = vsel %vm3104, %v3080, 0
        %v3130 = vsel %vm3104, %v3081, 0
        %v3133 = vsel %vm3104, %v3082, 0
        %v3136 = vsel %vm3104, %v3083, 0
        %v3139 = vsel %vm3104, %v3084, 0
        %v3142 = vsel %vm3104, %v3085, 0
        %v3145 = vsel %vm3104, %v3086, 0
        %v3148 = vsel %vm3104, %v3087, 0
        %v3151 = vsel %vm3104, %v3088, 0
        %v3154 = vsel %vm530, %v3101, 0
        %3156 = vmatpush.bf16.msra.mxu0 0
        %3157 = vmatpush.bf16.msra.mxu0 0
        %3158 = vmatpush.bf16.msra.mxu0 0
        %3159 = vmatpush.bf16.msra.mxu0 0
        %3160 = vmatpush.bf16.msra.mxu0 0
        %3161 = vmatpush.bf16.msra.mxu0 %v3154
        %3162 = vmatpush.bf16.msra.mxu0 %v3100
        %3163 = vmatpush.bf16.msra.mxu0 %v3099
        %3164 = vmatmul.bf16.gmra.mxu0 %v3106
        %v3165 = vpop.f32.mrf.mxu0
        %v3166 = vadd.f32 %v3007, %v3165
        %v3167 = vpop.f32.mrf.mxu0
        %v3168 = vadd.f32 %v3007, %v3167
        %3169 = vmatmul.bf16.gmra.mxu0 %v3109
        %v3170 = vpop.f32.mrf.mxu0
        %v3171 = vadd.f32 %v3007, %v3170
        %v3172 = vpop.f32.mrf.mxu0
        %v3173 = vadd.f32 %v3007, %v3172
        %3174 = vmatmul.bf16.gmra.mxu0 %v3112
        %v3175 = vpop.f32.mrf.mxu0
        %v3176 = vadd.f32 %v3007, %v3175
        %v3177 = vpop.f32.mrf.mxu0
        %v3178 = vadd.f32 %v3007, %v3177
        %3179 = vmatmul.bf16.gmra.mxu0 %v3115
        %v3180 = vpop.f32.mrf.mxu0
        %v3181 = vadd.f32 %v3007, %v3180
        %v3182 = vpop.f32.mrf.mxu0
        %v3183 = vadd.f32 %v3007, %v3182
        %3184 = vmatmul.bf16.gmra.mxu0 %v3118
        %v3185 = vpop.f32.mrf.mxu0
        %v3186 = vadd.f32 %v3007, %v3185
        %v3187 = vpop.f32.mrf.mxu0
        %v3188 = vadd.f32 %v3007, %v3187
        %3189 = vmatmul.bf16.gmra.mxu0 %v3121
        %v3190 = vpop.f32.mrf.mxu0
        %v3191 = vadd.f32 %v3007, %v3190
        %v3192 = vpop.f32.mrf.mxu0
        %v3193 = vadd.f32 %v3007, %v3192
        %3194 = vmatmul.bf16.gmra.mxu0 %v3124
        %v3195 = vpop.f32.mrf.mxu0
        %v3196 = vadd.f32 %v3007, %v3195
        %v3197 = vpop.f32.mrf.mxu0
        %v3198 = vadd.f32 %v3007, %v3197
        %3199 = vmatmul.bf16.gmra.mxu0 %v3127
        %v3200 = vpop.f32.mrf.mxu0
        %v3201 = vadd.f32 %v3007, %v3200
        %v3202 = vpop.f32.mrf.mxu0
        %v3203 = vadd.f32 %v3007, %v3202
        %3204 = vmatmul.bf16.gmra.mxu0 %v3130
        %v3205 = vpop.f32.mrf.mxu0
        %v3206 = vadd.f32 %v3007, %v3205
        %v3207 = vpop.f32.mrf.mxu0
        %v3208 = vadd.f32 %v3007, %v3207
        %3209 = vmatmul.bf16.gmra.mxu0 %v3133
        %v3210 = vpop.f32.mrf.mxu0
        %v3211 = vadd.f32 %v3007, %v3210
        %v3212 = vpop.f32.mrf.mxu0
        %v3213 = vadd.f32 %v3007, %v3212
        %3214 = vmatmul.bf16.gmra.mxu0 %v3136
        %v3215 = vpop.f32.mrf.mxu0
        %v3216 = vadd.f32 %v3007, %v3215
        %v3217 = vpop.f32.mrf.mxu0
        %v3218 = vadd.f32 %v3007, %v3217
        %3219 = vmatmul.bf16.gmra.mxu0 %v3139
        %v3220 = vpop.f32.mrf.mxu0
        %v3221 = vadd.f32 %v3007, %v3220
        %v3222 = vpop.f32.mrf.mxu0
        %v3223 = vadd.f32 %v3007, %v3222
        %3224 = vmatmul.bf16.gmra.mxu0 %v3142
        %v3225 = vpop.f32.mrf.mxu0
        %v3226 = vadd.f32 %v3007, %v3225
        %v3227 = vpop.f32.mrf.mxu0
        %v3228 = vadd.f32 %v3007, %v3227
        %3229 = vmatmul.bf16.gmra.mxu0 %v3145
        %v3230 = vpop.f32.mrf.mxu0
        %v3231 = vadd.f32 %v3007, %v3230
        %v3232 = vpop.f32.mrf.mxu0
        %v3233 = vadd.f32 %v3007, %v3232
        %3234 = vmatmul.bf16.gmra.mxu0 %v3148
        %v3235 = vpop.f32.mrf.mxu0
        %v3236 = vadd.f32 %v3007, %v3235
        %v3237 = vpop.f32.mrf.mxu0
        %v3238 = vadd.f32 %v3007, %v3237
        %3239 = vmatmul.bf16.gmra.mxu0 %v3151
        %v3240 = vpop.f32.mrf.mxu0
        %v3241 = vadd.f32 %v3007, %v3240
        %v3242 = vpop.f32.mrf.mxu0
        %v3243 = vadd.f32 %v3007, %v3242
        %3244 = vdwg.mxu0
        %v3245 = vld [vmem:[%s5] sm:$0xf]
        %v3246 = vld [vmem:[%s5 + $0x4] sm:$0xf]
        %v3247 = vld [vmem:[%s5 + $0x8] sm:$0xf]
        %v3248 = vld [vmem:[%s5 + $0xc] sm:$0xf]
        %v3249 = vld [vmem:[%s5 + $0x10] sm:$0x3]
        %v3250 = vld [vmem:[%s6] sm:$0x1]
        %v3252 = vperm.slane %v3250, 0
        %3254 = vrot.lane.b32.xlu0 %v3073, 92
        %v3255 = vpop.permute.xlu0 %3254
        %3256 = vrot.lane.b32.xlu0 %v3074, 92
        %v3257 = vpop.permute.xlu0 %3256
        %3258 = vrot.lane.b32.xlu0 %v3075, 92
        %v3259 = vpop.permute.xlu0 %3258
        %3260 = vrot.lane.b32.xlu0 %v3076, 92
        %v3261 = vpop.permute.xlu0 %3260
        %3262 = vrot.lane.b32.xlu0 %v3077, 92
        %v3263 = vpop.permute.xlu0 %3262
        %3264 = vrot.lane.b32.xlu0 %v3078, 92
        %v3265 = vpop.permute.xlu0 %3264
        %3266 = vrot.lane.b32.xlu0 %v3079, 92
        %v3267 = vpop.permute.xlu0 %3266
        %3268 = vrot.lane.b32.xlu0 %v3080, 92
        %v3269 = vpop.permute.xlu0 %3268
        %3270 = vrot.lane.b32.xlu0 %v3081, 92
        %v3271 = vpop.permute.xlu0 %3270
        %3272 = vrot.lane.b32.xlu0 %v3082, 92
        %v3273 = vpop.permute.xlu0 %3272
        %3274 = vrot.lane.b32.xlu0 %v3083, 92
        %v3275 = vpop.permute.xlu0 %3274
        %3276 = vrot.lane.b32.xlu0 %v3084, 92
        %v3277 = vpop.permute.xlu0 %3276
        %3278 = vrot.lane.b32.xlu0 %v3085, 92
        %v3279 = vpop.permute.xlu0 %3278
        %3280 = vrot.lane.b32.xlu0 %v3086, 92
        %v3281 = vpop.permute.xlu0 %3280
        %3282 = vrot.lane.b32.xlu0 %v3087, 92
        %v3283 = vpop.permute.xlu0 %3282
        %3284 = vrot.lane.b32.xlu0 %v3088, 92
        %v3285 = vpop.permute.xlu0 %3284
        %v3291 = vunpack.c.l.b16 %v3245
        %v3292 = vunpack.c.l.b16 %v3246
        %v3293 = vunpack.c.l.b16 %v3247
        %v3294 = vunpack.c.l.b16 %v3248
        %v3295 = vunpack.c.l.b16 %v3249
        %v3296 = vpack.c.b16 %v3292, %v3291
        %v3297 = vpack.c.b16 %v3294, %v3293
        %v3298 = vpack.c.b16 %v3295, %v3295
        %v3302 = vsel %vm3104, %v3255, 0
        %v3305 = vsel %vm3104, %v3257, 0
        %v3308 = vsel %vm3104, %v3259, 0
        %v3311 = vsel %vm3104, %v3261, 0
        %v3314 = vsel %vm3104, %v3263, 0
        %v3317 = vsel %vm3104, %v3265, 0
        %v3320 = vsel %vm3104, %v3267, 0
        %v3323 = vsel %vm3104, %v3269, 0
        %v3326 = vsel %vm3104, %v3271, 0
        %v3329 = vsel %vm3104, %v3273, 0
        %v3332 = vsel %vm3104, %v3275, 0
        %v3335 = vsel %vm3104, %v3277, 0
        %v3338 = vsel %vm3104, %v3279, 0
        %v3341 = vsel %vm3104, %v3281, 0
        %v3344 = vsel %vm3104, %v3283, 0
        %v3347 = vsel %vm3104, %v3285, 0
        %v3350 = vsel %vm530, %v3298, 0
        %3352 = vmatpush.bf16.msra.mxu0 0
        %3353 = vmatpush.bf16.msra.mxu0 0
        %3354 = vmatpush.bf16.msra.mxu0 0
        %3355 = vmatpush.bf16.msra.mxu0 0
        %3356 = vmatpush.bf16.msra.mxu0 0
        %3357 = vmatpush.bf16.msra.mxu0 %v3350
        %3358 = vmatpush.bf16.msra.mxu0 %v3297
        %3359 = vmatpush.bf16.msra.mxu0 %v3296
        %3360 = vmatmul.bf16.gmra.mxu0 %v3302
        %v3361 = vpop.f32.mrf.mxu0
        %v3362 = vadd.f32 %v3252, %v3361
        %v3363 = vpop.f32.mrf.mxu0
        %v3364 = vadd.f32 %v3252, %v3363
        %3365 = vmatmul.bf16.gmra.mxu0 %v3305
        %v3366 = vpop.f32.mrf.mxu0
        %v3367 = vadd.f32 %v3252, %v3366
        %v3368 = vpop.f32.mrf.mxu0
        %v3369 = vadd.f32 %v3252, %v3368
        %3370 = vmatmul.bf16.gmra.mxu0 %v3308
        %v3371 = vpop.f32.mrf.mxu0
        %v3372 = vadd.f32 %v3252, %v3371
        %v3373 = vpop.f32.mrf.mxu0
        %v3374 = vadd.f32 %v3252, %v3373
        %3375 = vmatmul.bf16.gmra.mxu0 %v3311
        %v3376 = vpop.f32.mrf.mxu0
        %v3377 = vadd.f32 %v3252, %v3376
        %v3378 = vpop.f32.mrf.mxu0
        %v3379 = vadd.f32 %v3252, %v3378
        %3380 = vmatmul.bf16.gmra.mxu0 %v3314
        %v3381 = vpop.f32.mrf.mxu0
        %v3382 = vadd.f32 %v3252, %v3381
        %v3383 = vpop.f32.mrf.mxu0
        %v3384 = vadd.f32 %v3252, %v3383
        %3385 = vmatmul.bf16.gmra.mxu0 %v3317
        %v3386 = vpop.f32.mrf.mxu0
        %v3387 = vadd.f32 %v3252, %v3386
        %v3388 = vpop.f32.mrf.mxu0
        %v3389 = vadd.f32 %v3252, %v3388
        %3390 = vmatmul.bf16.gmra.mxu0 %v3320
        %v3391 = vpop.f32.mrf.mxu0
        %v3392 = vadd.f32 %v3252, %v3391
        %v3393 = vpop.f32.mrf.mxu0
        %v3394 = vadd.f32 %v3252, %v3393
        %3395 = vmatmul.bf16.gmra.mxu0 %v3323
        %v3396 = vpop.f32.mrf.mxu0
        %v3397 = vadd.f32 %v3252, %v3396
        %v3398 = vpop.f32.mrf.mxu0
        %v3399 = vadd.f32 %v3252, %v3398
        %3400 = vmatmul.bf16.gmra.mxu0 %v3326
        %v3401 = vpop.f32.mrf.mxu0
        %v3402 = vadd.f32 %v3252, %v3401
        %v3403 = vpop.f32.mrf.mxu0
        %v3404 = vadd.f32 %v3252, %v3403
        %3405 = vmatmul.bf16.gmra.mxu0 %v3329
        %v3406 = vpop.f32.mrf.mxu0
        %v3407 = vadd.f32 %v3252, %v3406
        %v3408 = vpop.f32.mrf.mxu0
        %v3409 = vadd.f32 %v3252, %v3408
        %3410 = vmatmul.bf16.gmra.mxu0 %v3332
        %v3411 = vpop.f32.mrf.mxu0
        %v3412 = vadd.f32 %v3252, %v3411
        %v3413 = vpop.f32.mrf.mxu0
        %v3414 = vadd.f32 %v3252, %v3413
        %3415 = vmatmul.bf16.gmra.mxu0 %v3335
        %v3416 = vpop.f32.mrf.mxu0
        %v3417 = vadd.f32 %v3252, %v3416
        %v3418 = vpop.f32.mrf.mxu0
        %v3419 = vadd.f32 %v3252, %v3418
        %3420 = vmatmul.bf16.gmra.mxu0 %v3338
        %v3421 = vpop.f32.mrf.mxu0
        %v3422 = vadd.f32 %v3252, %v3421
        %v3423 = vpop.f32.mrf.mxu0
        %v3424 = vadd.f32 %v3252, %v3423
        %3425 = vmatmul.bf16.gmra.mxu0 %v3341
        %v3426 = vpop.f32.mrf.mxu0
        %v3427 = vadd.f32 %v3252, %v3426
        %v3428 = vpop.f32.mrf.mxu0
        %v3429 = vadd.f32 %v3252, %v3428
        %3430 = vmatmul.bf16.gmra.mxu0 %v3344
        %v3431 = vpop.f32.mrf.mxu0
        %v3432 = vadd.f32 %v3252, %v3431
        %v3433 = vpop.f32.mrf.mxu0
        %v3434 = vadd.f32 %v3252, %v3433
        %3435 = vmatmul.bf16.gmra.mxu0 %v3347
        %v3436 = vpop.f32.mrf.mxu0
        %v3437 = vadd.f32 %v3252, %v3436
        %v3438 = vpop.f32.mrf.mxu0
        %v3439 = vadd.f32 %v3252, %v3438
        %3440 = vdwg.mxu0
        %3441 = vst.msk [vmem:[#allocation2] sm:$0xff] %vm481, -inf
        %3442 = vst.msk [vmem:[#allocation2 + $0x8] sm:$0xff] %vm481, -inf
        %vm3443 = vcmask 25600
        %3444 = vst.msk [vmem:[#allocation2 + $0x10] sm:$0x3] %vm3443, -inf
        %s3445 = scalar_lea.vmem [#allocation2], 408
        %3446 = vst.msk [vmem:[%s3445] sm:$0xff] %vm481, -inf
        %3447 = vst.msk [vmem:[%s3445 + $0x8] sm:$0xff] %vm481, -inf
        %3448 = vst.msk [vmem:[%s3445 + $0x10] sm:$0x3] %vm3443, -inf
        %3449 = vst.msk [vmem:[#allocation2] sm:$0x1] %vm630, -inf
        %3450 = vst.msk [vmem:[#allocation2 + $0x18] sm:$0x1] %vm630, -inf
        %3451 = vst.msk [vmem:[#allocation2 + $0x30] sm:$0x1] %vm630, -inf
        %3452 = vst.msk [vmem:[#allocation2 + $0x48] sm:$0x1] %vm630, -inf
        %3453 = vst.msk [vmem:[#allocation2 + $0x60] sm:$0x1] %vm630, -inf
        %3454 = vst.msk [vmem:[#allocation2 + $0x78] sm:$0x1] %vm630, -inf
        %3455 = vst.msk [vmem:[#allocation2 + $0x90] sm:$0x1] %vm630, -inf
        %3456 = vst.msk [vmem:[#allocation2 + $0xa8] sm:$0x1] %vm630, -inf
        %3457 = vst.msk [vmem:[#allocation2 + $0xc0] sm:$0x1] %vm630, -inf
        %3458 = vst.msk [vmem:[#allocation2 + $0xd8] sm:$0x1] %vm630, -inf
        %3459 = vst.msk [vmem:[#allocation2 + $0xf0] sm:$0x1] %vm630, -inf
        %3460 = vst.msk [vmem:[#allocation2 + $0x108] sm:$0x1] %vm630, -inf
        %3461 = vst.msk [vmem:[#allocation2 + $0x120] sm:$0x1] %vm630, -inf
        %3462 = vst.msk [vmem:[#allocation2 + $0x138] sm:$0x1] %vm630, -inf
        %3463 = vst.msk [vmem:[#allocation2 + $0x150] sm:$0x1] %vm630, -inf
        %3464 = vst.msk [vmem:[#allocation2 + $0x168] sm:$0x1] %vm630, -inf
        %3465 = vst.msk [vmem:[#allocation2 + $0x180] sm:$0x1] %vm630, -inf
        %3466 = vst.msk [vmem:[#allocation2 + $0x198] sm:$0x1] %vm630, -inf
        %3467 = vst.msk [vmem:[#allocation2 + $0x11] sm:$0x1] %vm630, -inf
        %3468 = vst.msk [vmem:[#allocation2 + $0x29] sm:$0x1] %vm630, -inf
        %3469 = vst.msk [vmem:[#allocation2 + $0x41] sm:$0x1] %vm630, -inf
        %3470 = vst.msk [vmem:[#allocation2 + $0x59] sm:$0x1] %vm630, -inf
        %3471 = vst.msk [vmem:[#allocation2 + $0x71] sm:$0x1] %vm630, -inf
        %3472 = vst.msk [vmem:[#allocation2 + $0x89] sm:$0x1] %vm630, -inf
        %3473 = vst.msk [vmem:[#allocation2 + $0xa1] sm:$0x1] %vm630, -inf
        %3474 = vst.msk [vmem:[#allocation2 + $0xb9] sm:$0x1] %vm630, -inf
        %3475 = vst.msk [vmem:[#allocation2 + $0xd1] sm:$0x1] %vm630, -inf
        %3476 = vst.msk [vmem:[#allocation2 + $0xe9] sm:$0x1] %vm630, -inf
        %3477 = vst.msk [vmem:[#allocation2 + $0x101] sm:$0x1] %vm630, -inf
        %3478 = vst.msk [vmem:[#allocation2 + $0x119] sm:$0x1] %vm630, -inf
        %3479 = vst.msk [vmem:[#allocation2 + $0x131] sm:$0x1] %vm630, -inf
        %3480 = vst.msk [vmem:[#allocation2 + $0x149] sm:$0x1] %vm630, -inf
        %3481 = vst.msk [vmem:[#allocation2 + $0x161] sm:$0x1] %vm630, -inf
        %3482 = vst.msk [vmem:[#allocation2 + $0x179] sm:$0x1] %vm630, -inf
        %3483 = vst.msk [vmem:[#allocation2 + $0x191] sm:$0x1] %vm630, -inf
        %3484 = vst.msk [vmem:[#allocation2 + $0x1a9] sm:$0x1] %vm630, -inf
        %s3485 = scalar_lea.vmem [#allocation2], 24
        %3486 = vst.msk [vmem:[%s3485 + $0x1] sm:$0xff] %vm481, %v332
        %3487 = vst.msk [vmem:[%s3485 + $0x9] sm:$0xff] %vm481, %v333
        %3488 = vst.msk [vmem:[%s3485 + $0x19] sm:$0xff] %vm481, %v334
        %3489 = vst.msk [vmem:[%s3485 + $0x21] sm:$0xff] %vm481, %v335
        %3490 = vst.msk [vmem:[%s3485 + $0x31] sm:$0xff] %vm481, %v336
        %3491 = vst.msk [vmem:[%s3485 + $0x39] sm:$0xff] %vm481, %v337
        %3492 = vst.msk [vmem:[%s3485 + $0x49] sm:$0xff] %vm481, %v338
        %3493 = vst.msk [vmem:[%s3485 + $0x51] sm:$0xff] %vm481, %v339
        %3494 = vst.msk [vmem:[%s3485 + $0x61] sm:$0xff] %vm481, %v340
        %3495 = vst.msk [vmem:[%s3485 + $0x69] sm:$0xff] %vm481, %v341
        %3496 = vst.msk [vmem:[%s3485 + $0x79] sm:$0xff] %vm481, %v342
        %3497 = vst.msk [vmem:[%s3485 + $0x81] sm:$0xff] %vm481, %v343
        %3498 = vst.msk [vmem:[%s3485 + $0x91] sm:$0xff] %vm481, %v344
        %3499 = vst.msk [vmem:[%s3485 + $0x99] sm:$0xff] %vm481, %v345
        %3500 = vst.msk [vmem:[%s3485 + $0xa9] sm:$0xff] %vm481, %v346
        %3501 = vst.msk [vmem:[%s3485 + $0xb1] sm:$0xff] %vm481, %v347
        %3502 = vst.msk [vmem:[%s3485 + $0xc1] sm:$0xff] %vm481, %v348
        %3503 = vst.msk [vmem:[%s3485 + $0xc9] sm:$0xff] %vm481, %v349
        %3504 = vst.msk [vmem:[%s3485 + $0xd9] sm:$0xff] %vm481, %v350
        %3505 = vst.msk [vmem:[%s3485 + $0xe1] sm:$0xff] %vm481, %v351
        %3506 = vst.msk [vmem:[%s3485 + $0xf1] sm:$0xff] %vm481, %v352
        %3507 = vst.msk [vmem:[%s3485 + $0xf9] sm:$0xff] %vm481, %v353
        %3508 = vst.msk [vmem:[%s3485 + $0x109] sm:$0xff] %vm481, %v354
        %3509 = vst.msk [vmem:[%s3485 + $0x111] sm:$0xff] %vm481, %v355
        %3510 = vst.msk [vmem:[%s3485 + $0x121] sm:$0xff] %vm481, %v356
        %3511 = vst.msk [vmem:[%s3485 + $0x129] sm:$0xff] %vm481, %v357
        %3512 = vst.msk [vmem:[%s3485 + $0x139] sm:$0xff] %vm481, %v358
        %3513 = vst.msk [vmem:[%s3485 + $0x141] sm:$0xff] %vm481, %v359
        %3514 = vst.msk [vmem:[%s3485 + $0x151] sm:$0xff] %vm481, %v360
        %3515 = vst.msk [vmem:[%s3485 + $0x159] sm:$0xff] %vm481, %v361
        %3516 = vst.msk [vmem:[%s3485 + $0x169] sm:$0xff] %vm481, %v362
        %3517 = vst.msk [vmem:[%s3485 + $0x171] sm:$0xff] %vm481, %v363
        %v3518 = vld [vmem:[#allocation2] sm:$0xff]
        %v3519 = vld [vmem:[#allocation2 + $0x8] sm:$0xff]
        %v3520 = vld [vmem:[#allocation2 + $0x18] sm:$0xff]
        %v3521 = vld [vmem:[#allocation2 + $0x20] sm:$0xff]
        %v3522 = vld [vmem:[#allocation2 + $0x30] sm:$0xff]
        %v3523 = vld [vmem:[#allocation2 + $0x38] sm:$0xff]
        %v3524 = vld [vmem:[#allocation2 + $0x48] sm:$0xff]
        %v3525 = vld [vmem:[#allocation2 + $0x50] sm:$0xff]
        %v3526 = vld [vmem:[#allocation2 + $0x60] sm:$0xff]
        %v3527 = vld [vmem:[#allocation2 + $0x68] sm:$0xff]
        %v3528 = vld [vmem:[#allocation2 + $0x78] sm:$0xff]
        %v3529 = vld [vmem:[#allocation2 + $0x80] sm:$0xff]
        %v3530 = vld [vmem:[#allocation2 + $0x90] sm:$0xff]
        %v3531 = vld [vmem:[#allocation2 + $0x98] sm:$0xff]
        %v3532 = vld [vmem:[#allocation2 + $0xa8] sm:$0xff]
        %v3533 = vld [vmem:[#allocation2 + $0xb0] sm:$0xff]
        %v3534 = vld [vmem:[#allocation2 + $0xc0] sm:$0xff]
        %v3535 = vld [vmem:[#allocation2 + $0xc8] sm:$0xff]
        %v3536 = vld [vmem:[#allocation2 + $0xd8] sm:$0xff]
        %v3537 = vld [vmem:[#allocation2 + $0xe0] sm:$0xff]
        %v3538 = vld [vmem:[#allocation2 + $0xf0] sm:$0xff]
        %v3539 = vld [vmem:[#allocation2 + $0xf8] sm:$0xff]
        %v3540 = vld [vmem:[#allocation2 + $0x108] sm:$0xff]
        %v3541 = vld [vmem:[#allocation2 + $0x110] sm:$0xff]
        %v3542 = vld [vmem:[#allocation2 + $0x120] sm:$0xff]
        %v3543 = vld [vmem:[#allocation2 + $0x128] sm:$0xff]
        %v3544 = vld [vmem:[#allocation2 + $0x138] sm:$0xff]
        %v3545 = vld [vmem:[#allocation2 + $0x140] sm:$0xff]
        %v3546 = vld [vmem:[#allocation2 + $0x150] sm:$0xff]
        %v3547 = vld [vmem:[#allocation2 + $0x158] sm:$0xff]
        %v3548 = vld [vmem:[#allocation2 + $0x168] sm:$0xff]
        %v3549 = vld [vmem:[#allocation2 + $0x170] sm:$0xff]
        %v3550 = vmax.f32 %v332, %v3518
        %v3551 = vmax.f32 %v333, %v3519
        %v3552 = vmax.f32 %v334, %v3520
        %v3553 = vmax.f32 %v335, %v3521
        %v3554 = vmax.f32 %v336, %v3522
        %v3555 = vmax.f32 %v337, %v3523
        %v3556 = vmax.f32 %v338, %v3524
        %v3557 = vmax.f32 %v339, %v3525
        %v3558 = vmax.f32 %v340, %v3526
        %v3559 = vmax.f32 %v341, %v3527
        %v3560 = vmax.f32 %v342, %v3528
        %v3561 = vmax.f32 %v343, %v3529
        %v3562 = vmax.f32 %v344, %v3530
        %v3563 = vmax.f32 %v345, %v3531
        %v3564 = vmax.f32 %v346, %v3532
        %v3565 = vmax.f32 %v347, %v3533
        %v3566 = vmax.f32 %v348, %v3534
        %v3567 = vmax.f32 %v349, %v3535
        %v3568 = vmax.f32 %v350, %v3536
        %v3569 = vmax.f32 %v351, %v3537
        %v3570 = vmax.f32 %v352, %v3538
        %v3571 = vmax.f32 %v353, %v3539
        %v3572 = vmax.f32 %v354, %v3540
        %v3573 = vmax.f32 %v355, %v3541
        %v3574 = vmax.f32 %v356, %v3542
        %v3575 = vmax.f32 %v357, %v3543
        %v3576 = vmax.f32 %v358, %v3544
        %v3577 = vmax.f32 %v359, %v3545
        %v3578 = vmax.f32 %v360, %v3546
        %v3579 = vmax.f32 %v361, %v3547
        %v3580 = vmax.f32 %v362, %v3548
        %v3581 = vmax.f32 %v363, %v3549
        %v3582 = vld [vmem:[#allocation2 + $0x1] sm:$0xff]
        %v3583 = vld [vmem:[#allocation2 + $0x9] sm:$0xff]
        %v3584 = vld [vmem:[#allocation2 + $0x19] sm:$0xff]
        %v3585 = vld [vmem:[#allocation2 + $0x21] sm:$0xff]
        %v3586 = vld [vmem:[#allocation2 + $0x31] sm:$0xff]
        %v3587 = vld [vmem:[#allocation2 + $0x39] sm:$0xff]
        %v3588 = vld [vmem:[#allocation2 + $0x49] sm:$0xff]
        %v3589 = vld [vmem:[#allocation2 + $0x51] sm:$0xff]
        %v3590 = vld [vmem:[#allocation2 + $0x61] sm:$0xff]
        %v3591 = vld [vmem:[#allocation2 + $0x69] sm:$0xff]
        %v3592 = vld [vmem:[#allocation2 + $0x79] sm:$0xff]
        %v3593 = vld [vmem:[#allocation2 + $0x81] sm:$0xff]
        %v3594 = vld [vmem:[#allocation2 + $0x91] sm:$0xff]
        %v3595 = vld [vmem:[#allocation2 + $0x99] sm:$0xff]
        %v3596 = vld [vmem:[#allocation2 + $0xa9] sm:$0xff]
        %v3597 = vld [vmem:[#allocation2 + $0xb1] sm:$0xff]
        %v3598 = vld [vmem:[#allocation2 + $0xc1] sm:$0xff]
        %v3599 = vld [vmem:[#allocation2 + $0xc9] sm:$0xff]
        %v3600 = vld [vmem:[#allocation2 + $0xd9] sm:$0xff]
        %v3601 = vld [vmem:[#allocation2 + $0xe1] sm:$0xff]
        %v3602 = vld [vmem:[#allocation2 + $0xf1] sm:$0xff]
        %v3603 = vld [vmem:[#allocation2 + $0xf9] sm:$0xff]
        %v3604 = vld [vmem:[#allocation2 + $0x109] sm:$0xff]
        %v3605 = vld [vmem:[#allocation2 + $0x111] sm:$0xff]
        %v3606 = vld [vmem:[#allocation2 + $0x121] sm:$0xff]
        %v3607 = vld [vmem:[#allocation2 + $0x129] sm:$0xff]
        %v3608 = vld [vmem:[#allocation2 + $0x139] sm:$0xff]
        %v3609 = vld [vmem:[#allocation2 + $0x141] sm:$0xff]
        %v3610 = vld [vmem:[#allocation2 + $0x151] sm:$0xff]
        %v3611 = vld [vmem:[#allocation2 + $0x159] sm:$0xff]
        %v3612 = vld [vmem:[#allocation2 + $0x169] sm:$0xff]
        %v3613 = vld [vmem:[#allocation2 + $0x171] sm:$0xff]
        %v3614 = vmax.f32 %v3550, %v3582
        %v3615 = vmax.f32 %v3551, %v3583
        %v3616 = vmax.f32 %v3552, %v3584
        %v3617 = vmax.f32 %v3553, %v3585
        %v3618 = vmax.f32 %v3554, %v3586
        %v3619 = vmax.f32 %v3555, %v3587
        %v3620 = vmax.f32 %v3556, %v3588
        %v3621 = vmax.f32 %v3557, %v3589
        %v3622 = vmax.f32 %v3558, %v3590
        %v3623 = vmax.f32 %v3559, %v3591
        %v3624 = vmax.f32 %v3560, %v3592
        %v3625 = vmax.f32 %v3561, %v3593
        %v3626 = vmax.f32 %v3562, %v3594
        %v3627 = vmax.f32 %v3563, %v3595
        %v3628 = vmax.f32 %v3564, %v3596
        %v3629 = vmax.f32 %v3565, %v3597
        %v3630 = vmax.f32 %v3566, %v3598
        %v3631 = vmax.f32 %v3567, %v3599
        %v3632 = vmax.f32 %v3568, %v3600
        %v3633 = vmax.f32 %v3569, %v3601
        %v3634 = vmax.f32 %v3570, %v3602
        %v3635 = vmax.f32 %v3571, %v3603
        %v3636 = vmax.f32 %v3572, %v3604
        %v3637 = vmax.f32 %v3573, %v3605
        %v3638 = vmax.f32 %v3574, %v3606
        %v3639 = vmax.f32 %v3575, %v3607
        %v3640 = vmax.f32 %v3576, %v3608
        %v3641 = vmax.f32 %v3577, %v3609
        %v3642 = vmax.f32 %v3578, %v3610
        %v3643 = vmax.f32 %v3579, %v3611
        %v3644 = vmax.f32 %v3580, %v3612
        %v3645 = vmax.f32 %v3581, %v3613
        %v3646 = vld [vmem:[#allocation2 + $0x2] sm:$0xff]
        %v3647 = vld [vmem:[#allocation2 + $0xa] sm:$0xff]
        %v3648 = vld [vmem:[#allocation2 + $0x1a] sm:$0xff]
        %v3649 = vld [vmem:[#allocation2 + $0x22] sm:$0xff]
        %v3650 = vld [vmem:[#allocation2 + $0x32] sm:$0xff]
        %v3651 = vld [vmem:[#allocation2 + $0x3a] sm:$0xff]
        %v3652 = vld [vmem:[#allocation2 + $0x4a] sm:$0xff]
        %v3653 = vld [vmem:[#allocation2 + $0x52] sm:$0xff]
        %v3654 = vld [vmem:[#allocation2 + $0x62] sm:$0xff]
        %v3655 = vld [vmem:[#allocation2 + $0x6a] sm:$0xff]
        %v3656 = vld [vmem:[#allocation2 + $0x7a] sm:$0xff]
        %v3657 = vld [vmem:[#allocation2 + $0x82] sm:$0xff]
        %v3658 = vld [vmem:[#allocation2 + $0x92] sm:$0xff]
        %v3659 = vld [vmem:[#allocation2 + $0x9a] sm:$0xff]
        %v3660 = vld [vmem:[#allocation2 + $0xaa] sm:$0xff]
        %v3661 = vld [vmem:[#allocation2 + $0xb2] sm:$0xff]
        %v3662 = vld [vmem:[#allocation2 + $0xc2] sm:$0xff]
        %v3663 = vld [vmem:[#allocation2 + $0xca] sm:$0xff]
        %v3664 = vld [vmem:[#allocation2 + $0xda] sm:$0xff]
        %v3665 = vld [vmem:[#allocation2 + $0xe2] sm:$0xff]
        %v3666 = vld [vmem:[#allocation2 + $0xf2] sm:$0xff]
        %v3667 = vld [vmem:[#allocation2 + $0xfa] sm:$0xff]
        %v3668 = vld [vmem:[#allocation2 + $0x10a] sm:$0xff]
        %v3669 = vld [vmem:[#allocation2 + $0x112] sm:$0xff]
        %v3670 = vld [vmem:[#allocation2 + $0x122] sm:$0xff]
        %v3671 = vld [vmem:[#allocation2 + $0x12a] sm:$0xff]
        %v3672 = vld [vmem:[#allocation2 + $0x13a] sm:$0xff]
        %v3673 = vld [vmem:[#allocation2 + $0x142] sm:$0xff]
        %v3674 = vld [vmem:[#allocation2 + $0x152] sm:$0xff]
        %v3675 = vld [vmem:[#allocation2 + $0x15a] sm:$0xff]
        %v3676 = vld [vmem:[#allocation2 + $0x16a] sm:$0xff]
        %v3677 = vld [vmem:[#allocation2 + $0x172] sm:$0xff]
        %v3678 = vmax.f32 %v3614, %v3646
        %v3679 = vmax.f32 %v3615, %v3647
        %v3680 = vmax.f32 %v3616, %v3648
        %v3681 = vmax.f32 %v3617, %v3649
        %v3682 = vmax.f32 %v3618, %v3650
        %v3683 = vmax.f32 %v3619, %v3651
        %v3684 = vmax.f32 %v3620, %v3652
        %v3685 = vmax.f32 %v3621, %v3653
        %v3686 = vmax.f32 %v3622, %v3654
        %v3687 = vmax.f32 %v3623, %v3655
        %v3688 = vmax.f32 %v3624, %v3656
        %v3689 = vmax.f32 %v3625, %v3657
        %v3690 = vmax.f32 %v3626, %v3658
        %v3691 = vmax.f32 %v3627, %v3659
        %v3692 = vmax.f32 %v3628, %v3660
        %v3693 = vmax.f32 %v3629, %v3661
        %v3694 = vmax.f32 %v3630, %v3662
        %v3695 = vmax.f32 %v3631, %v3663
        %v3696 = vmax.f32 %v3632, %v3664
        %v3697 = vmax.f32 %v3633, %v3665
        %v3698 = vmax.f32 %v3634, %v3666
        %v3699 = vmax.f32 %v3635, %v3667
        %v3700 = vmax.f32 %v3636, %v3668
        %v3701 = vmax.f32 %v3637, %v3669
        %v3702 = vmax.f32 %v3638, %v3670
        %v3703 = vmax.f32 %v3639, %v3671
        %v3704 = vmax.f32 %v3640, %v3672
        %v3705 = vmax.f32 %v3641, %v3673
        %v3706 = vmax.f32 %v3642, %v3674
        %v3707 = vmax.f32 %v3643, %v3675
        %v3708 = vmax.f32 %v3644, %v3676
        %v3709 = vmax.f32 %v3645, %v3677
        %v3710 = vld [vmem:[%s3485] sm:$0xff]
        %v3711 = vld [vmem:[%s3485 + $0x8] sm:$0xff]
        %v3712 = vld [vmem:[%s3485 + $0x18] sm:$0xff]
        %v3713 = vld [vmem:[%s3485 + $0x20] sm:$0xff]
        %v3714 = vld [vmem:[%s3485 + $0x30] sm:$0xff]
        %v3715 = vld [vmem:[%s3485 + $0x38] sm:$0xff]
        %v3716 = vld [vmem:[%s3485 + $0x48] sm:$0xff]
        %v3717 = vld [vmem:[%s3485 + $0x50] sm:$0xff]
        %v3718 = vld [vmem:[%s3485 + $0x60] sm:$0xff]
        %v3719 = vld [vmem:[%s3485 + $0x68] sm:$0xff]
        %v3720 = vld [vmem:[%s3485 + $0x78] sm:$0xff]
        %v3721 = vld [vmem:[%s3485 + $0x80] sm:$0xff]
        %v3722 = vld [vmem:[%s3485 + $0x90] sm:$0xff]
        %v3723 = vld [vmem:[%s3485 + $0x98] sm:$0xff]
        %v3724 = vld [vmem:[%s3485 + $0xa8] sm:$0xff]
        %v3725 = vld [vmem:[%s3485 + $0xb0] sm:$0xff]
        %v3726 = vld [vmem:[%s3485 + $0xc0] sm:$0xff]
        %v3727 = vld [vmem:[%s3485 + $0xc8] sm:$0xff]
        %v3728 = vld [vmem:[%s3485 + $0xd8] sm:$0xff]
        %v3729 = vld [vmem:[%s3485 + $0xe0] sm:$0xff]
        %v3730 = vld [vmem:[%s3485 + $0xf0] sm:$0xff]
        %v3731 = vld [vmem:[%s3485 + $0xf8] sm:$0xff]
        %v3732 = vld [vmem:[%s3485 + $0x108] sm:$0xff]
        %v3733 = vld [vmem:[%s3485 + $0x110] sm:$0xff]
        %v3734 = vld [vmem:[%s3485 + $0x120] sm:$0xff]
        %v3735 = vld [vmem:[%s3485 + $0x128] sm:$0xff]
        %v3736 = vld [vmem:[%s3485 + $0x138] sm:$0xff]
        %v3737 = vld [vmem:[%s3485 + $0x140] sm:$0xff]
        %v3738 = vld [vmem:[%s3485 + $0x150] sm:$0xff]
        %v3739 = vld [vmem:[%s3485 + $0x158] sm:$0xff]
        %v3740 = vld [vmem:[%s3485 + $0x168] sm:$0xff]
        %v3741 = vld [vmem:[%s3485 + $0x170] sm:$0xff]
        %v3742 = vmax.f32 %v3678, %v3710
        %v3743 = vmax.f32 %v3679, %v3711
        %v3744 = vmax.f32 %v3680, %v3712
        %v3745 = vmax.f32 %v3681, %v3713
        %v3746 = vmax.f32 %v3682, %v3714
        %v3747 = vmax.f32 %v3683, %v3715
        %v3748 = vmax.f32 %v3684, %v3716
        %v3749 = vmax.f32 %v3685, %v3717
        %v3750 = vmax.f32 %v3686, %v3718
        %v3751 = vmax.f32 %v3687, %v3719
        %v3752 = vmax.f32 %v3688, %v3720
        %v3753 = vmax.f32 %v3689, %v3721
        %v3754 = vmax.f32 %v3690, %v3722
        %v3755 = vmax.f32 %v3691, %v3723
        %v3756 = vmax.f32 %v3692, %v3724
        %v3757 = vmax.f32 %v3693, %v3725
        %v3758 = vmax.f32 %v3694, %v3726
        %v3759 = vmax.f32 %v3695, %v3727
        %v3760 = vmax.f32 %v3696, %v3728
        %v3761 = vmax.f32 %v3697, %v3729
        %v3762 = vmax.f32 %v3698, %v3730
        %v3763 = vmax.f32 %v3699, %v3731
        %v3764 = vmax.f32 %v3700, %v3732
        %v3765 = vmax.f32 %v3701, %v3733
        %v3766 = vmax.f32 %v3702, %v3734
        %v3767 = vmax.f32 %v3703, %v3735
        %v3768 = vmax.f32 %v3704, %v3736
        %v3769 = vmax.f32 %v3705, %v3737
        %v3770 = vmax.f32 %v3706, %v3738
        %v3771 = vmax.f32 %v3707, %v3739
        %v3772 = vmax.f32 %v3708, %v3740
        %v3773 = vmax.f32 %v3709, %v3741
        %v3774 = vld [vmem:[%s3485 + $0x2] sm:$0xff]
        %v3775 = vld [vmem:[%s3485 + $0xa] sm:$0xff]
        %v3776 = vld [vmem:[%s3485 + $0x1a] sm:$0xff]
        %v3777 = vld [vmem:[%s3485 + $0x22] sm:$0xff]
        %v3778 = vld [vmem:[%s3485 + $0x32] sm:$0xff]
        %v3779 = vld [vmem:[%s3485 + $0x3a] sm:$0xff]
        %v3780 = vld [vmem:[%s3485 + $0x4a] sm:$0xff]
        %v3781 = vld [vmem:[%s3485 + $0x52] sm:$0xff]
        %v3782 = vld [vmem:[%s3485 + $0x62] sm:$0xff]
        %v3783 = vld [vmem:[%s3485 + $0x6a] sm:$0xff]
        %v3784 = vld [vmem:[%s3485 + $0x7a] sm:$0xff]
        %v3785 = vld [vmem:[%s3485 + $0x82] sm:$0xff]
        %v3786 = vld [vmem:[%s3485 + $0x92] sm:$0xff]
        %v3787 = vld [vmem:[%s3485 + $0x9a] sm:$0xff]
        %v3788 = vld [vmem:[%s3485 + $0xaa] sm:$0xff]
        %v3789 = vld [vmem:[%s3485 + $0xb2] sm:$0xff]
        %v3790 = vld [vmem:[%s3485 + $0xc2] sm:$0xff]
        %v3791 = vld [vmem:[%s3485 + $0xca] sm:$0xff]
        %v3792 = vld [vmem:[%s3485 + $0xda] sm:$0xff]
        %v3793 = vld [vmem:[%s3485 + $0xe2] sm:$0xff]
        %v3794 = vld [vmem:[%s3485 + $0xf2] sm:$0xff]
        %v3795 = vld [vmem:[%s3485 + $0xfa] sm:$0xff]
        %v3796 = vld [vmem:[%s3485 + $0x10a] sm:$0xff]
        %v3797 = vld [vmem:[%s3485 + $0x112] sm:$0xff]
        %v3798 = vld [vmem:[%s3485 + $0x122] sm:$0xff]
        %v3799 = vld [vmem:[%s3485 + $0x12a] sm:$0xff]
        %v3800 = vld [vmem:[%s3485 + $0x13a] sm:$0xff]
        %v3801 = vld [vmem:[%s3485 + $0x142] sm:$0xff]
        %v3802 = vld [vmem:[%s3485 + $0x152] sm:$0xff]
        %v3803 = vld [vmem:[%s3485 + $0x15a] sm:$0xff]
        %v3804 = vld [vmem:[%s3485 + $0x16a] sm:$0xff]
        %v3805 = vld [vmem:[%s3485 + $0x172] sm:$0xff]
        %v3806 = vmax.f32 %v3742, %v3774
        %v3807 = vmax.f32 %v3743, %v3775
        %v3808 = vmax.f32 %v3744, %v3776
        %v3809 = vmax.f32 %v3745, %v3777
        %v3810 = vmax.f32 %v3746, %v3778
        %v3811 = vmax.f32 %v3747, %v3779
        %v3812 = vmax.f32 %v3748, %v3780
        %v3813 = vmax.f32 %v3749, %v3781
        %v3814 = vmax.f32 %v3750, %v3782
        %v3815 = vmax.f32 %v3751, %v3783
        %v3816 = vmax.f32 %v3752, %v3784
        %v3817 = vmax.f32 %v3753, %v3785
        %v3818 = vmax.f32 %v3754, %v3786
        %v3819 = vmax.f32 %v3755, %v3787
        %v3820 = vmax.f32 %v3756, %v3788
        %v3821 = vmax.f32 %v3757, %v3789
        %v3822 = vmax.f32 %v3758, %v3790
        %v3823 = vmax.f32 %v3759, %v3791
        %v3824 = vmax.f32 %v3760, %v3792
        %v3825 = vmax.f32 %v3761, %v3793
        %v3826 = vmax.f32 %v3762, %v3794
        %v3827 = vmax.f32 %v3763, %v3795
        %v3828 = vmax.f32 %v3764, %v3796
        %v3829 = vmax.f32 %v3765, %v3797
        %v3830 = vmax.f32 %v3766, %v3798
        %v3831 = vmax.f32 %v3767, %v3799
        %v3832 = vmax.f32 %v3768, %v3800
        %v3833 = vmax.f32 %v3769, %v3801
        %v3834 = vmax.f32 %v3770, %v3802
        %v3835 = vmax.f32 %v3771, %v3803
        %v3836 = vmax.f32 %v3772, %v3804
        %v3837 = vmax.f32 %v3773, %v3805
        %s3838 = scalar_lea.vmem [#allocation2], 48
        %v3839 = vld [vmem:[%s3838] sm:$0xff]
        %v3840 = vld [vmem:[%s3838 + $0x8] sm:$0xff]
        %v3841 = vld [vmem:[%s3838 + $0x18] sm:$0xff]
        %v3842 = vld [vmem:[%s3838 + $0x20] sm:$0xff]
        %v3843 = vld [vmem:[%s3838 + $0x30] sm:$0xff]
        %v3844 = vld [vmem:[%s3838 + $0x38] sm:$0xff]
        %v3845 = vld [vmem:[%s3838 + $0x48] sm:$0xff]
        %v3846 = vld [vmem:[%s3838 + $0x50] sm:$0xff]
        %v3847 = vld [vmem:[%s3838 + $0x60] sm:$0xff]
        %v3848 = vld [vmem:[%s3838 + $0x68] sm:$0xff]
        %v3849 = vld [vmem:[%s3838 + $0x78] sm:$0xff]
        %v3850 = vld [vmem:[%s3838 + $0x80] sm:$0xff]
        %v3851 = vld [vmem:[%s3838 + $0x90] sm:$0xff]
        %v3852 = vld [vmem:[%s3838 + $0x98] sm:$0xff]
        %v3853 = vld [vmem:[%s3838 + $0xa8] sm:$0xff]
        %v3854 = vld [vmem:[%s3838 + $0xb0] sm:$0xff]
        %v3855 = vld [vmem:[%s3838 + $0xc0] sm:$0xff]
        %v3856 = vld [vmem:[%s3838 + $0xc8] sm:$0xff]
        %v3857 = vld [vmem:[%s3838 + $0xd8] sm:$0xff]
        %v3858 = vld [vmem:[%s3838 + $0xe0] sm:$0xff]
        %v3859 = vld [vmem:[%s3838 + $0xf0] sm:$0xff]
        %v3860 = vld [vmem:[%s3838 + $0xf8] sm:$0xff]
        %v3861 = vld [vmem:[%s3838 + $0x108] sm:$0xff]
        %v3862 = vld [vmem:[%s3838 + $0x110] sm:$0xff]
        %v3863 = vld [vmem:[%s3838 + $0x120] sm:$0xff]
        %v3864 = vld [vmem:[%s3838 + $0x128] sm:$0xff]
        %v3865 = vld [vmem:[%s3838 + $0x138] sm:$0xff]
        %v3866 = vld [vmem:[%s3838 + $0x140] sm:$0xff]
        %v3867 = vld [vmem:[%s3838 + $0x150] sm:$0xff]
        %v3868 = vld [vmem:[%s3838 + $0x158] sm:$0xff]
        %v3869 = vld [vmem:[%s3838 + $0x168] sm:$0xff]
        %v3870 = vld [vmem:[%s3838 + $0x170] sm:$0xff]
        %v3871 = vmax.f32 %v3806, %v3839
        %v3872 = vmax.f32 %v3807, %v3840
        %v3873 = vmax.f32 %v3808, %v3841
        %v3874 = vmax.f32 %v3809, %v3842
        %v3875 = vmax.f32 %v3810, %v3843
        %v3876 = vmax.f32 %v3811, %v3844
        %v3877 = vmax.f32 %v3812, %v3845
        %v3878 = vmax.f32 %v3813, %v3846
        %v3879 = vmax.f32 %v3814, %v3847
        %v3880 = vmax.f32 %v3815, %v3848
        %v3881 = vmax.f32 %v3816, %v3849
        %v3882 = vmax.f32 %v3817, %v3850
        %v3883 = vmax.f32 %v3818, %v3851
        %v3884 = vmax.f32 %v3819, %v3852
        %v3885 = vmax.f32 %v3820, %v3853
        %v3886 = vmax.f32 %v3821, %v3854
        %v3887 = vmax.f32 %v3822, %v3855
        %v3888 = vmax.f32 %v3823, %v3856
        %v3889 = vmax.f32 %v3824, %v3857
        %v3890 = vmax.f32 %v3825, %v3858
        %v3891 = vmax.f32 %v3826, %v3859
        %v3892 = vmax.f32 %v3827, %v3860
        %v3893 = vmax.f32 %v3828, %v3861
        %v3894 = vmax.f32 %v3829, %v3862
        %v3895 = vmax.f32 %v3830, %v3863
        %v3896 = vmax.f32 %v3831, %v3864
        %v3897 = vmax.f32 %v3832, %v3865
        %v3898 = vmax.f32 %v3833, %v3866
        %v3899 = vmax.f32 %v3834, %v3867
        %v3900 = vmax.f32 %v3835, %v3868
        %v3901 = vmax.f32 %v3836, %v3869
        %v3902 = vmax.f32 %v3837, %v3870
        %v3903 = vld [vmem:[%s3838 + $0x1] sm:$0xff]
        %v3904 = vld [vmem:[%s3838 + $0x9] sm:$0xff]
        %v3905 = vld [vmem:[%s3838 + $0x19] sm:$0xff]
        %v3906 = vld [vmem:[%s3838 + $0x21] sm:$0xff]
        %v3907 = vld [vmem:[%s3838 + $0x31] sm:$0xff]
        %v3908 = vld [vmem:[%s3838 + $0x39] sm:$0xff]
        %v3909 = vld [vmem:[%s3838 + $0x49] sm:$0xff]
        %v3910 = vld [vmem:[%s3838 + $0x51] sm:$0xff]
        %v3911 = vld [vmem:[%s3838 + $0x61] sm:$0xff]
        %v3912 = vld [vmem:[%s3838 + $0x69] sm:$0xff]
        %v3913 = vld [vmem:[%s3838 + $0x79] sm:$0xff]
        %v3914 = vld [vmem:[%s3838 + $0x81] sm:$0xff]
        %v3915 = vld [vmem:[%s3838 + $0x91] sm:$0xff]
        %v3916 = vld [vmem:[%s3838 + $0x99] sm:$0xff]
        %v3917 = vld [vmem:[%s3838 + $0xa9] sm:$0xff]
        %v3918 = vld [vmem:[%s3838 + $0xb1] sm:$0xff]
        %v3919 = vld [vmem:[%s3838 + $0xc1] sm:$0xff]
        %v3920 = vld [vmem:[%s3838 + $0xc9] sm:$0xff]
        %v3921 = vld [vmem:[%s3838 + $0xd9] sm:$0xff]
        %v3922 = vld [vmem:[%s3838 + $0xe1] sm:$0xff]
        %v3923 = vld [vmem:[%s3838 + $0xf1] sm:$0xff]
        %v3924 = vld [vmem:[%s3838 + $0xf9] sm:$0xff]
        %v3925 = vld [vmem:[%s3838 + $0x109] sm:$0xff]
        %v3926 = vld [vmem:[%s3838 + $0x111] sm:$0xff]
        %v3927 = vld [vmem:[%s3838 + $0x121] sm:$0xff]
        %v3928 = vld [vmem:[%s3838 + $0x129] sm:$0xff]
        %v3929 = vld [vmem:[%s3838 + $0x139] sm:$0xff]
        %v3930 = vld [vmem:[%s3838 + $0x141] sm:$0xff]
        %v3931 = vld [vmem:[%s3838 + $0x151] sm:$0xff]
        %v3932 = vld [vmem:[%s3838 + $0x159] sm:$0xff]
        %v3933 = vld [vmem:[%s3838 + $0x169] sm:$0xff]
        %v3934 = vld [vmem:[%s3838 + $0x171] sm:$0xff]
        %v3935 = vmax.f32 %v3871, %v3903
        %v3936 = vmax.f32 %v3872, %v3904
        %v3937 = vmax.f32 %v3873, %v3905
        %v3938 = vmax.f32 %v3874, %v3906
        %v3939 = vmax.f32 %v3875, %v3907
        %v3940 = vmax.f32 %v3876, %v3908
        %v3941 = vmax.f32 %v3877, %v3909
        %v3942 = vmax.f32 %v3878, %v3910
        %v3943 = vmax.f32 %v3879, %v3911
        %v3944 = vmax.f32 %v3880, %v3912
        %v3945 = vmax.f32 %v3881, %v3913
        %v3946 = vmax.f32 %v3882, %v3914
        %v3947 = vmax.f32 %v3883, %v3915
        %v3948 = vmax.f32 %v3884, %v3916
        %v3949 = vmax.f32 %v3885, %v3917
        %v3950 = vmax.f32 %v3886, %v3918
        %v3951 = vmax.f32 %v3887, %v3919
        %v3952 = vmax.f32 %v3888, %v3920
        %v3953 = vmax.f32 %v3889, %v3921
        %v3954 = vmax.f32 %v3890, %v3922
        %v3955 = vmax.f32 %v3891, %v3923
        %v3956 = vmax.f32 %v3892, %v3924
        %v3957 = vmax.f32 %v3893, %v3925
        %v3958 = vmax.f32 %v3894, %v3926
        %v3959 = vmax.f32 %v3895, %v3927
        %v3960 = vmax.f32 %v3896, %v3928
        %v3961 = vmax.f32 %v3897, %v3929
        %v3962 = vmax.f32 %v3898, %v3930
        %v3963 = vmax.f32 %v3899, %v3931
        %v3964 = vmax.f32 %v3900, %v3932
        %v3965 = vmax.f32 %v3901, %v3933
        %v3966 = vmax.f32 %v3902, %v3934
        %v3967 = vld [vmem:[%s3838 + $0x2] sm:$0xff]
        %v3968 = vld [vmem:[%s3838 + $0xa] sm:$0xff]
        %v3969 = vld [vmem:[%s3838 + $0x1a] sm:$0xff]
        %v3970 = vld [vmem:[%s3838 + $0x22] sm:$0xff]
        %v3971 = vld [vmem:[%s3838 + $0x32] sm:$0xff]
        %v3972 = vld [vmem:[%s3838 + $0x3a] sm:$0xff]
        %v3973 = vld [vmem:[%s3838 + $0x4a] sm:$0xff]
        %v3974 = vld [vmem:[%s3838 + $0x52] sm:$0xff]
        %v3975 = vld [vmem:[%s3838 + $0x62] sm:$0xff]
        %v3976 = vld [vmem:[%s3838 + $0x6a] sm:$0xff]
        %v3977 = vld [vmem:[%s3838 + $0x7a] sm:$0xff]
        %v3978 = vld [vmem:[%s3838 + $0x82] sm:$0xff]
        %v3979 = vld [vmem:[%s3838 + $0x92] sm:$0xff]
        %v3980 = vld [vmem:[%s3838 + $0x9a] sm:$0xff]
        %v3981 = vld [vmem:[%s3838 + $0xaa] sm:$0xff]
        %v3982 = vld [vmem:[%s3838 + $0xb2] sm:$0xff]
        %v3983 = vld [vmem:[%s3838 + $0xc2] sm:$0xff]
        %v3984 = vld [vmem:[%s3838 + $0xca] sm:$0xff]
        %v3985 = vld [vmem:[%s3838 + $0xda] sm:$0xff]
        %v3986 = vld [vmem:[%s3838 + $0xe2] sm:$0xff]
        %v3987 = vld [vmem:[%s3838 + $0xf2] sm:$0xff]
        %v3988 = vld [vmem:[%s3838 + $0xfa] sm:$0xff]
        %v3989 = vld [vmem:[%s3838 + $0x10a] sm:$0xff]
        %v3990 = vld [vmem:[%s3838 + $0x112] sm:$0xff]
        %v3991 = vld [vmem:[%s3838 + $0x122] sm:$0xff]
        %v3992 = vld [vmem:[%s3838 + $0x12a] sm:$0xff]
        %v3993 = vld [vmem:[%s3838 + $0x13a] sm:$0xff]
        %v3994 = vld [vmem:[%s3838 + $0x142] sm:$0xff]
        %v3995 = vld [vmem:[%s3838 + $0x152] sm:$0xff]
        %v3996 = vld [vmem:[%s3838 + $0x15a] sm:$0xff]
        %v3997 = vld [vmem:[%s3838 + $0x16a] sm:$0xff]
        %v3998 = vld [vmem:[%s3838 + $0x172] sm:$0xff]
        %v3999 = vmax.f32 %v3935, %v3967
        %v4000 = vmax.f32 %v3936, %v3968
        %v4001 = vmax.f32 %v3937, %v3969
        %v4002 = vmax.f32 %v3938, %v3970
        %v4003 = vmax.f32 %v3939, %v3971
        %v4004 = vmax.f32 %v3940, %v3972
        %v4005 = vmax.f32 %v3941, %v3973
        %v4006 = vmax.f32 %v3942, %v3974
        %v4007 = vmax.f32 %v3943, %v3975
        %v4008 = vmax.f32 %v3944, %v3976
        %v4009 = vmax.f32 %v3945, %v3977
        %v4010 = vmax.f32 %v3946, %v3978
        %v4011 = vmax.f32 %v3947, %v3979
        %v4012 = vmax.f32 %v3948, %v3980
        %v4013 = vmax.f32 %v3949, %v3981
        %v4014 = vmax.f32 %v3950, %v3982
        %v4015 = vmax.f32 %v3951, %v3983
        %v4016 = vmax.f32 %v3952, %v3984
        %v4017 = vmax.f32 %v3953, %v3985
        %v4018 = vmax.f32 %v3954, %v3986
        %v4019 = vmax.f32 %v3955, %v3987
        %v4020 = vmax.f32 %v3956, %v3988
        %v4021 = vmax.f32 %v3957, %v3989
        %v4022 = vmax.f32 %v3958, %v3990
        %v4023 = vmax.f32 %v3959, %v3991
        %v4024 = vmax.f32 %v3960, %v3992
        %v4025 = vmax.f32 %v3961, %v3993
        %v4026 = vmax.f32 %v3962, %v3994
        %v4027 = vmax.f32 %v3963, %v3995
        %v4028 = vmax.f32 %v3964, %v3996
        %v4029 = vmax.f32 %v3965, %v3997
        %v4030 = vmax.f32 %v3966, %v3998
        %v4031 = vpack.c.bf16 %v3999, %v3999
        %v4032 = vpack.c.bf16 %v4000, %v4000
        %v4033 = vpack.c.bf16 %v4001, %v4001
        %v4034 = vpack.c.bf16 %v4002, %v4002
        %v4035 = vpack.c.bf16 %v4003, %v4003
        %v4036 = vpack.c.bf16 %v4004, %v4004
        %v4037 = vpack.c.bf16 %v4005, %v4005
        %v4038 = vpack.c.bf16 %v4006, %v4006
        %v4039 = vpack.c.bf16 %v4007, %v4007
        %v4040 = vpack.c.bf16 %v4008, %v4008
        %v4041 = vpack.c.bf16 %v4009, %v4009
        %v4042 = vpack.c.bf16 %v4010, %v4010
        %v4043 = vpack.c.bf16 %v4011, %v4011
        %v4044 = vpack.c.bf16 %v4012, %v4012
        %v4045 = vpack.c.bf16 %v4013, %v4013
        %v4046 = vpack.c.bf16 %v4014, %v4014
        %v4047 = vpack.c.bf16 %v4015, %v4015
        %v4048 = vpack.c.bf16 %v4016, %v4016
        %v4049 = vpack.c.bf16 %v4017, %v4017
        %v4050 = vpack.c.bf16 %v4018, %v4018
        %v4051 = vpack.c.bf16 %v4019, %v4019
        %v4052 = vpack.c.bf16 %v4020, %v4020
        %v4053 = vpack.c.bf16 %v4021, %v4021
        %v4054 = vpack.c.bf16 %v4022, %v4022
        %v4055 = vpack.c.bf16 %v4023, %v4023
        %v4056 = vpack.c.bf16 %v4024, %v4024
        %v4057 = vpack.c.bf16 %v4025, %v4025
        %v4058 = vpack.c.bf16 %v4026, %v4026
        %v4059 = vpack.c.bf16 %v4027, %v4027
        %v4060 = vpack.c.bf16 %v4028, %v4028
        %v4061 = vpack.c.bf16 %v4029, %v4029
        %v4062 = vpack.c.bf16 %v4030, %v4030
        %v4063 = vld [vmem:[%s7] sm:$0x3]
        %v4064 = vld [vmem:[%s8] sm:$0x1]
        %v4066 = vperm.slane %v4064, 0
        %v4100 = vunpack.c.l.b16 %v4031
        %v4101 = vunpack.c.l.b16 %v4032
        %v4102 = vunpack.c.l.b16 %v4033
        %v4103 = vunpack.c.l.b16 %v4034
        %v4104 = vunpack.c.l.b16 %v4035
        %v4105 = vunpack.c.l.b16 %v4036
        %v4106 = vunpack.c.l.b16 %v4037
        %v4107 = vunpack.c.l.b16 %v4038
        %v4108 = vunpack.c.l.b16 %v4039
        %v4109 = vunpack.c.l.b16 %v4040
        %v4110 = vunpack.c.l.b16 %v4041
        %v4111 = vunpack.c.l.b16 %v4042
        %v4112 = vunpack.c.l.b16 %v4043
        %v4113 = vunpack.c.l.b16 %v4044
        %v4114 = vunpack.c.l.b16 %v4045
        %v4115 = vunpack.c.l.b16 %v4046
        %v4116 = vunpack.c.l.b16 %v4047
        %v4117 = vunpack.c.l.b16 %v4048
        %v4118 = vunpack.c.l.b16 %v4049
        %v4119 = vunpack.c.l.b16 %v4050
        %v4120 = vunpack.c.l.b16 %v4051
        %v4121 = vunpack.c.l.b16 %v4052
        %v4122 = vunpack.c.l.b16 %v4053
        %v4123 = vunpack.c.l.b16 %v4054
        %v4124 = vunpack.c.l.b16 %v4055
        %v4125 = vunpack.c.l.b16 %v4056
        %v4126 = vunpack.c.l.b16 %v4057
        %v4127 = vunpack.c.l.b16 %v4058
        %v4128 = vunpack.c.l.b16 %v4059
        %v4129 = vunpack.c.l.b16 %v4060
        %v4130 = vunpack.c.l.b16 %v4061
        %v4131 = vunpack.c.l.b16 %v4062
        %v4132 = vpack.c.b16 %v4101, %v4100
        %v4133 = vpack.c.b16 %v4103, %v4102
        %v4134 = vpack.c.b16 %v4105, %v4104
        %v4135 = vpack.c.b16 %v4107, %v4106
        %v4136 = vpack.c.b16 %v4109, %v4108
        %v4137 = vpack.c.b16 %v4111, %v4110
        %v4138 = vpack.c.b16 %v4113, %v4112
        %v4139 = vpack.c.b16 %v4115, %v4114
        %v4140 = vpack.c.b16 %v4117, %v4116
        %v4141 = vpack.c.b16 %v4119, %v4118
        %v4142 = vpack.c.b16 %v4121, %v4120
        %v4143 = vpack.c.b16 %v4123, %v4122
        %v4144 = vpack.c.b16 %v4125, %v4124
        %v4145 = vpack.c.b16 %v4127, %v4126
        %v4146 = vpack.c.b16 %v4129, %v4128
        %v4147 = vpack.c.b16 %v4131, %v4130
        %v4149 = vsel %vm481, %v4132, 0
        %v4152 = vsel %vm481, %v4133, 0
        %v4155 = vsel %vm481, %v4134, 0
        %v4158 = vsel %vm481, %v4135, 0
        %v4161 = vsel %vm481, %v4136, 0
        %v4164 = vsel %vm481, %v4137, 0
        %v4167 = vsel %vm481, %v4138, 0
        %v4170 = vsel %vm481, %v4139, 0
        %v4173 = vsel %vm481, %v4140, 0
        %v4176 = vsel %vm481, %v4141, 0
        %v4179 = vsel %vm481, %v4142, 0
        %v4182 = vsel %vm481, %v4143, 0
        %v4185 = vsel %vm481, %v4144, 0
        %v4188 = vsel %vm481, %v4145, 0
        %v4191 = vsel %vm481, %v4146, 0
        %v4194 = vsel %vm481, %v4147, 0
        %v4197 = vsel %vm530, %v4063, 0
        %4199 = vmatpush.bf16.msra.mxu0 0
        %4200 = vmatpush.bf16.msra.mxu0 0
        %4201 = vmatpush.bf16.msra.mxu0 0
        %4202 = vmatpush.bf16.msra.mxu0 0
        %4203 = vmatpush.bf16.msra.mxu0 0
        %4204 = vmatpush.bf16.msra.mxu0 0
        %4205 = vmatpush.bf16.msra.mxu0 0
        %4206 = vmatpush.bf16.msra.mxu0 %v4197
        %4207 = vmatmul.bf16.gmra.mxu0 %v4149
        %v4208 = vpop.f32.mrf.mxu0
        %v4209 = vadd.f32 %v4066, %v4208
        %v4210 = vpop.f32.mrf.mxu0
        %v4211 = vadd.f32 %v4066, %v4210
        %4212 = vmatmul.bf16.gmra.mxu0 %v4152
        %v4213 = vpop.f32.mrf.mxu0
        %v4214 = vadd.f32 %v4066, %v4213
        %v4215 = vpop.f32.mrf.mxu0
        %v4216 = vadd.f32 %v4066, %v4215
        %4217 = vmatmul.bf16.gmra.mxu0 %v4155
        %v4218 = vpop.f32.mrf.mxu0
        %v4219 = vadd.f32 %v4066, %v4218
        %v4220 = vpop.f32.mrf.mxu0
        %v4221 = vadd.f32 %v4066, %v4220
        %4222 = vmatmul.bf16.gmra.mxu0 %v4158
        %v4223 = vpop.f32.mrf.mxu0
        %v4224 = vadd.f32 %v4066, %v4223
        %v4225 = vpop.f32.mrf.mxu0
        %v4226 = vadd.f32 %v4066, %v4225
        %4227 = vmatmul.bf16.gmra.mxu0 %v4161
        %v4228 = vpop.f32.mrf.mxu0
        %v4229 = vadd.f32 %v4066, %v4228
        %v4230 = vpop.f32.mrf.mxu0
        %v4231 = vadd.f32 %v4066, %v4230
        %4232 = vmatmul.bf16.gmra.mxu0 %v4164
        %v4233 = vpop.f32.mrf.mxu0
        %v4234 = vadd.f32 %v4066, %v4233
        %v4235 = vpop.f32.mrf.mxu0
        %v4236 = vadd.f32 %v4066, %v4235
        %4237 = vmatmul.bf16.gmra.mxu0 %v4167
        %v4238 = vpop.f32.mrf.mxu0
        %v4239 = vadd.f32 %v4066, %v4238
        %v4240 = vpop.f32.mrf.mxu0
        %v4241 = vadd.f32 %v4066, %v4240
        %4242 = vmatmul.bf16.gmra.mxu0 %v4170
        %v4243 = vpop.f32.mrf.mxu0
        %v4244 = vadd.f32 %v4066, %v4243
        %v4245 = vpop.f32.mrf.mxu0
        %v4246 = vadd.f32 %v4066, %v4245
        %4247 = vmatmul.bf16.gmra.mxu0 %v4173
        %v4248 = vpop.f32.mrf.mxu0
        %v4249 = vadd.f32 %v4066, %v4248
        %v4250 = vpop.f32.mrf.mxu0
        %v4251 = vadd.f32 %v4066, %v4250
        %4252 = vmatmul.bf16.gmra.mxu0 %v4176
        %v4253 = vpop.f32.mrf.mxu0
        %v4254 = vadd.f32 %v4066, %v4253
        %v4255 = vpop.f32.mrf.mxu0
        %v4256 = vadd.f32 %v4066, %v4255
        %4257 = vmatmul.bf16.gmra.mxu0 %v4179
        %v4258 = vpop.f32.mrf.mxu0
        %v4259 = vadd.f32 %v4066, %v4258
        %v4260 = vpop.f32.mrf.mxu0
        %v4261 = vadd.f32 %v4066, %v4260
        %4262 = vmatmul.bf16.gmra.mxu0 %v4182
        %v4263 = vpop.f32.mrf.mxu0
        %v4264 = vadd.f32 %v4066, %v4263
        %v4265 = vpop.f32.mrf.mxu0
        %v4266 = vadd.f32 %v4066, %v4265
        %4267 = vmatmul.bf16.gmra.mxu0 %v4185
        %v4268 = vpop.f32.mrf.mxu0
        %v4269 = vadd.f32 %v4066, %v4268
        %v4270 = vpop.f32.mrf.mxu0
        %v4271 = vadd.f32 %v4066, %v4270
        %4272 = vmatmul.bf16.gmra.mxu0 %v4188
        %v4273 = vpop.f32.mrf.mxu0
        %v4274 = vadd.f32 %v4066, %v4273
        %v4275 = vpop.f32.mrf.mxu0
        %v4276 = vadd.f32 %v4066, %v4275
        %4277 = vmatmul.bf16.gmra.mxu0 %v4191
        %v4278 = vpop.f32.mrf.mxu0
        %v4279 = vadd.f32 %v4066, %v4278
        %v4280 = vpop.f32.mrf.mxu0
        %v4281 = vadd.f32 %v4066, %v4280
        %4282 = vmatmul.bf16.gmra.mxu0 %v4194
        %v4283 = vpop.f32.mrf.mxu0
        %v4284 = vadd.f32 %v4066, %v4283
        %v4285 = vpop.f32.mrf.mxu0
        %v4286 = vadd.f32 %v4066, %v4285
        %4287 = vdwg.mxu0
        %vm4288 = vcmask 64512
        %4289 = vst.msk [vmem:[%s325] sm:$0xff] %vm4288, %v544
        %4290 = vst.msk [vmem:[%s325 + $0x8] sm:$0xff] %vm4288, %v546
        %4291 = vst.msk [vmem:[%s325 + $0x10] sm:$0xff] %vm4288, %v549
        %4292 = vst.msk [vmem:[%s325 + $0x18] sm:$0xff] %vm4288, %v551
        %4293 = vst.msk [vmem:[%s325 + $0x20] sm:$0xff] %vm4288, %v554
        %4294 = vst.msk [vmem:[%s325 + $0x28] sm:$0xff] %vm4288, %v556
        %4295 = vst.msk [vmem:[%s325 + $0x30] sm:$0xff] %vm4288, %v559
        %4296 = vst.msk [vmem:[%s325 + $0x38] sm:$0xff] %vm4288, %v561
        %4297 = vst.msk [vmem:[%s325 + $0x40] sm:$0xff] %vm4288, %v564
        %4298 = vst.msk [vmem:[%s325 + $0x48] sm:$0xff] %vm4288, %v566
        %4299 = vst.msk [vmem:[%s325 + $0x50] sm:$0xff] %vm4288, %v569
        %4300 = vst.msk [vmem:[%s325 + $0x58] sm:$0xff] %vm4288, %v571
        %4301 = vst.msk [vmem:[%s325 + $0x60] sm:$0xff] %vm4288, %v574
        %4302 = vst.msk [vmem:[%s325 + $0x68] sm:$0xff] %vm4288, %v576
        %4303 = vst.msk [vmem:[%s325 + $0x70] sm:$0xff] %vm4288, %v579
        %4304 = vst.msk [vmem:[%s325 + $0x78] sm:$0xff] %vm4288, %v581
        %4305 = vst.msk [vmem:[%s325 + $0x80] sm:$0xff] %vm4288, %v584
        %4306 = vst.msk [vmem:[%s325 + $0x88] sm:$0xff] %vm4288, %v586
        %4307 = vst.msk [vmem:[%s325 + $0x90] sm:$0xff] %vm4288, %v589
        %4308 = vst.msk [vmem:[%s325 + $0x98] sm:$0xff] %vm4288, %v591
        %4309 = vst.msk [vmem:[%s325 + $0xa0] sm:$0xff] %vm4288, %v594
        %4310 = vst.msk [vmem:[%s325 + $0xa8] sm:$0xff] %vm4288, %v596
        %4311 = vst.msk [vmem:[%s325 + $0xb0] sm:$0xff] %vm4288, %v599
        %4312 = vst.msk [vmem:[%s325 + $0xb8] sm:$0xff] %vm4288, %v601
        %4313 = vst.msk [vmem:[%s325 + $0xc0] sm:$0xff] %vm4288, %v604
        %4314 = vst.msk [vmem:[%s325 + $0xc8] sm:$0xff] %vm4288, %v606
        %4315 = vst.msk [vmem:[%s325 + $0xd0] sm:$0xff] %vm4288, %v609
        %4316 = vst.msk [vmem:[%s325 + $0xd8] sm:$0xff] %vm4288, %v611
        %4317 = vst.msk [vmem:[%s325 + $0xe0] sm:$0xff] %vm4288, %v614
        %4318 = vst.msk [vmem:[%s325 + $0xe8] sm:$0xff] %vm4288, %v616
        %4319 = vst.msk [vmem:[%s325 + $0xf0] sm:$0xff] %vm4288, %v619
        %4320 = vst.msk [vmem:[%s325 + $0xf8] sm:$0xff] %vm4288, %v621
        %4353 = vrot.lane.b32.xlu0 %v3166, 8
        %v4354 = vpop.permute.xlu0 %4353
        %4355 = vrot.lane.b32.xlu0 %v3168, 8
        %v4356 = vpop.permute.xlu0 %4355
        %4357 = vrot.lane.b32.xlu0 %v3171, 8
        %v4358 = vpop.permute.xlu0 %4357
        %4359 = vrot.lane.b32.xlu0 %v3173, 8
        %v4360 = vpop.permute.xlu0 %4359
        %4361 = vrot.lane.b32.xlu0 %v3176, 8
        %v4362 = vpop.permute.xlu0 %4361
        %4363 = vrot.lane.b32.xlu0 %v3178, 8
        %v4364 = vpop.permute.xlu0 %4363
        %4365 = vrot.lane.b32.xlu0 %v3181, 8
        %v4366 = vpop.permute.xlu0 %4365
        %4367 = vrot.lane.b32.xlu0 %v3183, 8
        %v4368 = vpop.permute.xlu0 %4367
        %4369 = vrot.lane.b32.xlu0 %v3186, 8
        %v4370 = vpop.permute.xlu0 %4369
        %4371 = vrot.lane.b32.xlu0 %v3188, 8
        %v4372 = vpop.permute.xlu0 %4371
        %4373 = vrot.lane.b32.xlu0 %v3191, 8
        %v4374 = vpop.permute.xlu0 %4373
        %4375 = vrot.lane.b32.xlu0 %v3193, 8
        %v4376 = vpop.permute.xlu0 %4375
        %4377 = vrot.lane.b32.xlu0 %v3196, 8
        %v4378 = vpop.permute.xlu0 %4377
        %4379 = vrot.lane.b32.xlu0 %v3198, 8
        %v4380 = vpop.permute.xlu0 %4379
        %4381 = vrot.lane.b32.xlu0 %v3201, 8
        %v4382 = vpop.permute.xlu0 %4381
        %4383 = vrot.lane.b32.xlu0 %v3203, 8
        %v4384 = vpop.permute.xlu0 %4383
        %4385 = vrot.lane.b32.xlu0 %v3206, 8
        %v4386 = vpop.permute.xlu0 %4385
        %4387 = vrot.lane.b32.xlu0 %v3208, 8
        %v4388 = vpop.permute.xlu0 %4387
        %4389 = vrot.lane.b32.xlu0 %v3211, 8
        %v4390 = vpop.permute.xlu0 %4389
        %4391 = vrot.lane.b32.xlu0 %v3213, 8
        %v4392 = vpop.permute.xlu0 %4391
        %4393 = vrot.lane.b32.xlu0 %v3216, 8
        %v4394 = vpop.permute.xlu0 %4393
        %4395 = vrot.lane.b32.xlu0 %v3218, 8
        %v4396 = vpop.permute.xlu0 %4395
        %4397 = vrot.lane.b32.xlu0 %v3221, 8
        %v4398 = vpop.permute.xlu0 %4397
        %4399 = vrot.lane.b32.xlu0 %v3223, 8
        %v4400 = vpop.permute.xlu0 %4399
        %4401 = vrot.lane.b32.xlu0 %v3226, 8
        %v4402 = vpop.permute.xlu0 %4401
        %4403 = vrot.lane.b32.xlu0 %v3228, 8
        %v4404 = vpop.permute.xlu0 %4403
        %4405 = vrot.lane.b32.xlu0 %v3231, 8
        %v4406 = vpop.permute.xlu0 %4405
        %4407 = vrot.lane.b32.xlu0 %v3233, 8
        %v4408 = vpop.permute.xlu0 %4407
        %4409 = vrot.lane.b32.xlu0 %v3236, 8
        %v4410 = vpop.permute.xlu0 %4409
        %4411 = vrot.lane.b32.xlu0 %v3238, 8
        %v4412 = vpop.permute.xlu0 %4411
        %4413 = vrot.lane.b32.xlu0 %v3241, 8
        %v4414 = vpop.permute.xlu0 %4413
        %4415 = vrot.lane.b32.xlu0 %v3243, 8
        %v4416 = vpop.permute.xlu0 %4415
        %vm4449 = vcmask 130112
        %4450 = vst.msk [vmem:[%s325] sm:$0xff] %vm4449, %v4354
        %4451 = vst.msk [vmem:[%s325 + $0x8] sm:$0xff] %vm4449, %v4356
        %4452 = vst.msk [vmem:[%s325 + $0x10] sm:$0xff] %vm4449, %v4358
        %4453 = vst.msk [vmem:[%s325 + $0x18] sm:$0xff] %vm4449, %v4360
        %4454 = vst.msk [vmem:[%s325 + $0x20] sm:$0xff] %vm4449, %v4362
        %4455 = vst.msk [vmem:[%s325 + $0x28] sm:$0xff] %vm4449, %v4364
        %4456 = vst.msk [vmem:[%s325 + $0x30] sm:$0xff] %vm4449, %v4366
        %4457 = vst.msk [vmem:[%s325 + $0x38] sm:$0xff] %vm4449, %v4368
        %4458 = vst.msk [vmem:[%s325 + $0x40] sm:$0xff] %vm4449, %v4370
        %4459 = vst.msk [vmem:[%s325 + $0x48] sm:$0xff] %vm4449, %v4372
        %4460 = vst.msk [vmem:[%s325 + $0x50] sm:$0xff] %vm4449, %v4374
        %4461 = vst.msk [vmem:[%s325 + $0x58] sm:$0xff] %vm4449, %v4376
        %4462 = vst.msk [vmem:[%s325 + $0x60] sm:$0xff] %vm4449, %v4378
        %4463 = vst.msk [vmem:[%s325 + $0x68] sm:$0xff] %vm4449, %v4380
        %4464 = vst.msk [vmem:[%s325 + $0x70] sm:$0xff] %vm4449, %v4382
        %4465 = vst.msk [vmem:[%s325 + $0x78] sm:$0xff] %vm4449, %v4384
        %4466 = vst.msk [vmem:[%s325 + $0x80] sm:$0xff] %vm4449, %v4386
        %4467 = vst.msk [vmem:[%s325 + $0x88] sm:$0xff] %vm4449, %v4388
        %4468 = vst.msk [vmem:[%s325 + $0x90] sm:$0xff] %vm4449, %v4390
        %4469 = vst.msk [vmem:[%s325 + $0x98] sm:$0xff] %vm4449, %v4392
        %4470 = vst.msk [vmem:[%s325 + $0xa0] sm:$0xff] %vm4449, %v4394
        %4471 = vst.msk [vmem:[%s325 + $0xa8] sm:$0xff] %vm4449, %v4396
        %4472 = vst.msk [vmem:[%s325 + $0xb0] sm:$0xff] %vm4449, %v4398
        %4473 = vst.msk [vmem:[%s325 + $0xb8] sm:$0xff] %vm4449, %v4400
        %4474 = vst.msk [vmem:[%s325 + $0xc0] sm:$0xff] %vm4449, %v4402
        %4475 = vst.msk [vmem:[%s325 + $0xc8] sm:$0xff] %vm4449, %v4404
        %4476 = vst.msk [vmem:[%s325 + $0xd0] sm:$0xff] %vm4449, %v4406
        %4477 = vst.msk [vmem:[%s325 + $0xd8] sm:$0xff] %vm4449, %v4408
        %4478 = vst.msk [vmem:[%s325 + $0xe0] sm:$0xff] %vm4449, %v4410
        %4479 = vst.msk [vmem:[%s325 + $0xe8] sm:$0xff] %vm4449, %v4412
        %4480 = vst.msk [vmem:[%s325 + $0xf0] sm:$0xff] %vm4449, %v4414
        %4481 = vst.msk [vmem:[%s325 + $0xf8] sm:$0xff] %vm4449, %v4416
        %4514 = vrot.lane.b32.xlu0 %v3362, 16
        %v4515 = vpop.permute.xlu0 %4514
        %4516 = vrot.lane.b32.xlu0 %v3364, 16
        %v4517 = vpop.permute.xlu0 %4516
        %4518 = vrot.lane.b32.xlu0 %v3367, 16
        %v4519 = vpop.permute.xlu0 %4518
        %4520 = vrot.lane.b32.xlu0 %v3369, 16
        %v4521 = vpop.permute.xlu0 %4520
        %4522 = vrot.lane.b32.xlu0 %v3372, 16
        %v4523 = vpop.permute.xlu0 %4522
        %4524 = vrot.lane.b32.xlu0 %v3374, 16
        %v4525 = vpop.permute.xlu0 %4524
        %4526 = vrot.lane.b32.xlu0 %v3377, 16
        %v4527 = vpop.permute.xlu0 %4526
        %4528 = vrot.lane.b32.xlu0 %v3379, 16
        %v4529 = vpop.permute.xlu0 %4528
        %4530 = vrot.lane.b32.xlu0 %v3382, 16
        %v4531 = vpop.permute.xlu0 %4530
        %4532 = vrot.lane.b32.xlu0 %v3384, 16
        %v4533 = vpop.permute.xlu0 %4532
        %4534 = vrot.lane.b32.xlu0 %v3387, 16
        %v4535 = vpop.permute.xlu0 %4534
        %4536 = vrot.lane.b32.xlu0 %v3389, 16
        %v4537 = vpop.permute.xlu0 %4536
        %4538 = vrot.lane.b32.xlu0 %v3392, 16
        %v4539 = vpop.permute.xlu0 %4538
        %4540 = vrot.lane.b32.xlu0 %v3394, 16
        %v4541 = vpop.permute.xlu0 %4540
        %4542 = vrot.lane.b32.xlu0 %v3397, 16
        %v4543 = vpop.permute.xlu0 %4542
        %4544 = vrot.lane.b32.xlu0 %v3399, 16
        %v4545 = vpop.permute.xlu0 %4544
        %4546 = vrot.lane.b32.xlu0 %v3402, 16
        %v4547 = vpop.permute.xlu0 %4546
        %4548 = vrot.lane.b32.xlu0 %v3404, 16
        %v4549 = vpop.permute.xlu0 %4548
        %4550 = vrot.lane.b32.xlu0 %v3407, 16
        %v4551 = vpop.permute.xlu0 %4550
        %4552 = vrot.lane.b32.xlu0 %v3409, 16
        %v4553 = vpop.permute.xlu0 %4552
        %4554 = vrot.lane.b32.xlu0 %v3412, 16
        %v4555 = vpop.permute.xlu0 %4554
        %4556 = vrot.lane.b32.xlu0 %v3414, 16
        %v4557 = vpop.permute.xlu0 %4556
        %4558 = vrot.lane.b32.xlu0 %v3417, 16
        %v4559 = vpop.permute.xlu0 %4558
        %4560 = vrot.lane.b32.xlu0 %v3419, 16
        %v4561 = vpop.permute.xlu0 %4560
        %4562 = vrot.lane.b32.xlu0 %v3422, 16
        %v4563 = vpop.permute.xlu0 %4562
        %4564 = vrot.lane.b32.xlu0 %v3424, 16
        %v4565 = vpop.permute.xlu0 %4564
        %4566 = vrot.lane.b32.xlu0 %v3427, 16
        %v4567 = vpop.permute.xlu0 %4566
        %4568 = vrot.lane.b32.xlu0 %v3429, 16
        %v4569 = vpop.permute.xlu0 %4568
        %4570 = vrot.lane.b32.xlu0 %v3432, 16
        %v4571 = vpop.permute.xlu0 %4570
        %4572 = vrot.lane.b32.xlu0 %v3434, 16
        %v4573 = vpop.permute.xlu0 %4572
        %4574 = vrot.lane.b32.xlu0 %v3437, 16
        %v4575 = vpop.permute.xlu0 %4574
        %4576 = vrot.lane.b32.xlu0 %v3439, 16
        %v4577 = vpop.permute.xlu0 %4576
        %vm4610 = vcmask 195712
        %4611 = vst.msk [vmem:[%s325] sm:$0xff] %vm4610, %v4515
        %4612 = vst.msk [vmem:[%s325 + $0x8] sm:$0xff] %vm4610, %v4517
        %4613 = vst.msk [vmem:[%s325 + $0x10] sm:$0xff] %vm4610, %v4519
        %4614 = vst.msk [vmem:[%s325 + $0x18] sm:$0xff] %vm4610, %v4521
        %4615 = vst.msk [vmem:[%s325 + $0x20] sm:$0xff] %vm4610, %v4523
        %4616 = vst.msk [vmem:[%s325 + $0x28] sm:$0xff] %vm4610, %v4525
        %4617 = vst.msk [vmem:[%s325 + $0x30] sm:$0xff] %vm4610, %v4527
        %4618 = vst.msk [vmem:[%s325 + $0x38] sm:$0xff] %vm4610, %v4529
        %4619 = vst.msk [vmem:[%s325 + $0x40] sm:$0xff] %vm4610, %v4531
        %4620 = vst.msk [vmem:[%s325 + $0x48] sm:$0xff] %vm4610, %v4533
        %4621 = vst.msk [vmem:[%s325 + $0x50] sm:$0xff] %vm4610, %v4535
        %4622 = vst.msk [vmem:[%s325 + $0x58] sm:$0xff] %vm4610, %v4537
        %4623 = vst.msk [vmem:[%s325 + $0x60] sm:$0xff] %vm4610, %v4539
        %4624 = vst.msk [vmem:[%s325 + $0x68] sm:$0xff] %vm4610, %v4541
        %4625 = vst.msk [vmem:[%s325 + $0x70] sm:$0xff] %vm4610, %v4543
        %4626 = vst.msk [vmem:[%s325 + $0x78] sm:$0xff] %vm4610, %v4545
        %4627 = vst.msk [vmem:[%s325 + $0x80] sm:$0xff] %vm4610, %v4547
        %4628 = vst.msk [vmem:[%s325 + $0x88] sm:$0xff] %vm4610, %v4549
        %4629 = vst.msk [vmem:[%s325 + $0x90] sm:$0xff] %vm4610, %v4551
        %4630 = vst.msk [vmem:[%s325 + $0x98] sm:$0xff] %vm4610, %v4553
        %4631 = vst.msk [vmem:[%s325 + $0xa0] sm:$0xff] %vm4610, %v4555
        %4632 = vst.msk [vmem:[%s325 + $0xa8] sm:$0xff] %vm4610, %v4557
        %4633 = vst.msk [vmem:[%s325 + $0xb0] sm:$0xff] %vm4610, %v4559
        %4634 = vst.msk [vmem:[%s325 + $0xb8] sm:$0xff] %vm4610, %v4561
        %4635 = vst.msk [vmem:[%s325 + $0xc0] sm:$0xff] %vm4610, %v4563
        %4636 = vst.msk [vmem:[%s325 + $0xc8] sm:$0xff] %vm4610, %v4565
        %4637 = vst.msk [vmem:[%s325 + $0xd0] sm:$0xff] %vm4610, %v4567
        %4638 = vst.msk [vmem:[%s325 + $0xd8] sm:$0xff] %vm4610, %v4569
        %4639 = vst.msk [vmem:[%s325 + $0xe0] sm:$0xff] %vm4610, %v4571
        %4640 = vst.msk [vmem:[%s325 + $0xe8] sm:$0xff] %vm4610, %v4573
        %4641 = vst.msk [vmem:[%s325 + $0xf0] sm:$0xff] %vm4610, %v4575
        %4642 = vst.msk [vmem:[%s325 + $0xf8] sm:$0xff] %vm4610, %v4577
        %4675 = vrot.lane.b32.xlu0 %v4209, 24
        %v4676 = vpop.permute.xlu0 %4675
        %4677 = vrot.lane.b32.xlu0 %v4211, 24
        %v4678 = vpop.permute.xlu0 %4677
        %4679 = vrot.lane.b32.xlu0 %v4214, 24
        %v4680 = vpop.permute.xlu0 %4679
        %4681 = vrot.lane.b32.xlu0 %v4216, 24
        %v4682 = vpop.permute.xlu0 %4681
        %4683 = vrot.lane.b32.xlu0 %v4219, 24
        %v4684 = vpop.permute.xlu0 %4683
        %4685 = vrot.lane.b32.xlu0 %v4221, 24
        %v4686 = vpop.permute.xlu0 %4685
        %4687 = vrot.lane.b32.xlu0 %v4224, 24
        %v4688 = vpop.permute.xlu0 %4687
        %4689 = vrot.lane.b32.xlu0 %v4226, 24
        %v4690 = vpop.permute.xlu0 %4689
        %4691 = vrot.lane.b32.xlu0 %v4229, 24
        %v4692 = vpop.permute.xlu0 %4691
        %4693 = vrot.lane.b32.xlu0 %v4231, 24
        %v4694 = vpop.permute.xlu0 %4693
        %4695 = vrot.lane.b32.xlu0 %v4234, 24
        %v4696 = vpop.permute.xlu0 %4695
        %4697 = vrot.lane.b32.xlu0 %v4236, 24
        %v4698 = vpop.permute.xlu0 %4697
        %4699 = vrot.lane.b32.xlu0 %v4239, 24
        %v4700 = vpop.permute.xlu0 %4699
        %4701 = vrot.lane.b32.xlu0 %v4241, 24
        %v4702 = vpop.permute.xlu0 %4701
        %4703 = vrot.lane.b32.xlu0 %v4244, 24
        %v4704 = vpop.permute.xlu0 %4703
        %4705 = vrot.lane.b32.xlu0 %v4246, 24
        %v4706 = vpop.permute.xlu0 %4705
        %4707 = vrot.lane.b32.xlu0 %v4249, 24
        %v4708 = vpop.permute.xlu0 %4707
        %4709 = vrot.lane.b32.xlu0 %v4251, 24
        %v4710 = vpop.permute.xlu0 %4709
        %4711 = vrot.lane.b32.xlu0 %v4254, 24
        %v4712 = vpop.permute.xlu0 %4711
        %4713 = vrot.lane.b32.xlu0 %v4256, 24
        %v4714 = vpop.permute.xlu0 %4713
        %4715 = vrot.lane.b32.xlu0 %v4259, 24
        %v4716 = vpop.permute.xlu0 %4715
        %4717 = vrot.lane.b32.xlu0 %v4261, 24
        %v4718 = vpop.permute.xlu0 %4717
        %4719 = vrot.lane.b32.xlu0 %v4264, 24
        %v4720 = vpop.permute.xlu0 %4719
        %4721 = vrot.lane.b32.xlu0 %v4266, 24
        %v4722 = vpop.permute.xlu0 %4721
        %4723 = vrot.lane.b32.xlu0 %v4269, 24
        %v4724 = vpop.permute.xlu0 %4723
        %4725 = vrot.lane.b32.xlu0 %v4271, 24
        %v4726 = vpop.permute.xlu0 %4725
        %4727 = vrot.lane.b32.xlu0 %v4274, 24
        %v4728 = vpop.permute.xlu0 %4727
        %4729 = vrot.lane.b32.xlu0 %v4276, 24
        %v4730 = vpop.permute.xlu0 %4729
        %4731 = vrot.lane.b32.xlu0 %v4279, 24
        %v4732 = vpop.permute.xlu0 %4731
        %4733 = vrot.lane.b32.xlu0 %v4281, 24
        %v4734 = vpop.permute.xlu0 %4733
        %4735 = vrot.lane.b32.xlu0 %v4284, 24
        %v4736 = vpop.permute.xlu0 %4735
        %4737 = vrot.lane.b32.xlu0 %v4286, 24
        %v4738 = vpop.permute.xlu0 %4737
        %vm4771 = vcmask 261312
        %4772 = vst.msk [vmem:[%s325] sm:$0xff] %vm4771, %v4676
        %4773 = vst.msk [vmem:[%s325 + $0x8] sm:$0xff] %vm4771, %v4678
        %4774 = vst.msk [vmem:[%s325 + $0x10] sm:$0xff] %vm4771, %v4680
        %4775 = vst.msk [vmem:[%s325 + $0x18] sm:$0xff] %vm4771, %v4682
        %4776 = vst.msk [vmem:[%s325 + $0x20] sm:$0xff] %vm4771, %v4684
        %4777 = vst.msk [vmem:[%s325 + $0x28] sm:$0xff] %vm4771, %v4686
        %4778 = vst.msk [vmem:[%s325 + $0x30] sm:$0xff] %vm4771, %v4688
        %4779 = vst.msk [vmem:[%s325 + $0x38] sm:$0xff] %vm4771, %v4690
        %4780 = vst.msk [vmem:[%s325 + $0x40] sm:$0xff] %vm4771, %v4692
        %4781 = vst.msk [vmem:[%s325 + $0x48] sm:$0xff] %vm4771, %v4694
        %4782 = vst.msk [vmem:[%s325 + $0x50] sm:$0xff] %vm4771, %v4696
        %4783 = vst.msk [vmem:[%s325 + $0x58] sm:$0xff] %vm4771, %v4698
        %4784 = vst.msk [vmem:[%s325 + $0x60] sm:$0xff] %vm4771, %v4700
        %4785 = vst.msk [vmem:[%s325 + $0x68] sm:$0xff] %vm4771, %v4702
        %4786 = vst.msk [vmem:[%s325 + $0x70] sm:$0xff] %vm4771, %v4704
        %4787 = vst.msk [vmem:[%s325 + $0x78] sm:$0xff] %vm4771, %v4706
        %4788 = vst.msk [vmem:[%s325 + $0x80] sm:$0xff] %vm4771, %v4708
        %4789 = vst.msk [vmem:[%s325 + $0x88] sm:$0xff] %vm4771, %v4710
        %4790 = vst.msk [vmem:[%s325 + $0x90] sm:$0xff] %vm4771, %v4712
        %4791 = vst.msk [vmem:[%s325 + $0x98] sm:$0xff] %vm4771, %v4714
        %4792 = vst.msk [vmem:[%s325 + $0xa0] sm:$0xff] %vm4771, %v4716
        %4793 = vst.msk [vmem:[%s325 + $0xa8] sm:$0xff] %vm4771, %v4718
        %4794 = vst.msk [vmem:[%s325 + $0xb0] sm:$0xff] %vm4771, %v4720
        %4795 = vst.msk [vmem:[%s325 + $0xb8] sm:$0xff] %vm4771, %v4722
        %4796 = vst.msk [vmem:[%s325 + $0xc0] sm:$0xff] %vm4771, %v4724
        %4797 = vst.msk [vmem:[%s325 + $0xc8] sm:$0xff] %vm4771, %v4726
        %4798 = vst.msk [vmem:[%s325 + $0xd0] sm:$0xff] %vm4771, %v4728
        %4799 = vst.msk [vmem:[%s325 + $0xd8] sm:$0xff] %vm4771, %v4730
        %4800 = vst.msk [vmem:[%s325 + $0xe0] sm:$0xff] %vm4771, %v4732
        %4801 = vst.msk [vmem:[%s325 + $0xe8] sm:$0xff] %vm4771, %v4734
        %4802 = vst.msk [vmem:[%s325 + $0xf0] sm:$0xff] %vm4771, %v4736
        %4803 = vst.msk [vmem:[%s325 + $0xf8] sm:$0xff] %vm4771, %v4738
        %s4804 = sand.u32 %s225, 1
        %s4805 = scalar_lea.sflag [#allocation5], %s4804
        %s4806 = sand.u32 %s225, 1
        %s4807 = smul.addr %s4806, 256
        %s4808 = scalar_lea.vmem [#allocation4], %s4807
        // Predicated region
        $region57: #{tpu_custom_call.1} parent=55 // pred_check
          %p4809 = pneg %p235
        $region58: #{tpu_custom_call.1} parent=55 // pred_check_branch
          %4811 = sbr.rel (%p4809) target = $region60
        $region59: #{tpu_custom_call.1} parent=55 // pred_region
          %4813 = vsyncadd %s4805, 0
          %s4814 = smul.addr %s23, 32
          %s4815 = smul.addr %s4814, 8
          %s4816 = scalar_lea.hbm %s9, %s4815
          %s4817 = sshll.u32 %s4808, 4
          %s4818 = int_to_ptr.vmem [resolvable:$true] %s4817
          %s4819 = sshll.u32 %s4816, 4
          %s4820 = int_to_ptr.hbm [resolvable:$true] %s4819
          %4825 = dma.vmem_to_hbm [thread:$0]  %s4818, 4096, %s4820, %s4805, 128, 128, 8
        $region60: #{tpu_custom_call.1} parent=55 // pred_fallthru
          _
      $region56: #{tpu_custom_call.1} parent=5 // pred_fallthru
        _
      %p4826 = scmp.le.s32.totalorder 2, %s18
      // Predicated region
      $region61: #{tpu_custom_call.1} parent=5 // pred_check
        %p4827 = pneg %p4826
      $region62: #{tpu_custom_call.1} parent=5 // pred_check_branch
        %4829 = sbr.rel (%p4827) target = $region64
      $region63: #{tpu_custom_call.1} parent=5 // pred_region
        %s4830 = ssub.s32 %s18, 2
        // Predicated region
        $region65: #{tpu_custom_call.1} parent=63 // pred_check
          %p4831 = pneg %p241
        $region66: #{tpu_custom_call.1} parent=63 // pred_check_branch
          %4833 = sbr.rel (%p4831) target = $region68
        $region67: #{tpu_custom_call.1} parent=63 // pred_region
          %s4834 = sand.u32 %s226, 1
          %s4835 = scalar_lea.sflag [#allocation5], %s4834
          %s4836 = sand.u32 %s226, 1
          %s4837 = smul.addr %s4836, 256
          %s4838 = scalar_lea.vmem [#allocation4], %s4837
          %4840 = dma.done %s4835, 4096
        $region68: #{tpu_custom_call.1} parent=63 // pred_fallthru
          _
      $region64: #{tpu_custom_call.1} parent=5 // pred_fallthru
        _
    $region6: #{tpu_custom_call.1} parent=1 // loop_footer
      %s22 = sadd.s32 1, %s18
    $region7: #{tpu_custom_call.1} parent=1 // loop_footer_branch
      %17 = sbr.rel target = $region3
    $region8: #{tpu_custom_call.1} parent=1 // loop_exit
      _
    %4841 = vsyncpa [#allocation5], 1
    %s4842 = scalar_lea.sflag [#allocation5], 1
    %4843 = vsyncpa %s4842, 1

</llo_original>
